<compile_context>
chip_gen: v7x
topology: tpu7x:2x2x1
jax: 0.10.0
libtpu: 0.0.40
codegen_flags: <defaults>
</compile_context>

<pallas_src>
import functools

import numpy as np
import jax
import jax.numpy as jnp
from jax.experimental import pallas as pl
from jax.experimental.pallas import tpu as pltpu

K = 3                      # 3x3 affinity kernel (guided channels = K*K = 9)
PROP_TIME = 3              # self.times in the PyTorch module
ROW_OFF = 8                # sublane-aligned interior row offset inside xpad
LANE_OFF = 128             # lane-aligned interior col offset inside xpad
_VMEM_TARGET = 40 * 2**20  # per-tile working-set target (fits v7x's 64 MiB)


def _round_up(v, m):
    return -(-v // m) * m


def _affinity_kernel(g1_hbm, g2_hbm, fuse_hbm, x_hbm, o_ref,
                     g1_buf, g2_buf, fuse_buf, w_ref, x_buf, xpad_ref, sems,
                     *, prop_time):
    # g*_hbm : (B, 9, Hpad, Wp)   fuse_hbm : (B, 2, Hpad, Wp)   x_hbm : (B, 1, Hpad, Wp)
    # o_ref  : (1, TH, Wp)
    # g*_buf : (9, R, Wp)  fuse_buf : (2, R, Wp)   DMA landing buffers (bf16)
    # w_ref  : (18, R, Wp) f32  fuse-premultiplied softmax weights (in VMEM, in place)
    # x_buf  : (R, Wp) f32      DMA landing buffer for the halo'd x window
    # xpad   : (R + 16, Wp + 256) f32  zero-ringed scratch for the shifted tap reads
    b = pl.program_id(0)
    t = pl.program_id(1)
    _, R, Wp = g1_buf.shape
    TH = o_ref.shape[-2]
    halo = (R - TH) // 2
    row0 = t * TH

    # ---- issue every HBM->VMEM DMA for this tile up front; they overlap each
    #      other and the weight preprocessing below (x is only needed last) ----
    cp_g1 = pltpu.make_async_copy(g1_hbm.at[b, :, pl.ds(row0, R), :], g1_buf, sems.at[0])
    cp_g2 = pltpu.make_async_copy(g2_hbm.at[b, :, pl.ds(row0, R), :], g2_buf, sems.at[1])
    cp_fu = pltpu.make_async_copy(fuse_hbm.at[b, :, pl.ds(row0, R), :], fuse_buf, sems.at[2])
    cp_x = pltpu.make_async_copy(x_hbm.at[b, 0, pl.ds(row0, R), :], x_buf, sems.at[3])
    cp_g1.start()
    cp_fu.start()
    cp_g2.start()
    cp_x.start()

    # ---- zero only the halo strips of xpad that are ever read as padding; the
    #      interior is overwritten with x at the top of every iteration ----
    wtot = Wp + 2 * LANE_OFF
    zrow = jnp.zeros((ROW_OFF, wtot), jnp.float32)
    xpad_ref[pl.ds(0, ROW_OFF), pl.ds(0, wtot)] = zrow
    xpad_ref[pl.ds(ROW_OFF + R, ROW_OFF), pl.ds(0, wtot)] = zrow
    zcol = jnp.zeros((R, LANE_OFF), jnp.float32)
    xpad_ref[pl.ds(ROW_OFF, R), pl.ds(0, LANE_OFF)] = zcol
    xpad_ref[pl.ds(ROW_OFF, R), pl.ds(LANE_OFF + Wp, LANE_OFF)] = zcol

    # ---- softmax over the 9 affinity channels, pre-multiplied by the fuse
    #      blend weight, written channel-by-channel into w_ref so only ~2
    #      full-tile f32 temporaries are ever live (no k1/k2/a1/a2 lists) ----
    def fused_softmax_weights(g_buf, fuse_ch, base):
        m = g_buf[0].astype(jnp.float32)
        for j in range(1, K * K):
            m = jnp.maximum(m, g_buf[j].astype(jnp.float32))
        s = None
        for j in range(K * K):
            e = jnp.exp(g_buf[j].astype(jnp.float32) - m)
            w_ref[base + j] = e
            s = e if s is None else s + e
        inv = pl.reciprocal(s, approx=True)        # EUP slot, nearly free
        inv = inv * (2.0 - s * inv)                # one Newton step -> ~f32 accuracy
        scale = fuse_buf[fuse_ch].astype(jnp.float32) * inv
        for j in range(K * K):
            w_ref[base + j] = w_ref[base + j] * scale

    cp_g1.wait()
    cp_fu.wait()
    fused_softmax_weights(g1_buf, 0, 0)
    cp_g2.wait()
    fused_softmax_weights(g2_buf, 1, K * K)

    # ---- propagation: prop_time statically-unrolled steps; the 18 shifted taps
    #      are read directly from xpad and streamed into the accumulator ----
    cp_x.wait()
    x = x_buf[...]
    for _ in range(prop_time):
        # fully (8,128)-aligned interior store
        xpad_ref[pl.ds(ROW_OFF, R), pl.ds(LANE_OFF, Wp)] = x
        out = None
        for dil, base in ((1, 0), (2, K * K)):
            for kh in range(K):
                for kw in range(K):
                    j = base + kh * K + kw
                    tap = xpad_ref[pl.ds(ROW_OFF + dil * (kh - 1), R),
                                   pl.ds(LANE_OFF + dil * (kw - 1), Wp)]
                    term = tap * w_ref[j]
                    out = term if out is None else out + term
        x = out
        # TODO(synk): sparse_depth masking (mask*x0 + (1-mask)*x) would go here.

    # Only the central TH rows of the tile are valid after prop_time steps.
    o_ref[0] = x[halo:halo + TH, :].astype(o_ref.dtype)


def affinity_propagate2(guided1, guided2, fuse, x, prop_time=PROP_TIME,
                        tile_h=128, guided_dtype=jnp.bfloat16):
    """Forward of AffinityPropagate2 (sparse_depth=None path).

    guided_dtype controls the HBM precision of guided1/guided2/fuse (bf16 by
    default to halve DMA traffic; pass jnp.float32 for exact f32 semantics).
    """
    B, C, H, W = guided1.shape
    assert C == K * K, f"guided channels must be {K * K}"
    assert x.shape == (B, 1, H, W)
    assert fuse.shape[0] == B and fuse.shape[1] >= 2

    # Recomputed halo: the final output needs input correct to 2*prop_time rows;
    # round up to 8 so every buffer / slice stays sublane aligned.
    halo = _round_up(2 * prop_time, ROW_OFF)
    Wp = _round_up(max(W, 128), 128)
    gsize = np.dtype(guided_dtype).itemsize

    def tile_vmem_bytes(th):
        r = th + 2 * halo
        return (2 * K * K * r * Wp * gsize                     # g1/g2 landing buffers
                + 2 * r * Wp * gsize                           # fuse landing buffer
                + 2 * K * K * r * Wp * 4                       # premultiplied weights (f32)
                + r * Wp * 4                                   # x landing buffer
                + (r + 2 * ROW_OFF) * (Wp + 2 * LANE_OFF) * 4  # xpad scratch
                + 2 * th * Wp * 4                              # double-buffered output tile
                + 6 * r * Wp * 4)                              # live-value headroom (x/out/m/s)

    # Pick the largest TH (multiple of 16) that keeps the tile under the target.
    TH = max(16, min(_round_up(H, 16), _round_up(tile_h, 16)))
    while TH > 16 and tile_vmem_bytes(TH) > _VMEM_TARGET:
        TH -= 16
    R = TH + 2 * halo
    Ht = _round_up(H, TH)
    num_tiles = Ht // TH
    Hpad = Ht + 2 * halo

    # Zero-padded fuse keeps every padded row/column of x exactly zero through
    # all iterations, so the module's zero-padding boundary semantics hold.
    def prep(a, ch, dt):
        a = a[:, :ch].astype(dt)
        return jnp.pad(a, ((0, 0), (0, 0), (halo, Hpad - halo - H), (0, Wp - W)))

    g1p = prep(guided1, C, guided_dtype)
    g2p = prep(guided2, C, guided_dtype)
    fusep = prep(fuse, 2, guided_dtype)
    xp = prep(x, 1, jnp.float32)

    npx = B * num_tiles * R * Wp
    cost = pl.CostEstimate(
        flops=int(npx * (60 + 36 * prop_time)),
        transcendentals=int(npx * 20),
        bytes_accessed=int(npx * (2 * (C + 1) * gsize + 4) + B * Ht * Wp * 8),
    )
    vmem_limit = int(min(110 * 2**20, tile_vmem_bytes(TH) + 16 * 2**20))

    kernel = functools.partial(_affinity_kernel, prop_time=prop_time)
    out = pl.pallas_call(
        kernel,
        out_shape=jax.ShapeDtypeStruct((B, 1, Ht, Wp), x.dtype),
        grid=(B, num_tiles),
        in_specs=[pl.BlockSpec(memory_space=pl.ANY)] * 4,    # manual halo'd DMA
        out_specs=pl.BlockSpec((None, 1, TH, Wp), lambda b, t: (b, 0, t, 0)),
        scratch_shapes=[
            pltpu.VMEM((K * K, R, Wp), guided_dtype),        # g1 landing
            pltpu.VMEM((K * K, R, Wp), guided_dtype),        # g2 landing
            pltpu.VMEM((2, R, Wp), guided_dtype),            # fuse landing
            pltpu.VMEM((2 * K * K, R, Wp), jnp.float32),     # premultiplied weights
            pltpu.VMEM((R, Wp), jnp.float32),                # x landing
            pltpu.VMEM((R + 2 * ROW_OFF, Wp + 2 * LANE_OFF), jnp.float32),  # xpad
            pltpu.SemaphoreType.DMA((4,)),
        ],
        compiler_params=pltpu.CompilerParams(
            dimension_semantics=("parallel", "parallel"),
            vmem_limit_bytes=vmem_limit),
        cost_estimate=cost,
    )(g1p, g2p, fusep, xp)
    return out[:, :, :H, :W]


def _reference(guided1, guided2, fuse, x, prop_time=PROP_TIME):
    """Pure-JAX reference mirroring the PyTorch unfold + einsum semantics."""
    B, C, H, W = guided1.shape
    k1 = jax.nn.softmax(guided1, axis=1)
    k2 = jax.nn.softmax(guided2, axis=1)
    PAD = 2
    for _ in range(prop_time):
        xp = jnp.pad(x, ((0, 0), (0, 0), (PAD, PAD), (PAD, PAD)))
        out1 = jnp.zeros((B, 1, H, W), x.dtype)
        out2 = jnp.zeros((B, 1, H, W), x.dtype)
        for kh in range(K):
            for kw in range(K):
                j = kh * K + kw
                n1 = xp[:, :, PAD + (kh - 1): PAD + (kh - 1) + H,
                              PAD + (kw - 1): PAD + (kw - 1) + W]
                n2 = xp[:, :, PAD + 2 * (kh - 1): PAD + 2 * (kh - 1) + H,
                              PAD + 2 * (kw - 1): PAD + 2 * (kw - 1) + W]
                out1 = out1 + n1 * k1[:, j:j + 1]
                out2 = out2 + n2 * k2[:, j:j + 1]
        x = out1 * fuse[:, 0:1] + out2 * fuse[:, 1:2]
    return x


if __name__ == "__main__":
    key = jax.random.PRNGKey(0)
    # Feed the reference the same bf16-rounded guided/fuse values the kernel
    # DMAs, so the assert isolates kernel correctness from the (review-
    # requested) bf16 input quantization.
    q = lambda a: a.astype(jnp.bfloat16).astype(jnp.float32)

    # Case 1: single H-tile per batch.
    B, H, W = 2, 16, 16
    k_g1, k_g2, k_fuse, k_x = jax.random.split(key, 4)
    guided1 = jax.random.normal(k_g1, (B, K * K, H, W), dtype=jnp.float32)
    guided2 = jax.random.normal(k_g2, (B, K * K, H, W), dtype=jnp.float32)
    fuse = jax.nn.sigmoid(jax.random.normal(k_fuse, (B, 2, H, W), dtype=jnp.float32))
    x = jax.random.normal(k_x, (B, 1, H, W), dtype=jnp.float32)

    out = jax.block_until_ready(affinity_propagate2(guided1, guided2, fuse, x))
    ref = _reference(q(guided1), q(guided2), q(fuse), x)
    assert out.shape == (B, 1, H, W)
    assert jnp.allclose(out, ref, atol=1e-3, rtol=1e-3), "mismatch vs reference (case 1)"

    # Case 2: multiple H-tiles with recomputed halo (ragged H and W).
    B2, H2, W2 = 1, 40, 20
    k_g1, k_g2, k_fuse, k_x = jax.random.split(jax.random.PRNGKey(1), 4)
    guided1b = jax.random.normal(k_g1, (B2, K * K, H2, W2), dtype=jnp.float32)
    guided2b = jax.random.normal(k_g2, (B2, K * K, H2, W2), dtype=jnp.float32)
    fuseb = jax.nn.sigmoid(jax.random.normal(k_fuse, (B2, 2, H2, W2), dtype=jnp.float32))
    xb = jax.random.normal(k_x, (B2, 1, H2, W2), dtype=jnp.float32)

    outb = jax.block_until_ready(
        affinity_propagate2(guided1b, guided2b, fuseb, xb, tile_h=16))
    refb = _reference(q(guided1b), q(guided2b), q(fuseb), xb)
    assert outb.shape == (B2, 1, H2, W2)
    assert jnp.allclose(outb, refb, atol=1e-3, rtol=1e-3), "mismatch vs reference (case 2)"

    print("KERNEL_OK")
</pallas_src>

<mosaic_0001>
module attributes {stable_mosaic.version = 11 : i64} {
  func.func @_affinity_kernel(%arg0: i32, %arg1: i32, %arg2: memref<2x9x32x128xbf16, #tpu.memory_space<any>>, %arg3: memref<2x9x32x128xbf16, #tpu.memory_space<any>>, %arg4: memref<2x2x32x128xbf16, #tpu.memory_space<any>>, %arg5: memref<2x1x32x128xf32, #tpu.memory_space<any>>, %arg6: memref<1x1x16x128xf32, #tpu.memory_space<vmem>>, %arg7: memref<9x32x128xbf16, #tpu.memory_space<vmem>>, %arg8: memref<9x32x128xbf16, #tpu.memory_space<vmem>>, %arg9: memref<2x32x128xbf16, #tpu.memory_space<vmem>>, %arg10: memref<18x32x128xf32, #tpu.memory_space<vmem>>, %arg11: memref<32x128xf32, #tpu.memory_space<vmem>>, %arg12: memref<48x384xf32, #tpu.memory_space<vmem>>, %arg13: memref<4x!tpu.dma_semaphore, #tpu.memory_space<semaphore_mem>>) attributes {dimension_semantics = [#tpu.dimension_semantics<parallel>, #tpu.dimension_semantics<parallel>], iteration_bounds = array<i64: 2, 1>, scalar_prefetch = 0 : i64, scratch_operands = 7 : i64, tpu.core_type = #tpu.core_type<tc>, window_params = [{}, {}, {}, {}, {transform_indices = @transform_4, window_bounds = array<i64: 1, 1, 16, 128>}]} {
    %c16_i32 = arith.constant 16 : i32
    %0 = arith.muli %arg1, %c16_i32 : i32
    %c0_i32 = arith.constant 0 : i32
    %c0_i32_0 = arith.constant 0 : i32
    %c0_i32_1 = arith.constant 0 : i32
    %1 = tpu.memref_slice %arg2[%arg0, %c0_i32_0, %0, %c0_i32_1] : memref<2x9x32x128xbf16, #tpu.memory_space<any>> -> memref<1x9x32x128xbf16, #tpu.memory_space<any>>
    %2 = tpu.memref_squeeze %1 : memref<1x9x32x128xbf16, #tpu.memory_space<any>> -> memref<9x32x128xbf16, #tpu.memory_space<any>>
    %3 = tpu.memref_slice %arg13[%c0_i32] : memref<4x!tpu.dma_semaphore, #tpu.memory_space<semaphore_mem>> -> memref<1x!tpu.dma_semaphore, #tpu.memory_space<semaphore_mem>>
    %4 = tpu.memref_squeeze %3 : memref<1x!tpu.dma_semaphore, #tpu.memory_space<semaphore_mem>> -> memref<!tpu.dma_semaphore, #tpu.memory_space<semaphore_mem>>
    tpu.enqueue_dma source(%2 : memref<9x32x128xbf16, #tpu.memory_space<any>>) target(%arg7 : memref<9x32x128xbf16, #tpu.memory_space<vmem>>) target_semaphore(%4 : memref<!tpu.dma_semaphore, #tpu.memory_space<semaphore_mem>>)
    %c2_i32 = arith.constant 2 : i32
    %c0_i32_2 = arith.constant 0 : i32
    %c0_i32_3 = arith.constant 0 : i32
    %5 = tpu.memref_slice %arg4[%arg0, %c0_i32_2, %0, %c0_i32_3] : memref<2x2x32x128xbf16, #tpu.memory_space<any>> -> memref<1x2x32x128xbf16, #tpu.memory_space<any>>
    %6 = tpu.memref_squeeze %5 : memref<1x2x32x128xbf16, #tpu.memory_space<any>> -> memref<2x32x128xbf16, #tpu.memory_space<any>>
    %7 = tpu.memref_slice %arg13[%c2_i32] : memref<4x!tpu.dma_semaphore, #tpu.memory_space<semaphore_mem>> -> memref<1x!tpu.dma_semaphore, #tpu.memory_space<semaphore_mem>>
    %8 = tpu.memref_squeeze %7 : memref<1x!tpu.dma_semaphore, #tpu.memory_space<semaphore_mem>> -> memref<!tpu.dma_semaphore, #tpu.memory_space<semaphore_mem>>
    tpu.enqueue_dma source(%6 : memref<2x32x128xbf16, #tpu.memory_space<any>>) target(%arg9 : memref<2x32x128xbf16, #tpu.memory_space<vmem>>) target_semaphore(%8 : memref<!tpu.dma_semaphore, #tpu.memory_space<semaphore_mem>>)
    %c1_i32 = arith.constant 1 : i32
    %c0_i32_4 = arith.constant 0 : i32
    %c0_i32_5 = arith.constant 0 : i32
    %9 = tpu.memref_slice %arg3[%arg0, %c0_i32_4, %0, %c0_i32_5] : memref<2x9x32x128xbf16, #tpu.memory_space<any>> -> memref<1x9x32x128xbf16, #tpu.memory_space<any>>
    %10 = tpu.memref_squeeze %9 : memref<1x9x32x128xbf16, #tpu.memory_space<any>> -> memref<9x32x128xbf16, #tpu.memory_space<any>>
    %11 = tpu.memref_slice %arg13[%c1_i32] : memref<4x!tpu.dma_semaphore, #tpu.memory_space<semaphore_mem>> -> memref<1x!tpu.dma_semaphore, #tpu.memory_space<semaphore_mem>>
    %12 = tpu.memref_squeeze %11 : memref<1x!tpu.dma_semaphore, #tpu.memory_space<semaphore_mem>> -> memref<!tpu.dma_semaphore, #tpu.memory_space<semaphore_mem>>
    tpu.enqueue_dma source(%10 : memref<9x32x128xbf16, #tpu.memory_space<any>>) target(%arg8 : memref<9x32x128xbf16, #tpu.memory_space<vmem>>) target_semaphore(%12 : memref<!tpu.dma_semaphore, #tpu.memory_space<semaphore_mem>>)
    %c0_i32_6 = arith.constant 0 : i32
    %c3_i32 = arith.constant 3 : i32
    %c0_i32_7 = arith.constant 0 : i32
    %13 = tpu.memref_slice %arg5[%arg0, %c0_i32_6, %0, %c0_i32_7] : memref<2x1x32x128xf32, #tpu.memory_space<any>> -> memref<1x1x32x128xf32, #tpu.memory_space<any>>
    %14 = tpu.memref_squeeze %13 : memref<1x1x32x128xf32, #tpu.memory_space<any>> -> memref<32x128xf32, #tpu.memory_space<any>>
    %15 = tpu.memref_slice %arg13[%c3_i32] : memref<4x!tpu.dma_semaphore, #tpu.memory_space<semaphore_mem>> -> memref<1x!tpu.dma_semaphore, #tpu.memory_space<semaphore_mem>>
    %16 = tpu.memref_squeeze %15 : memref<1x!tpu.dma_semaphore, #tpu.memory_space<semaphore_mem>> -> memref<!tpu.dma_semaphore, #tpu.memory_space<semaphore_mem>>
    tpu.enqueue_dma source(%14 : memref<32x128xf32, #tpu.memory_space<any>>) target(%arg11 : memref<32x128xf32, #tpu.memory_space<vmem>>) target_semaphore(%16 : memref<!tpu.dma_semaphore, #tpu.memory_space<semaphore_mem>>)
    %cst = arith.constant 0.000000e+00 : f32
    %17 = vector.broadcast %cst : f32 to vector<8x384xf32>
    %c0 = arith.constant 0 : index
    %c0_8 = arith.constant 0 : index
    %18 = vector.load %arg12[%c0, %c0_8] : memref<48x384xf32, #tpu.memory_space<vmem>>, vector<8x384xf32>
    tpu.vector_store %arg12[%c0, %c0_8], %17 {strides = array<i32>} : memref<48x384xf32, #tpu.memory_space<vmem>>, vector<8x384xf32>,
    %c40 = arith.constant 40 : index
    %c0_9 = arith.constant 0 : index
    %19 = vector.load %arg12[%c40, %c0_9] : memref<48x384xf32, #tpu.memory_space<vmem>>, vector<8x384xf32>
    tpu.vector_store %arg12[%c40, %c0_9], %17 {strides = array<i32>} : memref<48x384xf32, #tpu.memory_space<vmem>>, vector<8x384xf32>,
    %cst_10 = arith.constant 0.000000e+00 : f32
    %20 = vector.broadcast %cst_10 : f32 to vector<32x128xf32>
    %c8 = arith.constant 8 : index
    %c0_11 = arith.constant 0 : index
    %21 = vector.load %arg12[%c8, %c0_11] : memref<48x384xf32, #tpu.memory_space<vmem>>, vector<32x128xf32>
    tpu.vector_store %arg12[%c8, %c0_11], %20 {strides = array<i32>} : memref<48x384xf32, #tpu.memory_space<vmem>>, vector<32x128xf32>,
    %c8_12 = arith.constant 8 : index
    %c256 = arith.constant 256 : index
    %22 = vector.load %arg12[%c8_12, %c256] : memref<48x384xf32, #tpu.memory_space<vmem>>, vector<32x128xf32>
    tpu.vector_store %arg12[%c8_12, %c256], %20 {strides = array<i32>} : memref<48x384xf32, #tpu.memory_space<vmem>>, vector<32x128xf32>,
    %c0_i32_13 = arith.constant 0 : i32
    %c0_i32_14 = arith.constant 0 : i32
    %c0_i32_15 = arith.constant 0 : i32
    %23 = tpu.memref_slice %arg2[%arg0, %c0_i32_14, %0, %c0_i32_15] : memref<2x9x32x128xbf16, #tpu.memory_space<any>> -> memref<1x9x32x128xbf16, #tpu.memory_space<any>>
    %24 = tpu.memref_squeeze %23 : memref<1x9x32x128xbf16, #tpu.memory_space<any>> -> memref<9x32x128xbf16, #tpu.memory_space<any>>
    %25 = tpu.memref_slice %arg13[%c0_i32_13] : memref<4x!tpu.dma_semaphore, #tpu.memory_space<semaphore_mem>> -> memref<1x!tpu.dma_semaphore, #tpu.memory_space<semaphore_mem>>
    %26 = tpu.memref_squeeze %25 : memref<1x!tpu.dma_semaphore, #tpu.memory_space<semaphore_mem>> -> memref<!tpu.dma_semaphore, #tpu.memory_space<semaphore_mem>>
    tpu.wait_dma2 semaphore(%26 : memref<!tpu.dma_semaphore, #tpu.memory_space<semaphore_mem>>) src(%24 : memref<9x32x128xbf16, #tpu.memory_space<any>>) dst(%arg7 : memref<9x32x128xbf16, #tpu.memory_space<vmem>>)
    %c2_i32_16 = arith.constant 2 : i32
    %c0_i32_17 = arith.constant 0 : i32
    %c0_i32_18 = arith.constant 0 : i32
    %27 = tpu.memref_slice %arg4[%arg0, %c0_i32_17, %0, %c0_i32_18] : memref<2x2x32x128xbf16, #tpu.memory_space<any>> -> memref<1x2x32x128xbf16, #tpu.memory_space<any>>
    %28 = tpu.memref_squeeze %27 : memref<1x2x32x128xbf16, #tpu.memory_space<any>> -> memref<2x32x128xbf16, #tpu.memory_space<any>>
    %29 = tpu.memref_slice %arg13[%c2_i32_16] : memref<4x!tpu.dma_semaphore, #tpu.memory_space<semaphore_mem>> -> memref<1x!tpu.dma_semaphore, #tpu.memory_space<semaphore_mem>>
    %30 = tpu.memref_squeeze %29 : memref<1x!tpu.dma_semaphore, #tpu.memory_space<semaphore_mem>> -> memref<!tpu.dma_semaphore, #tpu.memory_space<semaphore_mem>>
    tpu.wait_dma2 semaphore(%30 : memref<!tpu.dma_semaphore, #tpu.memory_space<semaphore_mem>>) src(%28 : memref<2x32x128xbf16, #tpu.memory_space<any>>) dst(%arg9 : memref<2x32x128xbf16, #tpu.memory_space<vmem>>)
    %c0_19 = arith.constant 0 : index
    %c0_20 = arith.constant 0 : index
    %c0_21 = arith.constant 0 : index
    %31 = vector.load %arg7[%c0_19, %c0_20, %c0_21] : memref<9x32x128xbf16, #tpu.memory_space<vmem>>, vector<1x32x128xbf16>
    %32 = vector.shape_cast %31 : vector<1x32x128xbf16> to vector<32x128xbf16>
    %33 = arith.extf %32 : vector<32x128xbf16> to vector<32x128xf32>
    %c1 = arith.constant 1 : index
    %c0_22 = arith.constant 0 : index
    %c0_23 = arith.constant 0 : index
    %34 = vector.load %arg7[%c1, %c0_22, %c0_23] : memref<9x32x128xbf16, #tpu.memory_space<vmem>>, vector<1x32x128xbf16>
    %35 = vector.shape_cast %34 : vector<1x32x128xbf16> to vector<32x128xbf16>
    %36 = arith.extf %35 : vector<32x128xbf16> to vector<32x128xf32>
    %37 = arith.maximumf %33, %36 : vector<32x128xf32>
    %c2 = arith.constant 2 : index
    %c0_24 = arith.constant 0 : index
    %c0_25 = arith.constant 0 : index
    %38 = vector.load %arg7[%c2, %c0_24, %c0_25] : memref<9x32x128xbf16, #tpu.memory_space<vmem>>, vector<1x32x128xbf16>
    %39 = vector.shape_cast %38 : vector<1x32x128xbf16> to vector<32x128xbf16>
    %40 = arith.extf %39 : vector<32x128xbf16> to vector<32x128xf32>
    %41 = arith.maximumf %37, %40 : vector<32x128xf32>
    %c3 = arith.constant 3 : index
    %c0_26 = arith.constant 0 : index
    %c0_27 = arith.constant 0 : index
    %42 = vector.load %arg7[%c3, %c0_26, %c0_27] : memref<9x32x128xbf16, #tpu.memory_space<vmem>>, vector<1x32x128xbf16>
    %43 = vector.shape_cast %42 : vector<1x32x128xbf16> to vector<32x128xbf16>
    %44 = arith.extf %43 : vector<32x128xbf16> to vector<32x128xf32>
    %45 = arith.maximumf %41, %44 : vector<32x128xf32>
    %c4 = arith.constant 4 : index
    %c0_28 = arith.constant 0 : index
    %c0_29 = arith.constant 0 : index
    %46 = vector.load %arg7[%c4, %c0_28, %c0_29] : memref<9x32x128xbf16, #tpu.memory_space<vmem>>, vector<1x32x128xbf16>
    %47 = vector.shape_cast %46 : vector<1x32x128xbf16> to vector<32x128xbf16>
    %48 = arith.extf %47 : vector<32x128xbf16> to vector<32x128xf32>
    %49 = arith.maximumf %45, %48 : vector<32x128xf32>
    %c5 = arith.constant 5 : index
    %c0_30 = arith.constant 0 : index
    %c0_31 = arith.constant 0 : index
    %50 = vector.load %arg7[%c5, %c0_30, %c0_31] : memref<9x32x128xbf16, #tpu.memory_space<vmem>>, vector<1x32x128xbf16>
    %51 = vector.shape_cast %50 : vector<1x32x128xbf16> to vector<32x128xbf16>
    %52 = arith.extf %51 : vector<32x128xbf16> to vector<32x128xf32>
    %53 = arith.maximumf %49, %52 : vector<32x128xf32>
    %c6 = arith.constant 6 : index
    %c0_32 = arith.constant 0 : index
    %c0_33 = arith.constant 0 : index
    %54 = vector.load %arg7[%c6, %c0_32, %c0_33] : memref<9x32x128xbf16, #tpu.memory_space<vmem>>, vector<1x32x128xbf16>
    %55 = vector.shape_cast %54 : vector<1x32x128xbf16> to vector<32x128xbf16>
    %56 = arith.extf %55 : vector<32x128xbf16> to vector<32x128xf32>
    %57 = arith.maximumf %53, %56 : vector<32x128xf32>
    %c7 = arith.constant 7 : index
    %c0_34 = arith.constant 0 : index
    %c0_35 = arith.constant 0 : index
    %58 = vector.load %arg7[%c7, %c0_34, %c0_35] : memref<9x32x128xbf16, #tpu.memory_space<vmem>>, vector<1x32x128xbf16>
    %59 = vector.shape_cast %58 : vector<1x32x128xbf16> to vector<32x128xbf16>
    %60 = arith.extf %59 : vector<32x128xbf16> to vector<32x128xf32>
    %61 = arith.maximumf %57, %60 : vector<32x128xf32>
    %c8_36 = arith.constant 8 : index
    %c0_37 = arith.constant 0 : index
    %c0_38 = arith.constant 0 : index
    %62 = vector.load %arg7[%c8_36, %c0_37, %c0_38] : memref<9x32x128xbf16, #tpu.memory_space<vmem>>, vector<1x32x128xbf16>
    %63 = vector.shape_cast %62 : vector<1x32x128xbf16> to vector<32x128xbf16>
    %64 = arith.extf %63 : vector<32x128xbf16> to vector<32x128xf32>
    %65 = arith.maximumf %61, %64 : vector<32x128xf32>
    %c0_39 = arith.constant 0 : index
    %c0_40 = arith.constant 0 : index
    %c0_41 = arith.constant 0 : index
    %66 = vector.load %arg7[%c0_39, %c0_40, %c0_41] : memref<9x32x128xbf16, #tpu.memory_space<vmem>>, vector<1x32x128xbf16>
    %67 = vector.shape_cast %66 : vector<1x32x128xbf16> to vector<32x128xbf16>
    %68 = arith.extf %67 : vector<32x128xbf16> to vector<32x128xf32>
    %69 = arith.subf %68, %65 : vector<32x128xf32>
    %70 = math.exp %69 : vector<32x128xf32>
    %c0_42 = arith.constant 0 : index
    %c0_43 = arith.constant 0 : index
    %c0_44 = arith.constant 0 : index
    %71 = vector.load %arg10[%c0_42, %c0_43, %c0_44] : memref<18x32x128xf32, #tpu.memory_space<vmem>>, vector<1x32x128xf32>
    %72 = vector.shape_cast %71 : vector<1x32x128xf32> to vector<32x128xf32>
    %73 = vector.shape_cast %70 : vector<32x128xf32> to vector<1x32x128xf32>
    tpu.vector_store %arg10[%c0_42, %c0_43, %c0_44], %73 {strides = array<i32>} : memref<18x32x128xf32, #tpu.memory_space<vmem>>, vector<1x32x128xf32>,
    %c1_45 = arith.constant 1 : index
    %c0_46 = arith.constant 0 : index
    %c0_47 = arith.constant 0 : index
    %74 = vector.load %arg7[%c1_45, %c0_46, %c0_47] : memref<9x32x128xbf16, #tpu.memory_space<vmem>>, vector<1x32x128xbf16>
    %75 = vector.shape_cast %74 : vector<1x32x128xbf16> to vector<32x128xbf16>
    %76 = arith.extf %75 : vector<32x128xbf16> to vector<32x128xf32>
    %77 = arith.subf %76, %65 : vector<32x128xf32>
    %78 = math.exp %77 : vector<32x128xf32>
    %c1_48 = arith.constant 1 : index
    %c0_49 = arith.constant 0 : index
    %c0_50 = arith.constant 0 : index
    %79 = vector.load %arg10[%c1_48, %c0_49, %c0_50] : memref<18x32x128xf32, #tpu.memory_space<vmem>>, vector<1x32x128xf32>
    %80 = vector.shape_cast %79 : vector<1x32x128xf32> to vector<32x128xf32>
    %81 = vector.shape_cast %78 : vector<32x128xf32> to vector<1x32x128xf32>
    tpu.vector_store %arg10[%c1_48, %c0_49, %c0_50], %81 {strides = array<i32>} : memref<18x32x128xf32, #tpu.memory_space<vmem>>, vector<1x32x128xf32>,
    %82 = arith.addf %70, %78 : vector<32x128xf32>
    %c2_51 = arith.constant 2 : index
    %c0_52 = arith.constant 0 : index
    %c0_53 = arith.constant 0 : index
    %83 = vector.load %arg7[%c2_51, %c0_52, %c0_53] : memref<9x32x128xbf16, #tpu.memory_space<vmem>>, vector<1x32x128xbf16>
    %84 = vector.shape_cast %83 : vector<1x32x128xbf16> to vector<32x128xbf16>
    %85 = arith.extf %84 : vector<32x128xbf16> to vector<32x128xf32>
    %86 = arith.subf %85, %65 : vector<32x128xf32>
    %87 = math.exp %86 : vector<32x128xf32>
    %c2_54 = arith.constant 2 : index
    %c0_55 = arith.constant 0 : index
    %c0_56 = arith.constant 0 : index
    %88 = vector.load %arg10[%c2_54, %c0_55, %c0_56] : memref<18x32x128xf32, #tpu.memory_space<vmem>>, vector<1x32x128xf32>
    %89 = vector.shape_cast %88 : vector<1x32x128xf32> to vector<32x128xf32>
    %90 = vector.shape_cast %87 : vector<32x128xf32> to vector<1x32x128xf32>
    tpu.vector_store %arg10[%c2_54, %c0_55, %c0_56], %90 {strides = array<i32>} : memref<18x32x128xf32, #tpu.memory_space<vmem>>, vector<1x32x128xf32>,
    %91 = arith.addf %82, %87 : vector<32x128xf32>
    %c3_57 = arith.constant 3 : index
    %c0_58 = arith.constant 0 : index
    %c0_59 = arith.constant 0 : index
    %92 = vector.load %arg7[%c3_57, %c0_58, %c0_59] : memref<9x32x128xbf16, #tpu.memory_space<vmem>>, vector<1x32x128xbf16>
    %93 = vector.shape_cast %92 : vector<1x32x128xbf16> to vector<32x128xbf16>
    %94 = arith.extf %93 : vector<32x128xbf16> to vector<32x128xf32>
    %95 = arith.subf %94, %65 : vector<32x128xf32>
    %96 = math.exp %95 : vector<32x128xf32>
    %c3_60 = arith.constant 3 : index
    %c0_61 = arith.constant 0 : index
    %c0_62 = arith.constant 0 : index
    %97 = vector.load %arg10[%c3_60, %c0_61, %c0_62] : memref<18x32x128xf32, #tpu.memory_space<vmem>>, vector<1x32x128xf32>
    %98 = vector.shape_cast %97 : vector<1x32x128xf32> to vector<32x128xf32>
    %99 = vector.shape_cast %96 : vector<32x128xf32> to vector<1x32x128xf32>
    tpu.vector_store %arg10[%c3_60, %c0_61, %c0_62], %99 {strides = array<i32>} : memref<18x32x128xf32, #tpu.memory_space<vmem>>, vector<1x32x128xf32>,
    %100 = arith.addf %91, %96 : vector<32x128xf32>
    %c4_63 = arith.constant 4 : index
    %c0_64 = arith.constant 0 : index
    %c0_65 = arith.constant 0 : index
    %101 = vector.load %arg7[%c4_63, %c0_64, %c0_65] : memref<9x32x128xbf16, #tpu.memory_space<vmem>>, vector<1x32x128xbf16>
    %102 = vector.shape_cast %101 : vector<1x32x128xbf16> to vector<32x128xbf16>
    %103 = arith.extf %102 : vector<32x128xbf16> to vector<32x128xf32>
    %104 = arith.subf %103, %65 : vector<32x128xf32>
    %105 = math.exp %104 : vector<32x128xf32>
    %c4_66 = arith.constant 4 : index
    %c0_67 = arith.constant 0 : index
    %c0_68 = arith.constant 0 : index
    %106 = vector.load %arg10[%c4_66, %c0_67, %c0_68] : memref<18x32x128xf32, #tpu.memory_space<vmem>>, vector<1x32x128xf32>
    %107 = vector.shape_cast %106 : vector<1x32x128xf32> to vector<32x128xf32>
    %108 = vector.shape_cast %105 : vector<32x128xf32> to vector<1x32x128xf32>
    tpu.vector_store %arg10[%c4_66, %c0_67, %c0_68], %108 {strides = array<i32>} : memref<18x32x128xf32, #tpu.memory_space<vmem>>, vector<1x32x128xf32>,
    %109 = arith.addf %100, %105 : vector<32x128xf32>
    %c5_69 = arith.constant 5 : index
    %c0_70 = arith.constant 0 : index
    %c0_71 = arith.constant 0 : index
    %110 = vector.load %arg7[%c5_69, %c0_70, %c0_71] : memref<9x32x128xbf16, #tpu.memory_space<vmem>>, vector<1x32x128xbf16>
    %111 = vector.shape_cast %110 : vector<1x32x128xbf16> to vector<32x128xbf16>
    %112 = arith.extf %111 : vector<32x128xbf16> to vector<32x128xf32>
    %113 = arith.subf %112, %65 : vector<32x128xf32>
    %114 = math.exp %113 : vector<32x128xf32>
    %c5_72 = arith.constant 5 : index
    %c0_73 = arith.constant 0 : index
    %c0_74 = arith.constant 0 : index
    %115 = vector.load %arg10[%c5_72, %c0_73, %c0_74] : memref<18x32x128xf32, #tpu.memory_space<vmem>>, vector<1x32x128xf32>
    %116 = vector.shape_cast %115 : vector<1x32x128xf32> to vector<32x128xf32>
    %117 = vector.shape_cast %114 : vector<32x128xf32> to vector<1x32x128xf32>
    tpu.vector_store %arg10[%c5_72, %c0_73, %c0_74], %117 {strides = array<i32>} : memref<18x32x128xf32, #tpu.memory_space<vmem>>, vector<1x32x128xf32>,
    %118 = arith.addf %109, %114 : vector<32x128xf32>
    %c6_75 = arith.constant 6 : index
    %c0_76 = arith.constant 0 : index
    %c0_77 = arith.constant 0 : index
    %119 = vector.load %arg7[%c6_75, %c0_76, %c0_77] : memref<9x32x128xbf16, #tpu.memory_space<vmem>>, vector<1x32x128xbf16>
    %120 = vector.shape_cast %119 : vector<1x32x128xbf16> to vector<32x128xbf16>
    %121 = arith.extf %120 : vector<32x128xbf16> to vector<32x128xf32>
    %122 = arith.subf %121, %65 : vector<32x128xf32>
    %123 = math.exp %122 : vector<32x128xf32>
    %c6_78 = arith.constant 6 : index
    %c0_79 = arith.constant 0 : index
    %c0_80 = arith.constant 0 : index
    %124 = vector.load %arg10[%c6_78, %c0_79, %c0_80] : memref<18x32x128xf32, #tpu.memory_space<vmem>>, vector<1x32x128xf32>
    %125 = vector.shape_cast %124 : vector<1x32x128xf32> to vector<32x128xf32>
    %126 = vector.shape_cast %123 : vector<32x128xf32> to vector<1x32x128xf32>
    tpu.vector_store %arg10[%c6_78, %c0_79, %c0_80], %126 {strides = array<i32>} : memref<18x32x128xf32, #tpu.memory_space<vmem>>, vector<1x32x128xf32>,
    %127 = arith.addf %118, %123 : vector<32x128xf32>
    %c7_81 = arith.constant 7 : index
    %c0_82 = arith.constant 0 : index
    %c0_83 = arith.constant 0 : index
    %128 = vector.load %arg7[%c7_81, %c0_82, %c0_83] : memref<9x32x128xbf16, #tpu.memory_space<vmem>>, vector<1x32x128xbf16>
    %129 = vector.shape_cast %128 : vector<1x32x128xbf16> to vector<32x128xbf16>
    %130 = arith.extf %129 : vector<32x128xbf16> to vector<32x128xf32>
    %131 = arith.subf %130, %65 : vector<32x128xf32>
    %132 = math.exp %131 : vector<32x128xf32>
    %c7_84 = arith.constant 7 : index
    %c0_85 = arith.constant 0 : index
    %c0_86 = arith.constant 0 : index
    %133 = vector.load %arg10[%c7_84, %c0_85, %c0_86] : memref<18x32x128xf32, #tpu.memory_space<vmem>>, vector<1x32x128xf32>
    %134 = vector.shape_cast %133 : vector<1x32x128xf32> to vector<32x128xf32>
    %135 = vector.shape_cast %132 : vector<32x128xf32> to vector<1x32x128xf32>
    tpu.vector_store %arg10[%c7_84, %c0_85, %c0_86], %135 {strides = array<i32>} : memref<18x32x128xf32, #tpu.memory_space<vmem>>, vector<1x32x128xf32>,
    %136 = arith.addf %127, %132 : vector<32x128xf32>
    %c8_87 = arith.constant 8 : index
    %c0_88 = arith.constant 0 : index
    %c0_89 = arith.constant 0 : index
    %137 = vector.load %arg7[%c8_87, %c0_88, %c0_89] : memref<9x32x128xbf16, #tpu.memory_space<vmem>>, vector<1x32x128xbf16>
    %138 = vector.shape_cast %137 : vector<1x32x128xbf16> to vector<32x128xbf16>
    %139 = arith.extf %138 : vector<32x128xbf16> to vector<32x128xf32>
    %140 = arith.subf %139, %65 : vector<32x128xf32>
    %141 = math.exp %140 : vector<32x128xf32>
    %c8_90 = arith.constant 8 : index
    %c0_91 = arith.constant 0 : index
    %c0_92 = arith.constant 0 : index
    %142 = vector.load %arg10[%c8_90, %c0_91, %c0_92] : memref<18x32x128xf32, #tpu.memory_space<vmem>>, vector<1x32x128xf32>
    %143 = vector.shape_cast %142 : vector<1x32x128xf32> to vector<32x128xf32>
    %144 = vector.shape_cast %141 : vector<32x128xf32> to vector<1x32x128xf32>
    tpu.vector_store %arg10[%c8_90, %c0_91, %c0_92], %144 {strides = array<i32>} : memref<18x32x128xf32, #tpu.memory_space<vmem>>, vector<1x32x128xf32>,
    %145 = arith.addf %136, %141 : vector<32x128xf32>
    %146 = tpu.reciprocal %145 {approx = true} : vector<32x128xf32> -> vector<32x128xf32>
    %147 = arith.mulf %145, %146 : vector<32x128xf32>
    %cst_93 = arith.constant 2.000000e+00 : f32
    %148 = vector.broadcast %cst_93 : f32 to vector<32x128xf32>
    %149 = arith.subf %148, %147 : vector<32x128xf32>
    %150 = arith.mulf %146, %149 : vector<32x128xf32>
    %c0_94 = arith.constant 0 : index
    %c0_95 = arith.constant 0 : index
    %c0_96 = arith.constant 0 : index
    %151 = vector.load %arg9[%c0_94, %c0_95, %c0_96] : memref<2x32x128xbf16, #tpu.memory_space<vmem>>, vector<1x32x128xbf16>
    %152 = vector.shape_cast %151 : vector<1x32x128xbf16> to vector<32x128xbf16>
    %153 = arith.extf %152 : vector<32x128xbf16> to vector<32x128xf32>
    %154 = arith.mulf %153, %150 : vector<32x128xf32>
    %c0_97 = arith.constant 0 : index
    %c0_98 = arith.constant 0 : index
    %c0_99 = arith.constant 0 : index
    %155 = vector.load %arg10[%c0_97, %c0_98, %c0_99] : memref<18x32x128xf32, #tpu.memory_space<vmem>>, vector<1x32x128xf32>
    %156 = vector.shape_cast %155 : vector<1x32x128xf32> to vector<32x128xf32>
    %157 = arith.mulf %156, %154 : vector<32x128xf32>
    %c0_100 = arith.constant 0 : index
    %c0_101 = arith.constant 0 : index
    %c0_102 = arith.constant 0 : index
    %158 = vector.load %arg10[%c0_100, %c0_101, %c0_102] : memref<18x32x128xf32, #tpu.memory_space<vmem>>, vector<1x32x128xf32>
    %159 = vector.shape_cast %158 : vector<1x32x128xf32> to vector<32x128xf32>
    %160 = vector.shape_cast %157 : vector<32x128xf32> to vector<1x32x128xf32>
    tpu.vector_store %arg10[%c0_100, %c0_101, %c0_102], %160 {strides = array<i32>} : memref<18x32x128xf32, #tpu.memory_space<vmem>>, vector<1x32x128xf32>,
    %c1_103 = arith.constant 1 : index
    %c0_104 = arith.constant 0 : index
    %c0_105 = arith.constant 0 : index
    %161 = vector.load %arg10[%c1_103, %c0_104, %c0_105] : memref<18x32x128xf32, #tpu.memory_space<vmem>>, vector<1x32x128xf32>
    %162 = vector.shape_cast %161 : vector<1x32x128xf32> to vector<32x128xf32>
    %163 = arith.mulf %162, %154 : vector<32x128xf32>
    %c1_106 = arith.constant 1 : index
    %c0_107 = arith.constant 0 : index
    %c0_108 = arith.constant 0 : index
    %164 = vector.load %arg10[%c1_106, %c0_107, %c0_108] : memref<18x32x128xf32, #tpu.memory_space<vmem>>, vector<1x32x128xf32>
    %165 = vector.shape_cast %164 : vector<1x32x128xf32> to vector<32x128xf32>
    %166 = vector.shape_cast %163 : vector<32x128xf32> to vector<1x32x128xf32>
    tpu.vector_store %arg10[%c1_106, %c0_107, %c0_108], %166 {strides = array<i32>} : memref<18x32x128xf32, #tpu.memory_space<vmem>>, vector<1x32x128xf32>,
    %c2_109 = arith.constant 2 : index
    %c0_110 = arith.constant 0 : index
    %c0_111 = arith.constant 0 : index
    %167 = vector.load %arg10[%c2_109, %c0_110, %c0_111] : memref<18x32x128xf32, #tpu.memory_space<vmem>>, vector<1x32x128xf32>
    %168 = vector.shape_cast %167 : vector<1x32x128xf32> to vector<32x128xf32>
    %169 = arith.mulf %168, %154 : vector<32x128xf32>
    %c2_112 = arith.constant 2 : index
    %c0_113 = arith.constant 0 : index
    %c0_114 = arith.constant 0 : index
    %170 = vector.load %arg10[%c2_112, %c0_113, %c0_114] : memref<18x32x128xf32, #tpu.memory_space<vmem>>, vector<1x32x128xf32>
    %171 = vector.shape_cast %170 : vector<1x32x128xf32> to vector<32x128xf32>
    %172 = vector.shape_cast %169 : vector<32x128xf32> to vector<1x32x128xf32>
    tpu.vector_store %arg10[%c2_112, %c0_113, %c0_114], %172 {strides = array<i32>} : memref<18x32x128xf32, #tpu.memory_space<vmem>>, vector<1x32x128xf32>,
    %c3_115 = arith.constant 3 : index
    %c0_116 = arith.constant 0 : index
    %c0_117 = arith.constant 0 : index
    %173 = vector.load %arg10[%c3_115, %c0_116, %c0_117] : memref<18x32x128xf32, #tpu.memory_space<vmem>>, vector<1x32x128xf32>
    %174 = vector.shape_cast %173 : vector<1x32x128xf32> to vector<32x128xf32>
    %175 = arith.mulf %174, %154 : vector<32x128xf32>
    %c3_118 = arith.constant 3 : index
    %c0_119 = arith.constant 0 : index
    %c0_120 = arith.constant 0 : index
    %176 = vector.load %arg10[%c3_118, %c0_119, %c0_120] : memref<18x32x128xf32, #tpu.memory_space<vmem>>, vector<1x32x128xf32>
    %177 = vector.shape_cast %176 : vector<1x32x128xf32> to vector<32x128xf32>
    %178 = vector.shape_cast %175 : vector<32x128xf32> to vector<1x32x128xf32>
    tpu.vector_store %arg10[%c3_118, %c0_119, %c0_120], %178 {strides = array<i32>} : memref<18x32x128xf32, #tpu.memory_space<vmem>>, vector<1x32x128xf32>,
    %c4_121 = arith.constant 4 : index
    %c0_122 = arith.constant 0 : index
    %c0_123 = arith.constant 0 : index
    %179 = vector.load %arg10[%c4_121, %c0_122, %c0_123] : memref<18x32x128xf32, #tpu.memory_space<vmem>>, vector<1x32x128xf32>
    %180 = vector.shape_cast %179 : vector<1x32x128xf32> to vector<32x128xf32>
    %181 = arith.mulf %180, %154 : vector<32x128xf32>
    %c4_124 = arith.constant 4 : index
    %c0_125 = arith.constant 0 : index
    %c0_126 = arith.constant 0 : index
    %182 = vector.load %arg10[%c4_124, %c0_125, %c0_126] : memref<18x32x128xf32, #tpu.memory_space<vmem>>, vector<1x32x128xf32>
    %183 = vector.shape_cast %182 : vector<1x32x128xf32> to vector<32x128xf32>
    %184 = vector.shape_cast %181 : vector<32x128xf32> to vector<1x32x128xf32>
    tpu.vector_store %arg10[%c4_124, %c0_125, %c0_126], %184 {strides = array<i32>} : memref<18x32x128xf32, #tpu.memory_space<vmem>>, vector<1x32x128xf32>,
    %c5_127 = arith.constant 5 : index
    %c0_128 = arith.constant 0 : index
    %c0_129 = arith.constant 0 : index
    %185 = vector.load %arg10[%c5_127, %c0_128, %c0_129] : memref<18x32x128xf32, #tpu.memory_space<vmem>>, vector<1x32x128xf32>
    %186 = vector.shape_cast %185 : vector<1x32x128xf32> to vector<32x128xf32>
    %187 = arith.mulf %186, %154 : vector<32x128xf32>
    %c5_130 = arith.constant 5 : index
    %c0_131 = arith.constant 0 : index
    %c0_132 = arith.constant 0 : index
    %188 = vector.load %arg10[%c5_130, %c0_131, %c0_132] : memref<18x32x128xf32, #tpu.memory_space<vmem>>, vector<1x32x128xf32>
    %189 = vector.shape_cast %188 : vector<1x32x128xf32> to vector<32x128xf32>
    %190 = vector.shape_cast %187 : vector<32x128xf32> to vector<1x32x128xf32>
    tpu.vector_store %arg10[%c5_130, %c0_131, %c0_132], %190 {strides = array<i32>} : memref<18x32x128xf32, #tpu.memory_space<vmem>>, vector<1x32x128xf32>,
    %c6_133 = arith.constant 6 : index
    %c0_134 = arith.constant 0 : index
    %c0_135 = arith.constant 0 : index
    %191 = vector.load %arg10[%c6_133, %c0_134, %c0_135] : memref<18x32x128xf32, #tpu.memory_space<vmem>>, vector<1x32x128xf32>
    %192 = vector.shape_cast %191 : vector<1x32x128xf32> to vector<32x128xf32>
    %193 = arith.mulf %192, %154 : vector<32x128xf32>
    %c6_136 = arith.constant 6 : index
    %c0_137 = arith.constant 0 : index
    %c0_138 = arith.constant 0 : index
    %194 = vector.load %arg10[%c6_136, %c0_137, %c0_138] : memref<18x32x128xf32, #tpu.memory_space<vmem>>, vector<1x32x128xf32>
    %195 = vector.shape_cast %194 : vector<1x32x128xf32> to vector<32x128xf32>
    %196 = vector.shape_cast %193 : vector<32x128xf32> to vector<1x32x128xf32>
    tpu.vector_store %arg10[%c6_136, %c0_137, %c0_138], %196 {strides = array<i32>} : memref<18x32x128xf32, #tpu.memory_space<vmem>>, vector<1x32x128xf32>,
    %c7_139 = arith.constant 7 : index
    %c0_140 = arith.constant 0 : index
    %c0_141 = arith.constant 0 : index
    %197 = vector.load %arg10[%c7_139, %c0_140, %c0_141] : memref<18x32x128xf32, #tpu.memory_space<vmem>>, vector<1x32x128xf32>
    %198 = vector.shape_cast %197 : vector<1x32x128xf32> to vector<32x128xf32>
    %199 = arith.mulf %198, %154 : vector<32x128xf32>
    %c7_142 = arith.constant 7 : index
    %c0_143 = arith.constant 0 : index
    %c0_144 = arith.constant 0 : index
    %200 = vector.load %arg10[%c7_142, %c0_143, %c0_144] : memref<18x32x128xf32, #tpu.memory_space<vmem>>, vector<1x32x128xf32>
    %201 = vector.shape_cast %200 : vector<1x32x128xf32> to vector<32x128xf32>
    %202 = vector.shape_cast %199 : vector<32x128xf32> to vector<1x32x128xf32>
    tpu.vector_store %arg10[%c7_142, %c0_143, %c0_144], %202 {strides = array<i32>} : memref<18x32x128xf32, #tpu.memory_space<vmem>>, vector<1x32x128xf32>,
    %c8_145 = arith.constant 8 : index
    %c0_146 = arith.constant 0 : index
    %c0_147 = arith.constant 0 : index
    %203 = vector.load %arg10[%c8_145, %c0_146, %c0_147] : memref<18x32x128xf32, #tpu.memory_space<vmem>>, vector<1x32x128xf32>
    %204 = vector.shape_cast %203 : vector<1x32x128xf32> to vector<32x128xf32>
    %205 = arith.mulf %204, %154 : vector<32x128xf32>
    %c8_148 = arith.constant 8 : index
    %c0_149 = arith.constant 0 : index
    %c0_150 = arith.constant 0 : index
    %206 = vector.load %arg10[%c8_148, %c0_149, %c0_150] : memref<18x32x128xf32, #tpu.memory_space<vmem>>, vector<1x32x128xf32>
    %207 = vector.shape_cast %206 : vector<1x32x128xf32> to vector<32x128xf32>
    %208 = vector.shape_cast %205 : vector<32x128xf32> to vector<1x32x128xf32>
    tpu.vector_store %arg10[%c8_148, %c0_149, %c0_150], %208 {strides = array<i32>} : memref<18x32x128xf32, #tpu.memory_space<vmem>>, vector<1x32x128xf32>,
    %c1_i32_151 = arith.constant 1 : i32
    %c0_i32_152 = arith.constant 0 : i32
    %c0_i32_153 = arith.constant 0 : i32
    %209 = tpu.memref_slice %arg3[%arg0, %c0_i32_152, %0, %c0_i32_153] : memref<2x9x32x128xbf16, #tpu.memory_space<any>> -> memref<1x9x32x128xbf16, #tpu.memory_space<any>>
    %210 = tpu.memref_squeeze %209 : memref<1x9x32x128xbf16, #tpu.memory_space<any>> -> memref<9x32x128xbf16, #tpu.memory_space<any>>
    %211 = tpu.memref_slice %arg13[%c1_i32_151] : memref<4x!tpu.dma_semaphore, #tpu.memory_space<semaphore_mem>> -> memref<1x!tpu.dma_semaphore, #tpu.memory_space<semaphore_mem>>
    %212 = tpu.memref_squeeze %211 : memref<1x!tpu.dma_semaphore, #tpu.memory_space<semaphore_mem>> -> memref<!tpu.dma_semaphore, #tpu.memory_space<semaphore_mem>>
    tpu.wait_dma2 semaphore(%212 : memref<!tpu.dma_semaphore, #tpu.memory_space<semaphore_mem>>) src(%210 : memref<9x32x128xbf16, #tpu.memory_space<any>>) dst(%arg8 : memref<9x32x128xbf16, #tpu.memory_space<vmem>>)
    %c0_154 = arith.constant 0 : index
    %c0_155 = arith.constant 0 : index
    %c0_156 = arith.constant 0 : index
    %213 = vector.load %arg8[%c0_154, %c0_155, %c0_156] : memref<9x32x128xbf16, #tpu.memory_space<vmem>>, vector<1x32x128xbf16>
    %214 = vector.shape_cast %213 : vector<1x32x128xbf16> to vector<32x128xbf16>
    %215 = arith.extf %214 : vector<32x128xbf16> to vector<32x128xf32>
    %c1_157 = arith.constant 1 : index
    %c0_158 = arith.constant 0 : index
    %c0_159 = arith.constant 0 : index
    %216 = vector.load %arg8[%c1_157, %c0_158, %c0_159] : memref<9x32x128xbf16, #tpu.memory_space<vmem>>, vector<1x32x128xbf16>
    %217 = vector.shape_cast %216 : vector<1x32x128xbf16> to vector<32x128xbf16>
    %218 = arith.extf %217 : vector<32x128xbf16> to vector<32x128xf32>
    %219 = arith.maximumf %215, %218 : vector<32x128xf32>
    %c2_160 = arith.constant 2 : index
    %c0_161 = arith.constant 0 : index
    %c0_162 = arith.constant 0 : index
    %220 = vector.load %arg8[%c2_160, %c0_161, %c0_162] : memref<9x32x128xbf16, #tpu.memory_space<vmem>>, vector<1x32x128xbf16>
    %221 = vector.shape_cast %220 : vector<1x32x128xbf16> to vector<32x128xbf16>
    %222 = arith.extf %221 : vector<32x128xbf16> to vector<32x128xf32>
    %223 = arith.maximumf %219, %222 : vector<32x128xf32>
    %c3_163 = arith.constant 3 : index
    %c0_164 = arith.constant 0 : index
    %c0_165 = arith.constant 0 : index
    %224 = vector.load %arg8[%c3_163, %c0_164, %c0_165] : memref<9x32x128xbf16, #tpu.memory_space<vmem>>, vector<1x32x128xbf16>
    %225 = vector.shape_cast %224 : vector<1x32x128xbf16> to vector<32x128xbf16>
    %226 = arith.extf %225 : vector<32x128xbf16> to vector<32x128xf32>
    %227 = arith.maximumf %223, %226 : vector<32x128xf32>
    %c4_166 = arith.constant 4 : index
    %c0_167 = arith.constant 0 : index
    %c0_168 = arith.constant 0 : index
    %228 = vector.load %arg8[%c4_166, %c0_167, %c0_168] : memref<9x32x128xbf16, #tpu.memory_space<vmem>>, vector<1x32x128xbf16>
    %229 = vector.shape_cast %228 : vector<1x32x128xbf16> to vector<32x128xbf16>
    %230 = arith.extf %229 : vector<32x128xbf16> to vector<32x128xf32>
    %231 = arith.maximumf %227, %230 : vector<32x128xf32>
    %c5_169 = arith.constant 5 : index
    %c0_170 = arith.constant 0 : index
    %c0_171 = arith.constant 0 : index
    %232 = vector.load %arg8[%c5_169, %c0_170, %c0_171] : memref<9x32x128xbf16, #tpu.memory_space<vmem>>, vector<1x32x128xbf16>
    %233 = vector.shape_cast %232 : vector<1x32x128xbf16> to vector<32x128xbf16>
    %234 = arith.extf %233 : vector<32x128xbf16> to vector<32x128xf32>
    %235 = arith.maximumf %231, %234 : vector<32x128xf32>
    %c6_172 = arith.constant 6 : index
    %c0_173 = arith.constant 0 : index
    %c0_174 = arith.constant 0 : index
    %236 = vector.load %arg8[%c6_172, %c0_173, %c0_174] : memref<9x32x128xbf16, #tpu.memory_space<vmem>>, vector<1x32x128xbf16>
    %237 = vector.shape_cast %236 : vector<1x32x128xbf16> to vector<32x128xbf16>
    %238 = arith.extf %237 : vector<32x128xbf16> to vector<32x128xf32>
    %239 = arith.maximumf %235, %238 : vector<32x128xf32>
    %c7_175 = arith.constant 7 : index
    %c0_176 = arith.constant 0 : index
    %c0_177 = arith.constant 0 : index
    %240 = vector.load %arg8[%c7_175, %c0_176, %c0_177] : memref<9x32x128xbf16, #tpu.memory_space<vmem>>, vector<1x32x128xbf16>
    %241 = vector.shape_cast %240 : vector<1x32x128xbf16> to vector<32x128xbf16>
    %242 = arith.extf %241 : vector<32x128xbf16> to vector<32x128xf32>
    %243 = arith.maximumf %239, %242 : vector<32x128xf32>
    %c8_178 = arith.constant 8 : index
    %c0_179 = arith.constant 0 : index
    %c0_180 = arith.constant 0 : index
    %244 = vector.load %arg8[%c8_178, %c0_179, %c0_180] : memref<9x32x128xbf16, #tpu.memory_space<vmem>>, vector<1x32x128xbf16>
    %245 = vector.shape_cast %244 : vector<1x32x128xbf16> to vector<32x128xbf16>
    %246 = arith.extf %245 : vector<32x128xbf16> to vector<32x128xf32>
    %247 = arith.maximumf %243, %246 : vector<32x128xf32>
    %c0_181 = arith.constant 0 : index
    %c0_182 = arith.constant 0 : index
    %c0_183 = arith.constant 0 : index
    %248 = vector.load %arg8[%c0_181, %c0_182, %c0_183] : memref<9x32x128xbf16, #tpu.memory_space<vmem>>, vector<1x32x128xbf16>
    %249 = vector.shape_cast %248 : vector<1x32x128xbf16> to vector<32x128xbf16>
    %250 = arith.extf %249 : vector<32x128xbf16> to vector<32x128xf32>
    %251 = arith.subf %250, %247 : vector<32x128xf32>
    %252 = math.exp %251 : vector<32x128xf32>
    %c9 = arith.constant 9 : index
    %c0_184 = arith.constant 0 : index
    %c0_185 = arith.constant 0 : index
    %253 = vector.load %arg10[%c9, %c0_184, %c0_185] : memref<18x32x128xf32, #tpu.memory_space<vmem>>, vector<1x32x128xf32>
    %254 = vector.shape_cast %253 : vector<1x32x128xf32> to vector<32x128xf32>
    %255 = vector.shape_cast %252 : vector<32x128xf32> to vector<1x32x128xf32>
    tpu.vector_store %arg10[%c9, %c0_184, %c0_185], %255 {strides = array<i32>} : memref<18x32x128xf32, #tpu.memory_space<vmem>>, vector<1x32x128xf32>,
    %c1_186 = arith.constant 1 : index
    %c0_187 = arith.constant 0 : index
    %c0_188 = arith.constant 0 : index
    %256 = vector.load %arg8[%c1_186, %c0_187, %c0_188] : memref<9x32x128xbf16, #tpu.memory_space<vmem>>, vector<1x32x128xbf16>
    %257 = vector.shape_cast %256 : vector<1x32x128xbf16> to vector<32x128xbf16>
    %258 = arith.extf %257 : vector<32x128xbf16> to vector<32x128xf32>
    %259 = arith.subf %258, %247 : vector<32x128xf32>
    %260 = math.exp %259 : vector<32x128xf32>
    %c10 = arith.constant 10 : index
    %c0_189 = arith.constant 0 : index
    %c0_190 = arith.constant 0 : index
    %261 = vector.load %arg10[%c10, %c0_189, %c0_190] : memref<18x32x128xf32, #tpu.memory_space<vmem>>, vector<1x32x128xf32>
    %262 = vector.shape_cast %261 : vector<1x32x128xf32> to vector<32x128xf32>
    %263 = vector.shape_cast %260 : vector<32x128xf32> to vector<1x32x128xf32>
    tpu.vector_store %arg10[%c10, %c0_189, %c0_190], %263 {strides = array<i32>} : memref<18x32x128xf32, #tpu.memory_space<vmem>>, vector<1x32x128xf32>,
    %264 = arith.addf %252, %260 : vector<32x128xf32>
    %c2_191 = arith.constant 2 : index
    %c0_192 = arith.constant 0 : index
    %c0_193 = arith.constant 0 : index
    %265 = vector.load %arg8[%c2_191, %c0_192, %c0_193] : memref<9x32x128xbf16, #tpu.memory_space<vmem>>, vector<1x32x128xbf16>
    %266 = vector.shape_cast %265 : vector<1x32x128xbf16> to vector<32x128xbf16>
    %267 = arith.extf %266 : vector<32x128xbf16> to vector<32x128xf32>
    %268 = arith.subf %267, %247 : vector<32x128xf32>
    %269 = math.exp %268 : vector<32x128xf32>
    %c11 = arith.constant 11 : index
    %c0_194 = arith.constant 0 : index
    %c0_195 = arith.constant 0 : index
    %270 = vector.load %arg10[%c11, %c0_194, %c0_195] : memref<18x32x128xf32, #tpu.memory_space<vmem>>, vector<1x32x128xf32>
    %271 = vector.shape_cast %270 : vector<1x32x128xf32> to vector<32x128xf32>
    %272 = vector.shape_cast %269 : vector<32x128xf32> to vector<1x32x128xf32>
    tpu.vector_store %arg10[%c11, %c0_194, %c0_195], %272 {strides = array<i32>} : memref<18x32x128xf32, #tpu.memory_space<vmem>>, vector<1x32x128xf32>,
    %273 = arith.addf %264, %269 : vector<32x128xf32>
    %c3_196 = arith.constant 3 : index
    %c0_197 = arith.constant 0 : index
    %c0_198 = arith.constant 0 : index
    %274 = vector.load %arg8[%c3_196, %c0_197, %c0_198] : memref<9x32x128xbf16, #tpu.memory_space<vmem>>, vector<1x32x128xbf16>
    %275 = vector.shape_cast %274 : vector<1x32x128xbf16> to vector<32x128xbf16>
    %276 = arith.extf %275 : vector<32x128xbf16> to vector<32x128xf32>
    %277 = arith.subf %276, %247 : vector<32x128xf32>
    %278 = math.exp %277 : vector<32x128xf32>
    %c12 = arith.constant 12 : index
    %c0_199 = arith.constant 0 : index
    %c0_200 = arith.constant 0 : index
    %279 = vector.load %arg10[%c12, %c0_199, %c0_200] : memref<18x32x128xf32, #tpu.memory_space<vmem>>, vector<1x32x128xf32>
    %280 = vector.shape_cast %279 : vector<1x32x128xf32> to vector<32x128xf32>
    %281 = vector.shape_cast %278 : vector<32x128xf32> to vector<1x32x128xf32>
    tpu.vector_store %arg10[%c12, %c0_199, %c0_200], %281 {strides = array<i32>} : memref<18x32x128xf32, #tpu.memory_space<vmem>>, vector<1x32x128xf32>,
    %282 = arith.addf %273, %278 : vector<32x128xf32>
    %c4_201 = arith.constant 4 : index
    %c0_202 = arith.constant 0 : index
    %c0_203 = arith.constant 0 : index
    %283 = vector.load %arg8[%c4_201, %c0_202, %c0_203] : memref<9x32x128xbf16, #tpu.memory_space<vmem>>, vector<1x32x128xbf16>
    %284 = vector.shape_cast %283 : vector<1x32x128xbf16> to vector<32x128xbf16>
    %285 = arith.extf %284 : vector<32x128xbf16> to vector<32x128xf32>
    %286 = arith.subf %285, %247 : vector<32x128xf32>
    %287 = math.exp %286 : vector<32x128xf32>
    %c13 = arith.constant 13 : index
    %c0_204 = arith.constant 0 : index
    %c0_205 = arith.constant 0 : index
    %288 = vector.load %arg10[%c13, %c0_204, %c0_205] : memref<18x32x128xf32, #tpu.memory_space<vmem>>, vector<1x32x128xf32>
    %289 = vector.shape_cast %288 : vector<1x32x128xf32> to vector<32x128xf32>
    %290 = vector.shape_cast %287 : vector<32x128xf32> to vector<1x32x128xf32>
    tpu.vector_store %arg10[%c13, %c0_204, %c0_205], %290 {strides = array<i32>} : memref<18x32x128xf32, #tpu.memory_space<vmem>>, vector<1x32x128xf32>,
    %291 = arith.addf %282, %287 : vector<32x128xf32>
    %c5_206 = arith.constant 5 : index
    %c0_207 = arith.constant 0 : index
    %c0_208 = arith.constant 0 : index
    %292 = vector.load %arg8[%c5_206, %c0_207, %c0_208] : memref<9x32x128xbf16, #tpu.memory_space<vmem>>, vector<1x32x128xbf16>
    %293 = vector.shape_cast %292 : vector<1x32x128xbf16> to vector<32x128xbf16>
    %294 = arith.extf %293 : vector<32x128xbf16> to vector<32x128xf32>
    %295 = arith.subf %294, %247 : vector<32x128xf32>
    %296 = math.exp %295 : vector<32x128xf32>
    %c14 = arith.constant 14 : index
    %c0_209 = arith.constant 0 : index
    %c0_210 = arith.constant 0 : index
    %297 = vector.load %arg10[%c14, %c0_209, %c0_210] : memref<18x32x128xf32, #tpu.memory_space<vmem>>, vector<1x32x128xf32>
    %298 = vector.shape_cast %297 : vector<1x32x128xf32> to vector<32x128xf32>
    %299 = vector.shape_cast %296 : vector<32x128xf32> to vector<1x32x128xf32>
    tpu.vector_store %arg10[%c14, %c0_209, %c0_210], %299 {strides = array<i32>} : memref<18x32x128xf32, #tpu.memory_space<vmem>>, vector<1x32x128xf32>,
    %300 = arith.addf %291, %296 : vector<32x128xf32>
    %c6_211 = arith.constant 6 : index
    %c0_212 = arith.constant 0 : index
    %c0_213 = arith.constant 0 : index
    %301 = vector.load %arg8[%c6_211, %c0_212, %c0_213] : memref<9x32x128xbf16, #tpu.memory_space<vmem>>, vector<1x32x128xbf16>
    %302 = vector.shape_cast %301 : vector<1x32x128xbf16> to vector<32x128xbf16>
    %303 = arith.extf %302 : vector<32x128xbf16> to vector<32x128xf32>
    %304 = arith.subf %303, %247 : vector<32x128xf32>
    %305 = math.exp %304 : vector<32x128xf32>
    %c15 = arith.constant 15 : index
    %c0_214 = arith.constant 0 : index
    %c0_215 = arith.constant 0 : index
    %306 = vector.load %arg10[%c15, %c0_214, %c0_215] : memref<18x32x128xf32, #tpu.memory_space<vmem>>, vector<1x32x128xf32>
    %307 = vector.shape_cast %306 : vector<1x32x128xf32> to vector<32x128xf32>
    %308 = vector.shape_cast %305 : vector<32x128xf32> to vector<1x32x128xf32>
    tpu.vector_store %arg10[%c15, %c0_214, %c0_215], %308 {strides = array<i32>} : memref<18x32x128xf32, #tpu.memory_space<vmem>>, vector<1x32x128xf32>,
    %309 = arith.addf %300, %305 : vector<32x128xf32>
    %c7_216 = arith.constant 7 : index
    %c0_217 = arith.constant 0 : index
    %c0_218 = arith.constant 0 : index
    %310 = vector.load %arg8[%c7_216, %c0_217, %c0_218] : memref<9x32x128xbf16, #tpu.memory_space<vmem>>, vector<1x32x128xbf16>
    %311 = vector.shape_cast %310 : vector<1x32x128xbf16> to vector<32x128xbf16>
    %312 = arith.extf %311 : vector<32x128xbf16> to vector<32x128xf32>
    %313 = arith.subf %312, %247 : vector<32x128xf32>
    %314 = math.exp %313 : vector<32x128xf32>
    %c16 = arith.constant 16 : index
    %c0_219 = arith.constant 0 : index
    %c0_220 = arith.constant 0 : index
    %315 = vector.load %arg10[%c16, %c0_219, %c0_220] : memref<18x32x128xf32, #tpu.memory_space<vmem>>, vector<1x32x128xf32>
    %316 = vector.shape_cast %315 : vector<1x32x128xf32> to vector<32x128xf32>
    %317 = vector.shape_cast %314 : vector<32x128xf32> to vector<1x32x128xf32>
    tpu.vector_store %arg10[%c16, %c0_219, %c0_220], %317 {strides = array<i32>} : memref<18x32x128xf32, #tpu.memory_space<vmem>>, vector<1x32x128xf32>,
    %318 = arith.addf %309, %314 : vector<32x128xf32>
    %c8_221 = arith.constant 8 : index
    %c0_222 = arith.constant 0 : index
    %c0_223 = arith.constant 0 : index
    %319 = vector.load %arg8[%c8_221, %c0_222, %c0_223] : memref<9x32x128xbf16, #tpu.memory_space<vmem>>, vector<1x32x128xbf16>
    %320 = vector.shape_cast %319 : vector<1x32x128xbf16> to vector<32x128xbf16>
    %321 = arith.extf %320 : vector<32x128xbf16> to vector<32x128xf32>
    %322 = arith.subf %321, %247 : vector<32x128xf32>
    %323 = math.exp %322 : vector<32x128xf32>
    %c17 = arith.constant 17 : index
    %c0_224 = arith.constant 0 : index
    %c0_225 = arith.constant 0 : index
    %324 = vector.load %arg10[%c17, %c0_224, %c0_225] : memref<18x32x128xf32, #tpu.memory_space<vmem>>, vector<1x32x128xf32>
    %325 = vector.shape_cast %324 : vector<1x32x128xf32> to vector<32x128xf32>
    %326 = vector.shape_cast %323 : vector<32x128xf32> to vector<1x32x128xf32>
    tpu.vector_store %arg10[%c17, %c0_224, %c0_225], %326 {strides = array<i32>} : memref<18x32x128xf32, #tpu.memory_space<vmem>>, vector<1x32x128xf32>,
    %327 = arith.addf %318, %323 : vector<32x128xf32>
    %328 = tpu.reciprocal %327 {approx = true} : vector<32x128xf32> -> vector<32x128xf32>
    %329 = arith.mulf %327, %328 : vector<32x128xf32>
    %cst_226 = arith.constant 2.000000e+00 : f32
    %330 = vector.broadcast %cst_226 : f32 to vector<32x128xf32>
    %331 = arith.subf %330, %329 : vector<32x128xf32>
    %332 = arith.mulf %328, %331 : vector<32x128xf32>
    %c1_227 = arith.constant 1 : index
    %c0_228 = arith.constant 0 : index
    %c0_229 = arith.constant 0 : index
    %333 = vector.load %arg9[%c1_227, %c0_228, %c0_229] : memref<2x32x128xbf16, #tpu.memory_space<vmem>>, vector<1x32x128xbf16>
    %334 = vector.shape_cast %333 : vector<1x32x128xbf16> to vector<32x128xbf16>
    %335 = arith.extf %334 : vector<32x128xbf16> to vector<32x128xf32>
    %336 = arith.mulf %335, %332 : vector<32x128xf32>
    %c9_230 = arith.constant 9 : index
    %c0_231 = arith.constant 0 : index
    %c0_232 = arith.constant 0 : index
    %337 = vector.load %arg10[%c9_230, %c0_231, %c0_232] : memref<18x32x128xf32, #tpu.memory_space<vmem>>, vector<1x32x128xf32>
    %338 = vector.shape_cast %337 : vector<1x32x128xf32> to vector<32x128xf32>
    %339 = arith.mulf %338, %336 : vector<32x128xf32>
    %c9_233 = arith.constant 9 : index
    %c0_234 = arith.constant 0 : index
    %c0_235 = arith.constant 0 : index
    %340 = vector.load %arg10[%c9_233, %c0_234, %c0_235] : memref<18x32x128xf32, #tpu.memory_space<vmem>>, vector<1x32x128xf32>
    %341 = vector.shape_cast %340 : vector<1x32x128xf32> to vector<32x128xf32>
    %342 = vector.shape_cast %339 : vector<32x128xf32> to vector<1x32x128xf32>
    tpu.vector_store %arg10[%c9_233, %c0_234, %c0_235], %342 {strides = array<i32>} : memref<18x32x128xf32, #tpu.memory_space<vmem>>, vector<1x32x128xf32>,
    %c10_236 = arith.constant 10 : index
    %c0_237 = arith.constant 0 : index
    %c0_238 = arith.constant 0 : index
    %343 = vector.load %arg10[%c10_236, %c0_237, %c0_238] : memref<18x32x128xf32, #tpu.memory_space<vmem>>, vector<1x32x128xf32>
    %344 = vector.shape_cast %343 : vector<1x32x128xf32> to vector<32x128xf32>
    %345 = arith.mulf %344, %336 : vector<32x128xf32>
    %c10_239 = arith.constant 10 : index
    %c0_240 = arith.constant 0 : index
    %c0_241 = arith.constant 0 : index
    %346 = vector.load %arg10[%c10_239, %c0_240, %c0_241] : memref<18x32x128xf32, #tpu.memory_space<vmem>>, vector<1x32x128xf32>
    %347 = vector.shape_cast %346 : vector<1x32x128xf32> to vector<32x128xf32>
    %348 = vector.shape_cast %345 : vector<32x128xf32> to vector<1x32x128xf32>
    tpu.vector_store %arg10[%c10_239, %c0_240, %c0_241], %348 {strides = array<i32>} : memref<18x32x128xf32, #tpu.memory_space<vmem>>, vector<1x32x128xf32>,
    %c11_242 = arith.constant 11 : index
    %c0_243 = arith.constant 0 : index
    %c0_244 = arith.constant 0 : index
    %349 = vector.load %arg10[%c11_242, %c0_243, %c0_244] : memref<18x32x128xf32, #tpu.memory_space<vmem>>, vector<1x32x128xf32>
    %350 = vector.shape_cast %349 : vector<1x32x128xf32> to vector<32x128xf32>
    %351 = arith.mulf %350, %336 : vector<32x128xf32>
    %c11_245 = arith.constant 11 : index
    %c0_246 = arith.constant 0 : index
    %c0_247 = arith.constant 0 : index
    %352 = vector.load %arg10[%c11_245, %c0_246, %c0_247] : memref<18x32x128xf32, #tpu.memory_space<vmem>>, vector<1x32x128xf32>
    %353 = vector.shape_cast %352 : vector<1x32x128xf32> to vector<32x128xf32>
    %354 = vector.shape_cast %351 : vector<32x128xf32> to vector<1x32x128xf32>
    tpu.vector_store %arg10[%c11_245, %c0_246, %c0_247], %354 {strides = array<i32>} : memref<18x32x128xf32, #tpu.memory_space<vmem>>, vector<1x32x128xf32>,
    %c12_248 = arith.constant 12 : index
    %c0_249 = arith.constant 0 : index
    %c0_250 = arith.constant 0 : index
    %355 = vector.load %arg10[%c12_248, %c0_249, %c0_250] : memref<18x32x128xf32, #tpu.memory_space<vmem>>, vector<1x32x128xf32>
    %356 = vector.shape_cast %355 : vector<1x32x128xf32> to vector<32x128xf32>
    %357 = arith.mulf %356, %336 : vector<32x128xf32>
    %c12_251 = arith.constant 12 : index
    %c0_252 = arith.constant 0 : index
    %c0_253 = arith.constant 0 : index
    %358 = vector.load %arg10[%c12_251, %c0_252, %c0_253] : memref<18x32x128xf32, #tpu.memory_space<vmem>>, vector<1x32x128xf32>
    %359 = vector.shape_cast %358 : vector<1x32x128xf32> to vector<32x128xf32>
    %360 = vector.shape_cast %357 : vector<32x128xf32> to vector<1x32x128xf32>
    tpu.vector_store %arg10[%c12_251, %c0_252, %c0_253], %360 {strides = array<i32>} : memref<18x32x128xf32, #tpu.memory_space<vmem>>, vector<1x32x128xf32>,
    %c13_254 = arith.constant 13 : index
    %c0_255 = arith.constant 0 : index
    %c0_256 = arith.constant 0 : index
    %361 = vector.load %arg10[%c13_254, %c0_255, %c0_256] : memref<18x32x128xf32, #tpu.memory_space<vmem>>, vector<1x32x128xf32>
    %362 = vector.shape_cast %361 : vector<1x32x128xf32> to vector<32x128xf32>
    %363 = arith.mulf %362, %336 : vector<32x128xf32>
    %c13_257 = arith.constant 13 : index
    %c0_258 = arith.constant 0 : index
    %c0_259 = arith.constant 0 : index
    %364 = vector.load %arg10[%c13_257, %c0_258, %c0_259] : memref<18x32x128xf32, #tpu.memory_space<vmem>>, vector<1x32x128xf32>
    %365 = vector.shape_cast %364 : vector<1x32x128xf32> to vector<32x128xf32>
    %366 = vector.shape_cast %363 : vector<32x128xf32> to vector<1x32x128xf32>
    tpu.vector_store %arg10[%c13_257, %c0_258, %c0_259], %366 {strides = array<i32>} : memref<18x32x128xf32, #tpu.memory_space<vmem>>, vector<1x32x128xf32>,
    %c14_260 = arith.constant 14 : index
    %c0_261 = arith.constant 0 : index
    %c0_262 = arith.constant 0 : index
    %367 = vector.load %arg10[%c14_260, %c0_261, %c0_262] : memref<18x32x128xf32, #tpu.memory_space<vmem>>, vector<1x32x128xf32>
    %368 = vector.shape_cast %367 : vector<1x32x128xf32> to vector<32x128xf32>
    %369 = arith.mulf %368, %336 : vector<32x128xf32>
    %c14_263 = arith.constant 14 : index
    %c0_264 = arith.constant 0 : index
    %c0_265 = arith.constant 0 : index
    %370 = vector.load %arg10[%c14_263, %c0_264, %c0_265] : memref<18x32x128xf32, #tpu.memory_space<vmem>>, vector<1x32x128xf32>
    %371 = vector.shape_cast %370 : vector<1x32x128xf32> to vector<32x128xf32>
    %372 = vector.shape_cast %369 : vector<32x128xf32> to vector<1x32x128xf32>
    tpu.vector_store %arg10[%c14_263, %c0_264, %c0_265], %372 {strides = array<i32>} : memref<18x32x128xf32, #tpu.memory_space<vmem>>, vector<1x32x128xf32>,
    %c15_266 = arith.constant 15 : index
    %c0_267 = arith.constant 0 : index
    %c0_268 = arith.constant 0 : index
    %373 = vector.load %arg10[%c15_266, %c0_267, %c0_268] : memref<18x32x128xf32, #tpu.memory_space<vmem>>, vector<1x32x128xf32>
    %374 = vector.shape_cast %373 : vector<1x32x128xf32> to vector<32x128xf32>
    %375 = arith.mulf %374, %336 : vector<32x128xf32>
    %c15_269 = arith.constant 15 : index
    %c0_270 = arith.constant 0 : index
    %c0_271 = arith.constant 0 : index
    %376 = vector.load %arg10[%c15_269, %c0_270, %c0_271] : memref<18x32x128xf32, #tpu.memory_space<vmem>>, vector<1x32x128xf32>
    %377 = vector.shape_cast %376 : vector<1x32x128xf32> to vector<32x128xf32>
    %378 = vector.shape_cast %375 : vector<32x128xf32> to vector<1x32x128xf32>
    tpu.vector_store %arg10[%c15_269, %c0_270, %c0_271], %378 {strides = array<i32>} : memref<18x32x128xf32, #tpu.memory_space<vmem>>, vector<1x32x128xf32>,
    %c16_272 = arith.constant 16 : index
    %c0_273 = arith.constant 0 : index
    %c0_274 = arith.constant 0 : index
    %379 = vector.load %arg10[%c16_272, %c0_273, %c0_274] : memref<18x32x128xf32, #tpu.memory_space<vmem>>, vector<1x32x128xf32>
    %380 = vector.shape_cast %379 : vector<1x32x128xf32> to vector<32x128xf32>
    %381 = arith.mulf %380, %336 : vector<32x128xf32>
    %c16_275 = arith.constant 16 : index
    %c0_276 = arith.constant 0 : index
    %c0_277 = arith.constant 0 : index
    %382 = vector.load %arg10[%c16_275, %c0_276, %c0_277] : memref<18x32x128xf32, #tpu.memory_space<vmem>>, vector<1x32x128xf32>
    %383 = vector.shape_cast %382 : vector<1x32x128xf32> to vector<32x128xf32>
    %384 = vector.shape_cast %381 : vector<32x128xf32> to vector<1x32x128xf32>
    tpu.vector_store %arg10[%c16_275, %c0_276, %c0_277], %384 {strides = array<i32>} : memref<18x32x128xf32, #tpu.memory_space<vmem>>, vector<1x32x128xf32>,
    %c17_278 = arith.constant 17 : index
    %c0_279 = arith.constant 0 : index
    %c0_280 = arith.constant 0 : index
    %385 = vector.load %arg10[%c17_278, %c0_279, %c0_280] : memref<18x32x128xf32, #tpu.memory_space<vmem>>, vector<1x32x128xf32>
    %386 = vector.shape_cast %385 : vector<1x32x128xf32> to vector<32x128xf32>
    %387 = arith.mulf %386, %336 : vector<32x128xf32>
    %c17_281 = arith.constant 17 : index
    %c0_282 = arith.constant 0 : index
    %c0_283 = arith.constant 0 : index
    %388 = vector.load %arg10[%c17_281, %c0_282, %c0_283] : memref<18x32x128xf32, #tpu.memory_space<vmem>>, vector<1x32x128xf32>
    %389 = vector.shape_cast %388 : vector<1x32x128xf32> to vector<32x128xf32>
    %390 = vector.shape_cast %387 : vector<32x128xf32> to vector<1x32x128xf32>
    tpu.vector_store %arg10[%c17_281, %c0_282, %c0_283], %390 {strides = array<i32>} : memref<18x32x128xf32, #tpu.memory_space<vmem>>, vector<1x32x128xf32>,
    %c0_i32_284 = arith.constant 0 : i32
    %c3_i32_285 = arith.constant 3 : i32
    %c0_i32_286 = arith.constant 0 : i32
    %391 = tpu.memref_slice %arg5[%arg0, %c0_i32_284, %0, %c0_i32_286] : memref<2x1x32x128xf32, #tpu.memory_space<any>> -> memref<1x1x32x128xf32, #tpu.memory_space<any>>
    %392 = tpu.memref_squeeze %391 : memref<1x1x32x128xf32, #tpu.memory_space<any>> -> memref<32x128xf32, #tpu.memory_space<any>>
    %393 = tpu.memref_slice %arg13[%c3_i32_285] : memref<4x!tpu.dma_semaphore, #tpu.memory_space<semaphore_mem>> -> memref<1x!tpu.dma_semaphore, #tpu.memory_space<semaphore_mem>>
    %394 = tpu.memref_squeeze %393 : memref<1x!tpu.dma_semaphore, #tpu.memory_space<semaphore_mem>> -> memref<!tpu.dma_semaphore, #tpu.memory_space<semaphore_mem>>
    tpu.wait_dma2 semaphore(%394 : memref<!tpu.dma_semaphore, #tpu.memory_space<semaphore_mem>>) src(%392 : memref<32x128xf32, #tpu.memory_space<any>>) dst(%arg11 : memref<32x128xf32, #tpu.memory_space<vmem>>)
    %c0_287 = arith.constant 0 : index
    %c0_288 = arith.constant 0 : index
    %395 = vector.load %arg11[%c0_287, %c0_288] : memref<32x128xf32, #tpu.memory_space<vmem>>, vector<32x128xf32>
    %c8_289 = arith.constant 8 : index
    %c128 = arith.constant 128 : index
    %396 = vector.load %arg12[%c8_289, %c128] : memref<48x384xf32, #tpu.memory_space<vmem>>, vector<32x128xf32>
    tpu.vector_store %arg12[%c8_289, %c128], %395 {strides = array<i32>} : memref<48x384xf32, #tpu.memory_space<vmem>>, vector<32x128xf32>,
    %c7_290 = arith.constant 7 : index
    %c127 = arith.constant 127 : index
    %397 = vector.load %arg12[%c7_290, %c127] : memref<48x384xf32, #tpu.memory_space<vmem>>, vector<32x128xf32>
    %c0_291 = arith.constant 0 : index
    %c0_292 = arith.constant 0 : index
    %c0_293 = arith.constant 0 : index
    %398 = vector.load %arg10[%c0_291, %c0_292, %c0_293] : memref<18x32x128xf32, #tpu.memory_space<vmem>>, vector<1x32x128xf32>
    %399 = vector.shape_cast %398 : vector<1x32x128xf32> to vector<32x128xf32>
    %400 = arith.mulf %397, %399 : vector<32x128xf32>
    %c7_294 = arith.constant 7 : index
    %c128_295 = arith.constant 128 : index
    %401 = vector.load %arg12[%c7_294, %c128_295] : memref<48x384xf32, #tpu.memory_space<vmem>>, vector<32x128xf32>
    %c1_296 = arith.constant 1 : index
    %c0_297 = arith.constant 0 : index
    %c0_298 = arith.constant 0 : index
    %402 = vector.load %arg10[%c1_296, %c0_297, %c0_298] : memref<18x32x128xf32, #tpu.memory_space<vmem>>, vector<1x32x128xf32>
    %403 = vector.shape_cast %402 : vector<1x32x128xf32> to vector<32x128xf32>
    %404 = arith.mulf %401, %403 : vector<32x128xf32>
    %405 = arith.addf %400, %404 : vector<32x128xf32>
    %c7_299 = arith.constant 7 : index
    %c129 = arith.constant 129 : index
    %406 = vector.load %arg12[%c7_299, %c129] : memref<48x384xf32, #tpu.memory_space<vmem>>, vector<32x128xf32>
    %c2_300 = arith.constant 2 : index
    %c0_301 = arith.constant 0 : index
    %c0_302 = arith.constant 0 : index
    %407 = vector.load %arg10[%c2_300, %c0_301, %c0_302] : memref<18x32x128xf32, #tpu.memory_space<vmem>>, vector<1x32x128xf32>
    %408 = vector.shape_cast %407 : vector<1x32x128xf32> to vector<32x128xf32>
    %409 = arith.mulf %406, %408 : vector<32x128xf32>
    %410 = arith.addf %405, %409 : vector<32x128xf32>
    %c8_303 = arith.constant 8 : index
    %c127_304 = arith.constant 127 : index
    %411 = vector.load %arg12[%c8_303, %c127_304] : memref<48x384xf32, #tpu.memory_space<vmem>>, vector<32x128xf32>
    %c3_305 = arith.constant 3 : index
    %c0_306 = arith.constant 0 : index
    %c0_307 = arith.constant 0 : index
    %412 = vector.load %arg10[%c3_305, %c0_306, %c0_307] : memref<18x32x128xf32, #tpu.memory_space<vmem>>, vector<1x32x128xf32>
    %413 = vector.shape_cast %412 : vector<1x32x128xf32> to vector<32x128xf32>
    %414 = arith.mulf %411, %413 : vector<32x128xf32>
    %415 = arith.addf %410, %414 : vector<32x128xf32>
    %c8_308 = arith.constant 8 : index
    %c128_309 = arith.constant 128 : index
    %416 = vector.load %arg12[%c8_308, %c128_309] : memref<48x384xf32, #tpu.memory_space<vmem>>, vector<32x128xf32>
    %c4_310 = arith.constant 4 : index
    %c0_311 = arith.constant 0 : index
    %c0_312 = arith.constant 0 : index
    %417 = vector.load %arg10[%c4_310, %c0_311, %c0_312] : memref<18x32x128xf32, #tpu.memory_space<vmem>>, vector<1x32x128xf32>
    %418 = vector.shape_cast %417 : vector<1x32x128xf32> to vector<32x128xf32>
    %419 = arith.mulf %416, %418 : vector<32x128xf32>
    %420 = arith.addf %415, %419 : vector<32x128xf32>
    %c8_313 = arith.constant 8 : index
    %c129_314 = arith.constant 129 : index
    %421 = vector.load %arg12[%c8_313, %c129_314] : memref<48x384xf32, #tpu.memory_space<vmem>>, vector<32x128xf32>
    %c5_315 = arith.constant 5 : index
    %c0_316 = arith.constant 0 : index
    %c0_317 = arith.constant 0 : index
    %422 = vector.load %arg10[%c5_315, %c0_316, %c0_317] : memref<18x32x128xf32, #tpu.memory_space<vmem>>, vector<1x32x128xf32>
    %423 = vector.shape_cast %422 : vector<1x32x128xf32> to vector<32x128xf32>
    %424 = arith.mulf %421, %423 : vector<32x128xf32>
    %425 = arith.addf %420, %424 : vector<32x128xf32>
    %c9_318 = arith.constant 9 : index
    %c127_319 = arith.constant 127 : index
    %426 = vector.load %arg12[%c9_318, %c127_319] : memref<48x384xf32, #tpu.memory_space<vmem>>, vector<32x128xf32>
    %c6_320 = arith.constant 6 : index
    %c0_321 = arith.constant 0 : index
    %c0_322 = arith.constant 0 : index
    %427 = vector.load %arg10[%c6_320, %c0_321, %c0_322] : memref<18x32x128xf32, #tpu.memory_space<vmem>>, vector<1x32x128xf32>
    %428 = vector.shape_cast %427 : vector<1x32x128xf32> to vector<32x128xf32>
    %429 = arith.mulf %426, %428 : vector<32x128xf32>
    %430 = arith.addf %425, %429 : vector<32x128xf32>
    %c9_323 = arith.constant 9 : index
    %c128_324 = arith.constant 128 : index
    %431 = vector.load %arg12[%c9_323, %c128_324] : memref<48x384xf32, #tpu.memory_space<vmem>>, vector<32x128xf32>
    %c7_325 = arith.constant 7 : index
    %c0_326 = arith.constant 0 : index
    %c0_327 = arith.constant 0 : index
    %432 = vector.load %arg10[%c7_325, %c0_326, %c0_327] : memref<18x32x128xf32, #tpu.memory_space<vmem>>, vector<1x32x128xf32>
    %433 = vector.shape_cast %432 : vector<1x32x128xf32> to vector<32x128xf32>
    %434 = arith.mulf %431, %433 : vector<32x128xf32>
    %435 = arith.addf %430, %434 : vector<32x128xf32>
    %c9_328 = arith.constant 9 : index
    %c129_329 = arith.constant 129 : index
    %436 = vector.load %arg12[%c9_328, %c129_329] : memref<48x384xf32, #tpu.memory_space<vmem>>, vector<32x128xf32>
    %c8_330 = arith.constant 8 : index
    %c0_331 = arith.constant 0 : index
    %c0_332 = arith.constant 0 : index
    %437 = vector.load %arg10[%c8_330, %c0_331, %c0_332] : memref<18x32x128xf32, #tpu.memory_space<vmem>>, vector<1x32x128xf32>
    %438 = vector.shape_cast %437 : vector<1x32x128xf32> to vector<32x128xf32>
    %439 = arith.mulf %436, %438 : vector<32x128xf32>
    %440 = arith.addf %435, %439 : vector<32x128xf32>
    %c6_333 = arith.constant 6 : index
    %c126 = arith.constant 126 : index
    %441 = vector.load %arg12[%c6_333, %c126] : memref<48x384xf32, #tpu.memory_space<vmem>>, vector<32x128xf32>
    %c9_334 = arith.constant 9 : index
    %c0_335 = arith.constant 0 : index
    %c0_336 = arith.constant 0 : index
    %442 = vector.load %arg10[%c9_334, %c0_335, %c0_336] : memref<18x32x128xf32, #tpu.memory_space<vmem>>, vector<1x32x128xf32>
    %443 = vector.shape_cast %442 : vector<1x32x128xf32> to vector<32x128xf32>
    %444 = arith.mulf %441, %443 : vector<32x128xf32>
    %445 = arith.addf %440, %444 : vector<32x128xf32>
    %c6_337 = arith.constant 6 : index
    %c128_338 = arith.constant 128 : index
    %446 = vector.load %arg12[%c6_337, %c128_338] : memref<48x384xf32, #tpu.memory_space<vmem>>, vector<32x128xf32>
    %c10_339 = arith.constant 10 : index
    %c0_340 = arith.constant 0 : index
    %c0_341 = arith.constant 0 : index
    %447 = vector.load %arg10[%c10_339, %c0_340, %c0_341] : memref<18x32x128xf32, #tpu.memory_space<vmem>>, vector<1x32x128xf32>
    %448 = vector.shape_cast %447 : vector<1x32x128xf32> to vector<32x128xf32>
    %449 = arith.mulf %446, %448 : vector<32x128xf32>
    %450 = arith.addf %445, %449 : vector<32x128xf32>
    %c6_342 = arith.constant 6 : index
    %c130 = arith.constant 130 : index
    %451 = vector.load %arg12[%c6_342, %c130] : memref<48x384xf32, #tpu.memory_space<vmem>>, vector<32x128xf32>
    %c11_343 = arith.constant 11 : index
    %c0_344 = arith.constant 0 : index
    %c0_345 = arith.constant 0 : index
    %452 = vector.load %arg10[%c11_343, %c0_344, %c0_345] : memref<18x32x128xf32, #tpu.memory_space<vmem>>, vector<1x32x128xf32>
    %453 = vector.shape_cast %452 : vector<1x32x128xf32> to vector<32x128xf32>
    %454 = arith.mulf %451, %453 : vector<32x128xf32>
    %455 = arith.addf %450, %454 : vector<32x128xf32>
    %c8_346 = arith.constant 8 : index
    %c126_347 = arith.constant 126 : index
    %456 = vector.load %arg12[%c8_346, %c126_347] : memref<48x384xf32, #tpu.memory_space<vmem>>, vector<32x128xf32>
    %c12_348 = arith.constant 12 : index
    %c0_349 = arith.constant 0 : index
    %c0_350 = arith.constant 0 : index
    %457 = vector.load %arg10[%c12_348, %c0_349, %c0_350] : memref<18x32x128xf32, #tpu.memory_space<vmem>>, vector<1x32x128xf32>
    %458 = vector.shape_cast %457 : vector<1x32x128xf32> to vector<32x128xf32>
    %459 = arith.mulf %456, %458 : vector<32x128xf32>
    %460 = arith.addf %455, %459 : vector<32x128xf32>
    %c8_351 = arith.constant 8 : index
    %c128_352 = arith.constant 128 : index
    %461 = vector.load %arg12[%c8_351, %c128_352] : memref<48x384xf32, #tpu.memory_space<vmem>>, vector<32x128xf32>
    %c13_353 = arith.constant 13 : index
    %c0_354 = arith.constant 0 : index
    %c0_355 = arith.constant 0 : index
    %462 = vector.load %arg10[%c13_353, %c0_354, %c0_355] : memref<18x32x128xf32, #tpu.memory_space<vmem>>, vector<1x32x128xf32>
    %463 = vector.shape_cast %462 : vector<1x32x128xf32> to vector<32x128xf32>
    %464 = arith.mulf %461, %463 : vector<32x128xf32>
    %465 = arith.addf %460, %464 : vector<32x128xf32>
    %c8_356 = arith.constant 8 : index
    %c130_357 = arith.constant 130 : index
    %466 = vector.load %arg12[%c8_356, %c130_357] : memref<48x384xf32, #tpu.memory_space<vmem>>, vector<32x128xf32>
    %c14_358 = arith.constant 14 : index
    %c0_359 = arith.constant 0 : index
    %c0_360 = arith.constant 0 : index
    %467 = vector.load %arg10[%c14_358, %c0_359, %c0_360] : memref<18x32x128xf32, #tpu.memory_space<vmem>>, vector<1x32x128xf32>
    %468 = vector.shape_cast %467 : vector<1x32x128xf32> to vector<32x128xf32>
    %469 = arith.mulf %466, %468 : vector<32x128xf32>
    %470 = arith.addf %465, %469 : vector<32x128xf32>
    %c10_361 = arith.constant 10 : index
    %c126_362 = arith.constant 126 : index
    %471 = vector.load %arg12[%c10_361, %c126_362] : memref<48x384xf32, #tpu.memory_space<vmem>>, vector<32x128xf32>
    %c15_363 = arith.constant 15 : index
    %c0_364 = arith.constant 0 : index
    %c0_365 = arith.constant 0 : index
    %472 = vector.load %arg10[%c15_363, %c0_364, %c0_365] : memref<18x32x128xf32, #tpu.memory_space<vmem>>, vector<1x32x128xf32>
    %473 = vector.shape_cast %472 : vector<1x32x128xf32> to vector<32x128xf32>
    %474 = arith.mulf %471, %473 : vector<32x128xf32>
    %475 = arith.addf %470, %474 : vector<32x128xf32>
    %c10_366 = arith.constant 10 : index
    %c128_367 = arith.constant 128 : index
    %476 = vector.load %arg12[%c10_366, %c128_367] : memref<48x384xf32, #tpu.memory_space<vmem>>, vector<32x128xf32>
    %c16_368 = arith.constant 16 : index
    %c0_369 = arith.constant 0 : index
    %c0_370 = arith.constant 0 : index
    %477 = vector.load %arg10[%c16_368, %c0_369, %c0_370] : memref<18x32x128xf32, #tpu.memory_space<vmem>>, vector<1x32x128xf32>
    %478 = vector.shape_cast %477 : vector<1x32x128xf32> to vector<32x128xf32>
    %479 = arith.mulf %476, %478 : vector<32x128xf32>
    %480 = arith.addf %475, %479 : vector<32x128xf32>
    %c10_371 = arith.constant 10 : index
    %c130_372 = arith.constant 130 : index
    %481 = vector.load %arg12[%c10_371, %c130_372] : memref<48x384xf32, #tpu.memory_space<vmem>>, vector<32x128xf32>
    %c17_373 = arith.constant 17 : index
    %c0_374 = arith.constant 0 : index
    %c0_375 = arith.constant 0 : index
    %482 = vector.load %arg10[%c17_373, %c0_374, %c0_375] : memref<18x32x128xf32, #tpu.memory_space<vmem>>, vector<1x32x128xf32>
    %483 = vector.shape_cast %482 : vector<1x32x128xf32> to vector<32x128xf32>
    %484 = arith.mulf %481, %483 : vector<32x128xf32>
    %485 = arith.addf %480, %484 : vector<32x128xf32>
    %c8_376 = arith.constant 8 : index
    %c128_377 = arith.constant 128 : index
    %486 = vector.load %arg12[%c8_376, %c128_377] : memref<48x384xf32, #tpu.memory_space<vmem>>, vector<32x128xf32>
    tpu.vector_store %arg12[%c8_376, %c128_377], %485 {strides = array<i32>} : memref<48x384xf32, #tpu.memory_space<vmem>>, vector<32x128xf32>,
    %c7_378 = arith.constant 7 : index
    %c127_379 = arith.constant 127 : index
    %487 = vector.load %arg12[%c7_378, %c127_379] : memref<48x384xf32, #tpu.memory_space<vmem>>, vector<32x128xf32>
    %c0_380 = arith.constant 0 : index
    %c0_381 = arith.constant 0 : index
    %c0_382 = arith.constant 0 : index
    %488 = vector.load %arg10[%c0_380, %c0_381, %c0_382] : memref<18x32x128xf32, #tpu.memory_space<vmem>>, vector<1x32x128xf32>
    %489 = vector.shape_cast %488 : vector<1x32x128xf32> to vector<32x128xf32>
    %490 = arith.mulf %487, %489 : vector<32x128xf32>
    %c7_383 = arith.constant 7 : index
    %c128_384 = arith.constant 128 : index
    %491 = vector.load %arg12[%c7_383, %c128_384] : memref<48x384xf32, #tpu.memory_space<vmem>>, vector<32x128xf32>
    %c1_385 = arith.constant 1 : index
    %c0_386 = arith.constant 0 : index
    %c0_387 = arith.constant 0 : index
    %492 = vector.load %arg10[%c1_385, %c0_386, %c0_387] : memref<18x32x128xf32, #tpu.memory_space<vmem>>, vector<1x32x128xf32>
    %493 = vector.shape_cast %492 : vector<1x32x128xf32> to vector<32x128xf32>
    %494 = arith.mulf %491, %493 : vector<32x128xf32>
    %495 = arith.addf %490, %494 : vector<32x128xf32>
    %c7_388 = arith.constant 7 : index
    %c129_389 = arith.constant 129 : index
    %496 = vector.load %arg12[%c7_388, %c129_389] : memref<48x384xf32, #tpu.memory_space<vmem>>, vector<32x128xf32>
    %c2_390 = arith.constant 2 : index
    %c0_391 = arith.constant 0 : index
    %c0_392 = arith.constant 0 : index
    %497 = vector.load %arg10[%c2_390, %c0_391, %c0_392] : memref<18x32x128xf32, #tpu.memory_space<vmem>>, vector<1x32x128xf32>
    %498 = vector.shape_cast %497 : vector<1x32x128xf32> to vector<32x128xf32>
    %499 = arith.mulf %496, %498 : vector<32x128xf32>
    %500 = arith.addf %495, %499 : vector<32x128xf32>
    %c8_393 = arith.constant 8 : index
    %c127_394 = arith.constant 127 : index
    %501 = vector.load %arg12[%c8_393, %c127_394] : memref<48x384xf32, #tpu.memory_space<vmem>>, vector<32x128xf32>
    %c3_395 = arith.constant 3 : index
    %c0_396 = arith.constant 0 : index
    %c0_397 = arith.constant 0 : index
    %502 = vector.load %arg10[%c3_395, %c0_396, %c0_397] : memref<18x32x128xf32, #tpu.memory_space<vmem>>, vector<1x32x128xf32>
    %503 = vector.shape_cast %502 : vector<1x32x128xf32> to vector<32x128xf32>
    %504 = arith.mulf %501, %503 : vector<32x128xf32>
    %505 = arith.addf %500, %504 : vector<32x128xf32>
    %c8_398 = arith.constant 8 : index
    %c128_399 = arith.constant 128 : index
    %506 = vector.load %arg12[%c8_398, %c128_399] : memref<48x384xf32, #tpu.memory_space<vmem>>, vector<32x128xf32>
    %c4_400 = arith.constant 4 : index
    %c0_401 = arith.constant 0 : index
    %c0_402 = arith.constant 0 : index
    %507 = vector.load %arg10[%c4_400, %c0_401, %c0_402] : memref<18x32x128xf32, #tpu.memory_space<vmem>>, vector<1x32x128xf32>
    %508 = vector.shape_cast %507 : vector<1x32x128xf32> to vector<32x128xf32>
    %509 = arith.mulf %506, %508 : vector<32x128xf32>
    %510 = arith.addf %505, %509 : vector<32x128xf32>
    %c8_403 = arith.constant 8 : index
    %c129_404 = arith.constant 129 : index
    %511 = vector.load %arg12[%c8_403, %c129_404] : memref<48x384xf32, #tpu.memory_space<vmem>>, vector<32x128xf32>
    %c5_405 = arith.constant 5 : index
    %c0_406 = arith.constant 0 : index
    %c0_407 = arith.constant 0 : index
    %512 = vector.load %arg10[%c5_405, %c0_406, %c0_407] : memref<18x32x128xf32, #tpu.memory_space<vmem>>, vector<1x32x128xf32>
    %513 = vector.shape_cast %512 : vector<1x32x128xf32> to vector<32x128xf32>
    %514 = arith.mulf %511, %513 : vector<32x128xf32>
    %515 = arith.addf %510, %514 : vector<32x128xf32>
    %c9_408 = arith.constant 9 : index
    %c127_409 = arith.constant 127 : index
    %516 = vector.load %arg12[%c9_408, %c127_409] : memref<48x384xf32, #tpu.memory_space<vmem>>, vector<32x128xf32>
    %c6_410 = arith.constant 6 : index
    %c0_411 = arith.constant 0 : index
    %c0_412 = arith.constant 0 : index
    %517 = vector.load %arg10[%c6_410, %c0_411, %c0_412] : memref<18x32x128xf32, #tpu.memory_space<vmem>>, vector<1x32x128xf32>
    %518 = vector.shape_cast %517 : vector<1x32x128xf32> to vector<32x128xf32>
    %519 = arith.mulf %516, %518 : vector<32x128xf32>
    %520 = arith.addf %515, %519 : vector<32x128xf32>
    %c9_413 = arith.constant 9 : index
    %c128_414 = arith.constant 128 : index
    %521 = vector.load %arg12[%c9_413, %c128_414] : memref<48x384xf32, #tpu.memory_space<vmem>>, vector<32x128xf32>
    %c7_415 = arith.constant 7 : index
    %c0_416 = arith.constant 0 : index
    %c0_417 = arith.constant 0 : index
    %522 = vector.load %arg10[%c7_415, %c0_416, %c0_417] : memref<18x32x128xf32, #tpu.memory_space<vmem>>, vector<1x32x128xf32>
    %523 = vector.shape_cast %522 : vector<1x32x128xf32> to vector<32x128xf32>
    %524 = arith.mulf %521, %523 : vector<32x128xf32>
    %525 = arith.addf %520, %524 : vector<32x128xf32>
    %c9_418 = arith.constant 9 : index
    %c129_419 = arith.constant 129 : index
    %526 = vector.load %arg12[%c9_418, %c129_419] : memref<48x384xf32, #tpu.memory_space<vmem>>, vector<32x128xf32>
    %c8_420 = arith.constant 8 : index
    %c0_421 = arith.constant 0 : index
    %c0_422 = arith.constant 0 : index
    %527 = vector.load %arg10[%c8_420, %c0_421, %c0_422] : memref<18x32x128xf32, #tpu.memory_space<vmem>>, vector<1x32x128xf32>
    %528 = vector.shape_cast %527 : vector<1x32x128xf32> to vector<32x128xf32>
    %529 = arith.mulf %526, %528 : vector<32x128xf32>
    %530 = arith.addf %525, %529 : vector<32x128xf32>
    %c6_423 = arith.constant 6 : index
    %c126_424 = arith.constant 126 : index
    %531 = vector.load %arg12[%c6_423, %c126_424] : memref<48x384xf32, #tpu.memory_space<vmem>>, vector<32x128xf32>
    %c9_425 = arith.constant 9 : index
    %c0_426 = arith.constant 0 : index
    %c0_427 = arith.constant 0 : index
    %532 = vector.load %arg10[%c9_425, %c0_426, %c0_427] : memref<18x32x128xf32, #tpu.memory_space<vmem>>, vector<1x32x128xf32>
    %533 = vector.shape_cast %532 : vector<1x32x128xf32> to vector<32x128xf32>
    %534 = arith.mulf %531, %533 : vector<32x128xf32>
    %535 = arith.addf %530, %534 : vector<32x128xf32>
    %c6_428 = arith.constant 6 : index
    %c128_429 = arith.constant 128 : index
    %536 = vector.load %arg12[%c6_428, %c128_429] : memref<48x384xf32, #tpu.memory_space<vmem>>, vector<32x128xf32>
    %c10_430 = arith.constant 10 : index
    %c0_431 = arith.constant 0 : index
    %c0_432 = arith.constant 0 : index
    %537 = vector.load %arg10[%c10_430, %c0_431, %c0_432] : memref<18x32x128xf32, #tpu.memory_space<vmem>>, vector<1x32x128xf32>
    %538 = vector.shape_cast %537 : vector<1x32x128xf32> to vector<32x128xf32>
    %539 = arith.mulf %536, %538 : vector<32x128xf32>
    %540 = arith.addf %535, %539 : vector<32x128xf32>
    %c6_433 = arith.constant 6 : index
    %c130_434 = arith.constant 130 : index
    %541 = vector.load %arg12[%c6_433, %c130_434] : memref<48x384xf32, #tpu.memory_space<vmem>>, vector<32x128xf32>
    %c11_435 = arith.constant 11 : index
    %c0_436 = arith.constant 0 : index
    %c0_437 = arith.constant 0 : index
    %542 = vector.load %arg10[%c11_435, %c0_436, %c0_437] : memref<18x32x128xf32, #tpu.memory_space<vmem>>, vector<1x32x128xf32>
    %543 = vector.shape_cast %542 : vector<1x32x128xf32> to vector<32x128xf32>
    %544 = arith.mulf %541, %543 : vector<32x128xf32>
    %545 = arith.addf %540, %544 : vector<32x128xf32>
    %c8_438 = arith.constant 8 : index
    %c126_439 = arith.constant 126 : index
    %546 = vector.load %arg12[%c8_438, %c126_439] : memref<48x384xf32, #tpu.memory_space<vmem>>, vector<32x128xf32>
    %c12_440 = arith.constant 12 : index
    %c0_441 = arith.constant 0 : index
    %c0_442 = arith.constant 0 : index
    %547 = vector.load %arg10[%c12_440, %c0_441, %c0_442] : memref<18x32x128xf32, #tpu.memory_space<vmem>>, vector<1x32x128xf32>
    %548 = vector.shape_cast %547 : vector<1x32x128xf32> to vector<32x128xf32>
    %549 = arith.mulf %546, %548 : vector<32x128xf32>
    %550 = arith.addf %545, %549 : vector<32x128xf32>
    %c8_443 = arith.constant 8 : index
    %c128_444 = arith.constant 128 : index
    %551 = vector.load %arg12[%c8_443, %c128_444] : memref<48x384xf32, #tpu.memory_space<vmem>>, vector<32x128xf32>
    %c13_445 = arith.constant 13 : index
    %c0_446 = arith.constant 0 : index
    %c0_447 = arith.constant 0 : index
    %552 = vector.load %arg10[%c13_445, %c0_446, %c0_447] : memref<18x32x128xf32, #tpu.memory_space<vmem>>, vector<1x32x128xf32>
    %553 = vector.shape_cast %552 : vector<1x32x128xf32> to vector<32x128xf32>
    %554 = arith.mulf %551, %553 : vector<32x128xf32>
    %555 = arith.addf %550, %554 : vector<32x128xf32>
    %c8_448 = arith.constant 8 : index
    %c130_449 = arith.constant 130 : index
    %556 = vector.load %arg12[%c8_448, %c130_449] : memref<48x384xf32, #tpu.memory_space<vmem>>, vector<32x128xf32>
    %c14_450 = arith.constant 14 : index
    %c0_451 = arith.constant 0 : index
    %c0_452 = arith.constant 0 : index
    %557 = vector.load %arg10[%c14_450, %c0_451, %c0_452] : memref<18x32x128xf32, #tpu.memory_space<vmem>>, vector<1x32x128xf32>
    %558 = vector.shape_cast %557 : vector<1x32x128xf32> to vector<32x128xf32>
    %559 = arith.mulf %556, %558 : vector<32x128xf32>
    %560 = arith.addf %555, %559 : vector<32x128xf32>
    %c10_453 = arith.constant 10 : index
    %c126_454 = arith.constant 126 : index
    %561 = vector.load %arg12[%c10_453, %c126_454] : memref<48x384xf32, #tpu.memory_space<vmem>>, vector<32x128xf32>
    %c15_455 = arith.constant 15 : index
    %c0_456 = arith.constant 0 : index
    %c0_457 = arith.constant 0 : index
    %562 = vector.load %arg10[%c15_455, %c0_456, %c0_457] : memref<18x32x128xf32, #tpu.memory_space<vmem>>, vector<1x32x128xf32>
    %563 = vector.shape_cast %562 : vector<1x32x128xf32> to vector<32x128xf32>
    %564 = arith.mulf %561, %563 : vector<32x128xf32>
    %565 = arith.addf %560, %564 : vector<32x128xf32>
    %c10_458 = arith.constant 10 : index
    %c128_459 = arith.constant 128 : index
    %566 = vector.load %arg12[%c10_458, %c128_459] : memref<48x384xf32, #tpu.memory_space<vmem>>, vector<32x128xf32>
    %c16_460 = arith.constant 16 : index
    %c0_461 = arith.constant 0 : index
    %c0_462 = arith.constant 0 : index
    %567 = vector.load %arg10[%c16_460, %c0_461, %c0_462] : memref<18x32x128xf32, #tpu.memory_space<vmem>>, vector<1x32x128xf32>
    %568 = vector.shape_cast %567 : vector<1x32x128xf32> to vector<32x128xf32>
    %569 = arith.mulf %566, %568 : vector<32x128xf32>
    %570 = arith.addf %565, %569 : vector<32x128xf32>
    %c10_463 = arith.constant 10 : index
    %c130_464 = arith.constant 130 : index
    %571 = vector.load %arg12[%c10_463, %c130_464] : memref<48x384xf32, #tpu.memory_space<vmem>>, vector<32x128xf32>
    %c17_465 = arith.constant 17 : index
    %c0_466 = arith.constant 0 : index
    %c0_467 = arith.constant 0 : index
    %572 = vector.load %arg10[%c17_465, %c0_466, %c0_467] : memref<18x32x128xf32, #tpu.memory_space<vmem>>, vector<1x32x128xf32>
    %573 = vector.shape_cast %572 : vector<1x32x128xf32> to vector<32x128xf32>
    %574 = arith.mulf %571, %573 : vector<32x128xf32>
    %575 = arith.addf %570, %574 : vector<32x128xf32>
    %c8_468 = arith.constant 8 : index
    %c128_469 = arith.constant 128 : index
    %576 = vector.load %arg12[%c8_468, %c128_469] : memref<48x384xf32, #tpu.memory_space<vmem>>, vector<32x128xf32>
    tpu.vector_store %arg12[%c8_468, %c128_469], %575 {strides = array<i32>} : memref<48x384xf32, #tpu.memory_space<vmem>>, vector<32x128xf32>,
    %c7_470 = arith.constant 7 : index
    %c127_471 = arith.constant 127 : index
    %577 = vector.load %arg12[%c7_470, %c127_471] : memref<48x384xf32, #tpu.memory_space<vmem>>, vector<32x128xf32>
    %c0_472 = arith.constant 0 : index
    %c0_473 = arith.constant 0 : index
    %c0_474 = arith.constant 0 : index
    %578 = vector.load %arg10[%c0_472, %c0_473, %c0_474] : memref<18x32x128xf32, #tpu.memory_space<vmem>>, vector<1x32x128xf32>
    %579 = vector.shape_cast %578 : vector<1x32x128xf32> to vector<32x128xf32>
    %580 = arith.mulf %577, %579 : vector<32x128xf32>
    %c7_475 = arith.constant 7 : index
    %c128_476 = arith.constant 128 : index
    %581 = vector.load %arg12[%c7_475, %c128_476] : memref<48x384xf32, #tpu.memory_space<vmem>>, vector<32x128xf32>
    %c1_477 = arith.constant 1 : index
    %c0_478 = arith.constant 0 : index
    %c0_479 = arith.constant 0 : index
    %582 = vector.load %arg10[%c1_477, %c0_478, %c0_479] : memref<18x32x128xf32, #tpu.memory_space<vmem>>, vector<1x32x128xf32>
    %583 = vector.shape_cast %582 : vector<1x32x128xf32> to vector<32x128xf32>
    %584 = arith.mulf %581, %583 : vector<32x128xf32>
    %585 = arith.addf %580, %584 : vector<32x128xf32>
    %c7_480 = arith.constant 7 : index
    %c129_481 = arith.constant 129 : index
    %586 = vector.load %arg12[%c7_480, %c129_481] : memref<48x384xf32, #tpu.memory_space<vmem>>, vector<32x128xf32>
    %c2_482 = arith.constant 2 : index
    %c0_483 = arith.constant 0 : index
    %c0_484 = arith.constant 0 : index
    %587 = vector.load %arg10[%c2_482, %c0_483, %c0_484] : memref<18x32x128xf32, #tpu.memory_space<vmem>>, vector<1x32x128xf32>
    %588 = vector.shape_cast %587 : vector<1x32x128xf32> to vector<32x128xf32>
    %589 = arith.mulf %586, %588 : vector<32x128xf32>
    %590 = arith.addf %585, %589 : vector<32x128xf32>
    %c8_485 = arith.constant 8 : index
    %c127_486 = arith.constant 127 : index
    %591 = vector.load %arg12[%c8_485, %c127_486] : memref<48x384xf32, #tpu.memory_space<vmem>>, vector<32x128xf32>
    %c3_487 = arith.constant 3 : index
    %c0_488 = arith.constant 0 : index
    %c0_489 = arith.constant 0 : index
    %592 = vector.load %arg10[%c3_487, %c0_488, %c0_489] : memref<18x32x128xf32, #tpu.memory_space<vmem>>, vector<1x32x128xf32>
    %593 = vector.shape_cast %592 : vector<1x32x128xf32> to vector<32x128xf32>
    %594 = arith.mulf %591, %593 : vector<32x128xf32>
    %595 = arith.addf %590, %594 : vector<32x128xf32>
    %c8_490 = arith.constant 8 : index
    %c128_491 = arith.constant 128 : index
    %596 = vector.load %arg12[%c8_490, %c128_491] : memref<48x384xf32, #tpu.memory_space<vmem>>, vector<32x128xf32>
    %c4_492 = arith.constant 4 : index
    %c0_493 = arith.constant 0 : index
    %c0_494 = arith.constant 0 : index
    %597 = vector.load %arg10[%c4_492, %c0_493, %c0_494] : memref<18x32x128xf32, #tpu.memory_space<vmem>>, vector<1x32x128xf32>
    %598 = vector.shape_cast %597 : vector<1x32x128xf32> to vector<32x128xf32>
    %599 = arith.mulf %596, %598 : vector<32x128xf32>
    %600 = arith.addf %595, %599 : vector<32x128xf32>
    %c8_495 = arith.constant 8 : index
    %c129_496 = arith.constant 129 : index
    %601 = vector.load %arg12[%c8_495, %c129_496] : memref<48x384xf32, #tpu.memory_space<vmem>>, vector<32x128xf32>
    %c5_497 = arith.constant 5 : index
    %c0_498 = arith.constant 0 : index
    %c0_499 = arith.constant 0 : index
    %602 = vector.load %arg10[%c5_497, %c0_498, %c0_499] : memref<18x32x128xf32, #tpu.memory_space<vmem>>, vector<1x32x128xf32>
    %603 = vector.shape_cast %602 : vector<1x32x128xf32> to vector<32x128xf32>
    %604 = arith.mulf %601, %603 : vector<32x128xf32>
    %605 = arith.addf %600, %604 : vector<32x128xf32>
    %c9_500 = arith.constant 9 : index
    %c127_501 = arith.constant 127 : index
    %606 = vector.load %arg12[%c9_500, %c127_501] : memref<48x384xf32, #tpu.memory_space<vmem>>, vector<32x128xf32>
    %c6_502 = arith.constant 6 : index
    %c0_503 = arith.constant 0 : index
    %c0_504 = arith.constant 0 : index
    %607 = vector.load %arg10[%c6_502, %c0_503, %c0_504] : memref<18x32x128xf32, #tpu.memory_space<vmem>>, vector<1x32x128xf32>
    %608 = vector.shape_cast %607 : vector<1x32x128xf32> to vector<32x128xf32>
    %609 = arith.mulf %606, %608 : vector<32x128xf32>
    %610 = arith.addf %605, %609 : vector<32x128xf32>
    %c9_505 = arith.constant 9 : index
    %c128_506 = arith.constant 128 : index
    %611 = vector.load %arg12[%c9_505, %c128_506] : memref<48x384xf32, #tpu.memory_space<vmem>>, vector<32x128xf32>
    %c7_507 = arith.constant 7 : index
    %c0_508 = arith.constant 0 : index
    %c0_509 = arith.constant 0 : index
    %612 = vector.load %arg10[%c7_507, %c0_508, %c0_509] : memref<18x32x128xf32, #tpu.memory_space<vmem>>, vector<1x32x128xf32>
    %613 = vector.shape_cast %612 : vector<1x32x128xf32> to vector<32x128xf32>
    %614 = arith.mulf %611, %613 : vector<32x128xf32>
    %615 = arith.addf %610, %614 : vector<32x128xf32>
    %c9_510 = arith.constant 9 : index
    %c129_511 = arith.constant 129 : index
    %616 = vector.load %arg12[%c9_510, %c129_511] : memref<48x384xf32, #tpu.memory_space<vmem>>, vector<32x128xf32>
    %c8_512 = arith.constant 8 : index
    %c0_513 = arith.constant 0 : index
    %c0_514 = arith.constant 0 : index
    %617 = vector.load %arg10[%c8_512, %c0_513, %c0_514] : memref<18x32x128xf32, #tpu.memory_space<vmem>>, vector<1x32x128xf32>
    %618 = vector.shape_cast %617 : vector<1x32x128xf32> to vector<32x128xf32>
    %619 = arith.mulf %616, %618 : vector<32x128xf32>
    %620 = arith.addf %615, %619 : vector<32x128xf32>
    %c6_515 = arith.constant 6 : index
    %c126_516 = arith.constant 126 : index
    %621 = vector.load %arg12[%c6_515, %c126_516] : memref<48x384xf32, #tpu.memory_space<vmem>>, vector<32x128xf32>
    %c9_517 = arith.constant 9 : index
    %c0_518 = arith.constant 0 : index
    %c0_519 = arith.constant 0 : index
    %622 = vector.load %arg10[%c9_517, %c0_518, %c0_519] : memref<18x32x128xf32, #tpu.memory_space<vmem>>, vector<1x32x128xf32>
    %623 = vector.shape_cast %622 : vector<1x32x128xf32> to vector<32x128xf32>
    %624 = arith.mulf %621, %623 : vector<32x128xf32>
    %625 = arith.addf %620, %624 : vector<32x128xf32>
    %c6_520 = arith.constant 6 : index
    %c128_521 = arith.constant 128 : index
    %626 = vector.load %arg12[%c6_520, %c128_521] : memref<48x384xf32, #tpu.memory_space<vmem>>, vector<32x128xf32>
    %c10_522 = arith.constant 10 : index
    %c0_523 = arith.constant 0 : index
    %c0_524 = arith.constant 0 : index
    %627 = vector.load %arg10[%c10_522, %c0_523, %c0_524] : memref<18x32x128xf32, #tpu.memory_space<vmem>>, vector<1x32x128xf32>
    %628 = vector.shape_cast %627 : vector<1x32x128xf32> to vector<32x128xf32>
    %629 = arith.mulf %626, %628 : vector<32x128xf32>
    %630 = arith.addf %625, %629 : vector<32x128xf32>
    %c6_525 = arith.constant 6 : index
    %c130_526 = arith.constant 130 : index
    %631 = vector.load %arg12[%c6_525, %c130_526] : memref<48x384xf32, #tpu.memory_space<vmem>>, vector<32x128xf32>
    %c11_527 = arith.constant 11 : index
    %c0_528 = arith.constant 0 : index
    %c0_529 = arith.constant 0 : index
    %632 = vector.load %arg10[%c11_527, %c0_528, %c0_529] : memref<18x32x128xf32, #tpu.memory_space<vmem>>, vector<1x32x128xf32>
    %633 = vector.shape_cast %632 : vector<1x32x128xf32> to vector<32x128xf32>
    %634 = arith.mulf %631, %633 : vector<32x128xf32>
    %635 = arith.addf %630, %634 : vector<32x128xf32>
    %c8_530 = arith.constant 8 : index
    %c126_531 = arith.constant 126 : index
    %636 = vector.load %arg12[%c8_530, %c126_531] : memref<48x384xf32, #tpu.memory_space<vmem>>, vector<32x128xf32>
    %c12_532 = arith.constant 12 : index
    %c0_533 = arith.constant 0 : index
    %c0_534 = arith.constant 0 : index
    %637 = vector.load %arg10[%c12_532, %c0_533, %c0_534] : memref<18x32x128xf32, #tpu.memory_space<vmem>>, vector<1x32x128xf32>
    %638 = vector.shape_cast %637 : vector<1x32x128xf32> to vector<32x128xf32>
    %639 = arith.mulf %636, %638 : vector<32x128xf32>
    %640 = arith.addf %635, %639 : vector<32x128xf32>
    %c8_535 = arith.constant 8 : index
    %c128_536 = arith.constant 128 : index
    %641 = vector.load %arg12[%c8_535, %c128_536] : memref<48x384xf32, #tpu.memory_space<vmem>>, vector<32x128xf32>
    %c13_537 = arith.constant 13 : index
    %c0_538 = arith.constant 0 : index
    %c0_539 = arith.constant 0 : index
    %642 = vector.load %arg10[%c13_537, %c0_538, %c0_539] : memref<18x32x128xf32, #tpu.memory_space<vmem>>, vector<1x32x128xf32>
    %643 = vector.shape_cast %642 : vector<1x32x128xf32> to vector<32x128xf32>
    %644 = arith.mulf %641, %643 : vector<32x128xf32>
    %645 = arith.addf %640, %644 : vector<32x128xf32>
    %c8_540 = arith.constant 8 : index
    %c130_541 = arith.constant 130 : index
    %646 = vector.load %arg12[%c8_540, %c130_541] : memref<48x384xf32, #tpu.memory_space<vmem>>, vector<32x128xf32>
    %c14_542 = arith.constant 14 : index
    %c0_543 = arith.constant 0 : index
    %c0_544 = arith.constant 0 : index
    %647 = vector.load %arg10[%c14_542, %c0_543, %c0_544] : memref<18x32x128xf32, #tpu.memory_space<vmem>>, vector<1x32x128xf32>
    %648 = vector.shape_cast %647 : vector<1x32x128xf32> to vector<32x128xf32>
    %649 = arith.mulf %646, %648 : vector<32x128xf32>
    %650 = arith.addf %645, %649 : vector<32x128xf32>
    %c10_545 = arith.constant 10 : index
    %c126_546 = arith.constant 126 : index
    %651 = vector.load %arg12[%c10_545, %c126_546] : memref<48x384xf32, #tpu.memory_space<vmem>>, vector<32x128xf32>
    %c15_547 = arith.constant 15 : index
    %c0_548 = arith.constant 0 : index
    %c0_549 = arith.constant 0 : index
    %652 = vector.load %arg10[%c15_547, %c0_548, %c0_549] : memref<18x32x128xf32, #tpu.memory_space<vmem>>, vector<1x32x128xf32>
    %653 = vector.shape_cast %652 : vector<1x32x128xf32> to vector<32x128xf32>
    %654 = arith.mulf %651, %653 : vector<32x128xf32>
    %655 = arith.addf %650, %654 : vector<32x128xf32>
    %c10_550 = arith.constant 10 : index
    %c128_551 = arith.constant 128 : index
    %656 = vector.load %arg12[%c10_550, %c128_551] : memref<48x384xf32, #tpu.memory_space<vmem>>, vector<32x128xf32>
    %c16_552 = arith.constant 16 : index
    %c0_553 = arith.constant 0 : index
    %c0_554 = arith.constant 0 : index
    %657 = vector.load %arg10[%c16_552, %c0_553, %c0_554] : memref<18x32x128xf32, #tpu.memory_space<vmem>>, vector<1x32x128xf32>
    %658 = vector.shape_cast %657 : vector<1x32x128xf32> to vector<32x128xf32>
    %659 = arith.mulf %656, %658 : vector<32x128xf32>
    %660 = arith.addf %655, %659 : vector<32x128xf32>
    %c10_555 = arith.constant 10 : index
    %c130_556 = arith.constant 130 : index
    %661 = vector.load %arg12[%c10_555, %c130_556] : memref<48x384xf32, #tpu.memory_space<vmem>>, vector<32x128xf32>
    %c17_557 = arith.constant 17 : index
    %c0_558 = arith.constant 0 : index
    %c0_559 = arith.constant 0 : index
    %662 = vector.load %arg10[%c17_557, %c0_558, %c0_559] : memref<18x32x128xf32, #tpu.memory_space<vmem>>, vector<1x32x128xf32>
    %663 = vector.shape_cast %662 : vector<1x32x128xf32> to vector<32x128xf32>
    %664 = arith.mulf %661, %663 : vector<32x128xf32>
    %665 = arith.addf %660, %664 : vector<32x128xf32>
    %666 = vector.extract_strided_slice %665 {offsets = [8, 0], sizes = [16, 128], strides = [1, 1]} : vector<32x128xf32> to vector<16x128xf32>
    %c0_560 = arith.constant 0 : index
    %c0_561 = arith.constant 0 : index
    %c0_562 = arith.constant 0 : index
    %c0_563 = arith.constant 0 : index
    %667 = vector.load %arg6[%c0_560, %c0_561, %c0_562, %c0_563] : memref<1x1x16x128xf32, #tpu.memory_space<vmem>>, vector<1x1x16x128xf32>
    %668 = vector.shape_cast %667 : vector<1x1x16x128xf32> to vector<16x128xf32>
    %669 = vector.shape_cast %666 : vector<16x128xf32> to vector<1x1x16x128xf32>
    tpu.vector_store %arg6[%c0_560, %c0_561, %c0_562, %c0_563], %669 {strides = array<i32>} : memref<1x1x16x128xf32, #tpu.memory_space<vmem>>, vector<1x1x16x128xf32>,
    return
  }
  func.func @transform_4(%arg0: i32, %arg1: i32) -> (i32, i32, i32, i32) {
    %c0_i32 = arith.constant 0 : i32
    %c0_i32_0 = arith.constant 0 : i32
    %c0_i32_1 = arith.constant 0 : i32
    return %arg0, %c0_i32, %arg1, %c0_i32_0 : i32, i32, i32, i32
  }
}

</mosaic_0001>

<llo_original>
// kernel: tpu_custom_call.1
$region0: #{tpu_custom_call.1}
  #allocation0 [shape = 'u32[]', space=smem, size = 0x4, offset = 0x4, fixed_abs, tag = 'smem constant byte address 0x4 - core index']
  #allocation1 [shape = 'u32[144,128]{1,0:T(1,128)}', space=vmem, size = 0x12000, scoped, tag = 'internal scratch']
  #allocation2 [shape = 'bf16[9,32,128]{2,1,0:T(16,128)(2,1)}', space=vmem, size = 0x12000, scoped, tag = 'scratch operand']
  #allocation3 [shape = 'bf16[9,32,128]{2,1,0:T(16,128)(2,1)}', space=vmem, size = 0x12000, scoped, tag = 'scratch operand']
  #allocation4 [shape = 'bf16[2,32,128]{2,1,0:T(16,128)(2,1)}', space=vmem, size = 0x4000, scoped, tag = 'scratch operand']
  #allocation5 [shape = 'f32[18,32,128]{2,1,0:T(8,128)}', space=vmem, size = 0x48000, scoped, tag = 'scratch operand']
  #allocation6 [shape = 'f32[32,128]{1,0:T(8,128)}', space=vmem, size = 0x4000, scoped, tag = 'scratch operand']
  #allocation7 [shape = 'f32[48,384]{1,0:T(8,128)}', space=vmem, size = 0x12000, scoped, tag = 'scratch operand']
  #allocation8 [shape = 's32[4]{0}', space=sflag, size = 0x10, scoped, tag = 'scratch operand']
  #allocation11 [shape = 's32[]', space=sflag, size = 0x4, offset = 0, fixed_abs, tag = 'sflag constant byte address 0x0 - dummy sync flag']
  #allocation12 [shape = 's32[]', space=sflag, size = 0x4, offset = 0, fixed_abs, tag = 'sflag constant byte address 0x0 - dummy sync flag']
  #allocation13 [shape = 'u32[]', space=smem, size = 0x4, offset = 0x44, fixed_abs, tag = 'smem constant byte address 0x44 - assertion arg 0']
  #allocation14 [shape = 'u32[]', space=smem, size = 0x4, offset = 0x48, fixed_abs, tag = 'smem constant byte address 0x48 - assertion arg 1']
  #allocation15 [shape = 's32[]', space=sflag, size = 0x4, offset = 0, fixed_abs, tag = 'sflag constant byte address 0x0 - dummy sync flag']
  #allocation16 [shape = 's32[]', space=sflag, size = 0x4, offset = 0, fixed_abs, tag = 'sflag constant byte address 0x0 - dummy sync flag']
  #allocation17 [shape = 's32[]', space=sflag, size = 0x4, offset = 0, fixed_abs, tag = 'sflag constant byte address 0x0 - dummy sync flag']
  #allocation18 [shape = 's32[]', space=sflag, size = 0x4, offset = 0, fixed_abs, tag = 'sflag constant byte address 0x0 - dummy sync flag']
  #allocation19 [shape = 's32[]', space=sflag, size = 0x4, offset = 0, fixed_abs, tag = 'sflag constant byte address 0x0 - dummy sync flag']
  #allocation20 [shape = 's32[]', space=sflag, size = 0x4, offset = 0, fixed_abs, tag = 'sflag constant byte address 0x0 - dummy sync flag']
  %s0 = inlined_call_operand.hbm [shape: bf16[2,9,32,128], index: 0, kind: input, shape index: {}]
  %s1 = inlined_call_operand.hbm [shape: bf16[2,9,32,128], index: 1, kind: input, shape index: {}]
  %s2 = inlined_call_operand.hbm [shape: bf16[2,2,32,128], index: 2, kind: input, shape index: {}]
  %s3 = inlined_call_operand.hbm [shape: f32[2,1,32,128], index: 3, kind: input, shape index: {}]
  %s4 = inlined_call_operand.hbm [shape: f32[2,1,16,128], index: 4, kind: output, shape index: {}]
  %s5 = sld [smem:[#allocation0]]
  $region41: #{tpu_custom_call.1} parent=0
    _
  %s7 = ssub.s32 1, %s5
  %s8 = scalar_select 0, %s7, %s5
  $region1: #{tpu_custom_call.1} parent=0
    #allocation9 [shape = 'u8[16384]{0}', space=vmem, size = 0x4000, scoped, tag = 'output window, operand 0']
    #allocation10 [shape = 's32[2]{0}', space=sflag, size = 0x8, scoped, tag = 'scoped memory for tpu_custom_call.1']
    %9 = vsyncpa [#allocation10], 0
    %s10 = scalar_lea.sflag [#allocation10], 1
    %11 = vsyncpa %s10, 0
    loop: start=0, step=1, limit=3
    $region2: #{tpu_custom_call.1} parent=1 // loop_pre_header
      _
    $region3: #{tpu_custom_call.1} parent=1 // loop_header
      %s13 = sphi 0, %s17
      %p14 = scmp.ge.s32.totalorder %s13, 3
      %s19 = sphi 0, %s29
      %s20 = sphi 0, %s25
      %s21 = sphi 0, %s19
      %s22 = sphi 0, %s20
      %s34 = sphi 0, %s36
      %s37 = sphi 0, %s34
      %s47 = sphi 0, %s37
    $region4: #{tpu_custom_call.1} parent=1 // loop_header_branch
      %16 = sbr.rel (%p14) target = $region8
    $region5: #{tpu_custom_call.1} parent=1 // loop_body
      %s18 = ssub.s32 %s13, 1
      %s23 = sadd.s32 1, %s20
      %p24 = scmp.ge.s32.totalorder %s23, 1
      %s25 = scalar_select %p24, 0, %s23
      %s26 = sadd.s32 1, %s19
      %s27 = scalar_select %p24, %s26, %s19
      %p28 = scmp.ge.s32.totalorder %s27, 2
      %s29 = scalar_select %p28, 0, %s27
      %s30 = ssub.s32 %s19, %s29
      %s31 = ssub.s32 %s20, %s25
      %s32 = sor.u32 %s30, %s31
      %p33 = scmp.eq.s32.totalorder %s32, 0
      %s35 = sadd.s32 %s34, 1
      %s36 = scalar_select %p33, %s34, %s35
      %p38 = pneg %p33
      %p39 = scmp.eq.s32.totalorder %s13, 1
      %p40 = por %p38, %p39
      %p41 = scmp.ne.s32.totalorder %s34, %s37
      %p42 = scmp.eq.s32.totalorder %s13, 0
      %p43 = por %p41, %p42
      %p44 = scmp.ne.s32.totalorder %s34, %s37
      %p45 = scmp.eq.s32.totalorder %s18, 1
      %p46 = por %p44, %p45
      %p48 = scmp.ne.s32.totalorder %s37, %s47
      %p49 = scmp.eq.s32.totalorder %s18, 0
      %p50 = por %p48, %p49
      %p51 = scmp.lt.s32.totalorder %s13, 2
      // Predicated region
      $region9: #{tpu_custom_call.1} parent=5 // pred_check
        %p52 = pneg %p51
      $region10: #{tpu_custom_call.1} parent=5 // pred_check_branch
        %54 = sbr.rel (%p52) target = $region12
      $region11: #{tpu_custom_call.1} parent=5 // pred_region
        %p55 = pneg %p43
        %p56 = pneg %p40
        %s57 = sand.u32 %s34, 1
        %s58 = scalar_lea.sflag [#allocation10], %s57
        %s59 = sand.u32 %s34, 1
        %s60 = smul.addr %s59, 16
        %s61 = scalar_lea.vmem [#allocation9], %s60
        %s62 = smul.u32 2, %s20
        %s63 = smul.u32 %s20, 16
        %s64 = sshra.s32 %s63, 3
        %s65 = sand.u32 %s63, 7
        %s66 = smul.u32 %s19, 36
        %s67 = sadd.s32 %s64, %s66
        %s68 = smul.addr %s67, 64
        %s69 = scalar_lea.hbm %s0, %s68
        // Predicated region
        $region13: #{tpu_custom_call.1} parent=11 // pred_check
          _
        $region14: #{tpu_custom_call.1} parent=11 // pred_check_branch
          %71 = sbr.rel target = $region16
        $region15: #{tpu_custom_call.1} parent=11 // pred_region
          %72 = sst [smem:[#allocation13]] [#allocation12]
          %73 = sst [smem:[#allocation14]] [#allocation11]
        $region16: #{tpu_custom_call.1} parent=11 // pred_fallthru
          _
        %75 = shalt.err (0)
        %s77 = sshll.u32 [#allocation2], 4
        %s78 = int_to_ptr.vmem [resolvable:$true] %s77
        %80 = dma.hbm_to_vmem [thread:$0]  %s69, 2304, %s78, [#allocation8]
        %s81 = smul.u32 %s19, 8
        %s82 = sadd.s32 %s64, %s81
        %s83 = smul.addr %s82, 64
        %s84 = scalar_lea.hbm %s2, %s83
        %s85 = scalar_lea.sflag [#allocation8], 2
        // Predicated region
        $region17: #{tpu_custom_call.1} parent=11 // pred_check
          _
        $region18: #{tpu_custom_call.1} parent=11 // pred_check_branch
          %87 = sbr.rel target = $region20
        $region19: #{tpu_custom_call.1} parent=11 // pred_region
          %88 = sst [smem:[#allocation13]] [#allocation16]
          %89 = sst [smem:[#allocation14]] [#allocation15]
        $region20: #{tpu_custom_call.1} parent=11 // pred_fallthru
          _
        %91 = shalt.err (0)
        %s93 = sshll.u32 [#allocation4], 4
        %s94 = int_to_ptr.vmem [resolvable:$true] %s93
        %96 = dma.hbm_to_vmem [thread:$0]  %s84, 512, %s94, %s85
        %s97 = smul.addr %s67, 64
        %s98 = scalar_lea.hbm %s1, %s97
        %s99 = scalar_lea.sflag [#allocation8], 1
        // Predicated region
        $region21: #{tpu_custom_call.1} parent=11 // pred_check
          _
        $region22: #{tpu_custom_call.1} parent=11 // pred_check_branch
          %101 = sbr.rel target = $region24
        $region23: #{tpu_custom_call.1} parent=11 // pred_region
          %102 = sst [smem:[#allocation13]] [#allocation18]
          %103 = sst [smem:[#allocation14]] [#allocation17]
        $region24: #{tpu_custom_call.1} parent=11 // pred_fallthru
          _
        %105 = shalt.err (0)
        %s107 = sshll.u32 [#allocation3], 4
        %s108 = int_to_ptr.vmem [resolvable:$true] %s107
        %110 = dma.hbm_to_vmem [thread:$0]  %s98, 2304, %s108, %s99
        %s111 = smul.u32 %s19, 32
        %s112 = sadd.s32 %s63, %s111
        %s113 = smul.addr %s112, 16
        %s114 = scalar_lea.hbm %s3, %s113
        %s115 = scalar_lea.sflag [#allocation8], 3
        // Predicated region
        $region25: #{tpu_custom_call.1} parent=11 // pred_check
          _
        $region26: #{tpu_custom_call.1} parent=11 // pred_check_branch
          %117 = sbr.rel target = $region28
        $region27: #{tpu_custom_call.1} parent=11 // pred_region
          %118 = sst [smem:[#allocation13]] [#allocation20]
          %119 = sst [smem:[#allocation14]] [#allocation19]
        $region28: #{tpu_custom_call.1} parent=11 // pred_fallthru
          _
        %121 = shalt.err (0)
        %s123 = sshll.u32 [#allocation6], 4
        %s124 = int_to_ptr.vmem [resolvable:$true] %s123
        %126 = dma.hbm_to_vmem [thread:$0]  %s114, 512, %s124, %s115
        %127 = vst [vmem:[#allocation7] sm:$0xff] 0.0
        %128 = vst [vmem:[#allocation7 + $0x8] sm:$0xff] 0.0
        %129 = vst [vmem:[#allocation7 + $0x10] sm:$0xff] 0.0
        %130 = vst [vmem:[#allocation7 + $0x78] sm:$0xff] 0.0
        %131 = vst [vmem:[#allocation7 + $0x80] sm:$0xff] 0.0
        %132 = vst [vmem:[#allocation7 + $0x88] sm:$0xff] 0.0
        %133 = vst [vmem:[#allocation7 + $0x18] sm:$0xff] 0.0
        %134 = vst [vmem:[#allocation7 + $0x30] sm:$0xff] 0.0
        %135 = vst [vmem:[#allocation7 + $0x48] sm:$0xff] 0.0
        %136 = vst [vmem:[#allocation7 + $0x60] sm:$0xff] 0.0
        %137 = vst [vmem:[#allocation7 + $0x28] sm:$0xff] 0.0
        %138 = vst [vmem:[#allocation7 + $0x40] sm:$0xff] 0.0
        %139 = vst [vmem:[#allocation7 + $0x58] sm:$0xff] 0.0
        %140 = vst [vmem:[#allocation7 + $0x70] sm:$0xff] 0.0
        %s141 = smul.u32 4, 9
        %s142 = smul.u32 %s141, 4
        %s143 = smul.u32 %s142, 1
        %s144 = sshll.u32 %s143, 4
        %145 = dma.done [#allocation8], %s144
        %s146 = smul.u32 4, 2
        %s147 = smul.u32 %s146, 4
        %s148 = smul.u32 %s147, 1
        %s149 = sshll.u32 %s148, 4
        %150 = dma.done %s85, %s149
        %v151 = vld [vmem:[#allocation2] sm:$0xff]
        %v152 = vld [vmem:[#allocation2 + $0x8] sm:$0xff]
        %v153 = vunpack.c.l.bf16 %v151
        %v154 = vunpack.c.h.bf16 %v151
        %v155 = vunpack.c.l.bf16 %v152
        %v156 = vunpack.c.h.bf16 %v152
        %s157 = scalar_lea.vmem [#allocation2], 16
        %v158 = vld [vmem:[%s157] sm:$0xff]
        %v159 = vld [vmem:[%s157 + $0x8] sm:$0xff]
        %v160 = vunpack.c.l.bf16 %v158
        %v161 = vunpack.c.h.bf16 %v158
        %v162 = vunpack.c.l.bf16 %v159
        %v163 = vunpack.c.h.bf16 %v159
        %v164 = vmax.f32 %v153, %v160
        %v165 = vmax.f32 %v154, %v161
        %v166 = vmax.f32 %v155, %v162
        %v167 = vmax.f32 %v156, %v163
        %s168 = scalar_lea.vmem [#allocation2], 32
        %v169 = vld [vmem:[%s168] sm:$0xff]
        %v170 = vld [vmem:[%s168 + $0x8] sm:$0xff]
        %v171 = vunpack.c.l.bf16 %v169
        %v172 = vunpack.c.h.bf16 %v169
        %v173 = vunpack.c.l.bf16 %v170
        %v174 = vunpack.c.h.bf16 %v170
        %v175 = vmax.f32 %v164, %v171
        %v176 = vmax.f32 %v165, %v172
        %v177 = vmax.f32 %v166, %v173
        %v178 = vmax.f32 %v167, %v174
        %s179 = scalar_lea.vmem [#allocation2], 48
        %v180 = vld [vmem:[%s179] sm:$0xff]
        %v181 = vld [vmem:[%s179 + $0x8] sm:$0xff]
        %v182 = vunpack.c.l.bf16 %v180
        %v183 = vunpack.c.h.bf16 %v180
        %v184 = vunpack.c.l.bf16 %v181
        %v185 = vunpack.c.h.bf16 %v181
        %v186 = vmax.f32 %v175, %v182
        %v187 = vmax.f32 %v176, %v183
        %v188 = vmax.f32 %v177, %v184
        %v189 = vmax.f32 %v178, %v185
        %s190 = scalar_lea.vmem [#allocation2], 64
        %v191 = vld [vmem:[%s190] sm:$0xff]
        %v192 = vld [vmem:[%s190 + $0x8] sm:$0xff]
        %v193 = vunpack.c.l.bf16 %v191
        %v194 = vunpack.c.h.bf16 %v191
        %v195 = vunpack.c.l.bf16 %v192
        %v196 = vunpack.c.h.bf16 %v192
        %v197 = vmax.f32 %v186, %v193
        %v198 = vmax.f32 %v187, %v194
        %v199 = vmax.f32 %v188, %v195
        %v200 = vmax.f32 %v189, %v196
        %s201 = scalar_lea.vmem [#allocation2], 80
        %v202 = vld [vmem:[%s201] sm:$0xff]
        %v203 = vld [vmem:[%s201 + $0x8] sm:$0xff]
        %v204 = vunpack.c.l.bf16 %v202
        %v205 = vunpack.c.h.bf16 %v202
        %v206 = vunpack.c.l.bf16 %v203
        %v207 = vunpack.c.h.bf16 %v203
        %v208 = vmax.f32 %v197, %v204
        %v209 = vmax.f32 %v198, %v205
        %v210 = vmax.f32 %v199, %v206
        %v211 = vmax.f32 %v200, %v207
        %s212 = scalar_lea.vmem [#allocation2], 96
        %v213 = vld [vmem:[%s212] sm:$0xff]
        %v214 = vld [vmem:[%s212 + $0x8] sm:$0xff]
        %v215 = vunpack.c.l.bf16 %v213
        %v216 = vunpack.c.h.bf16 %v213
        %v217 = vunpack.c.l.bf16 %v214
        %v218 = vunpack.c.h.bf16 %v214
        %v219 = vmax.f32 %v208, %v215
        %v220 = vmax.f32 %v209, %v216
        %v221 = vmax.f32 %v210, %v217
        %v222 = vmax.f32 %v211, %v218
        %s223 = scalar_lea.vmem [#allocation2], 112
        %v224 = vld [vmem:[%s223] sm:$0xff]
        %v225 = vld [vmem:[%s223 + $0x8] sm:$0xff]
        %v226 = vunpack.c.l.bf16 %v224
        %v227 = vunpack.c.h.bf16 %v224
        %v228 = vunpack.c.l.bf16 %v225
        %v229 = vunpack.c.h.bf16 %v225
        %v230 = vmax.f32 %v219, %v226
        %v231 = vmax.f32 %v220, %v227
        %v232 = vmax.f32 %v221, %v228
        %v233 = vmax.f32 %v222, %v229
        %s234 = scalar_lea.vmem [#allocation2], 128
        %v235 = vld [vmem:[%s234] sm:$0xff]
        %v236 = vld [vmem:[%s234 + $0x8] sm:$0xff]
        %v237 = vunpack.c.l.bf16 %v235
        %v238 = vunpack.c.h.bf16 %v235
        %v239 = vunpack.c.l.bf16 %v236
        %v240 = vunpack.c.h.bf16 %v236
        %v241 = vmax.f32 %v230, %v237
        %v242 = vmax.f32 %v231, %v238
        %v243 = vmax.f32 %v232, %v239
        %v244 = vmax.f32 %v233, %v240
        %v245 = vsub.f32 %v153, %v241
        %v246 = vsub.f32 %v154, %v242
        %v247 = vsub.f32 %v155, %v243
        %v248 = vsub.f32 %v156, %v244
        %v249 = vmul.f32 %v245, 1.442695
        %v250 = vpow.pop %v249
        %v251 = vmul.f32 %v246, 1.442695
        %v252 = vpow.pop %v251
        %v253 = vmul.f32 %v247, 1.442695
        %v254 = vpow.pop %v253
        %v255 = vmul.f32 %v248, 1.442695
        %v256 = vpow.pop %v255
        %257 = vst [vmem:[#allocation5] sm:$0xff] %v250
        %258 = vst [vmem:[#allocation5 + $0x8] sm:$0xff] %v252
        %259 = vst [vmem:[#allocation5 + $0x10] sm:$0xff] %v254
        %260 = vst [vmem:[#allocation5 + $0x18] sm:$0xff] %v256
        %v261 = vld [vmem:[%s157] sm:$0xff]
        %v262 = vld [vmem:[%s157 + $0x8] sm:$0xff]
        %v263 = vunpack.c.l.bf16 %v261
        %v264 = vunpack.c.h.bf16 %v261
        %v265 = vunpack.c.l.bf16 %v262
        %v266 = vunpack.c.h.bf16 %v262
        %v267 = vsub.f32 %v263, %v241
        %v268 = vsub.f32 %v264, %v242
        %v269 = vsub.f32 %v265, %v243
        %v270 = vsub.f32 %v266, %v244
        %v271 = vmul.f32 %v267, 1.442695
        %v272 = vpow.pop %v271
        %v273 = vmul.f32 %v268, 1.442695
        %v274 = vpow.pop %v273
        %v275 = vmul.f32 %v269, 1.442695
        %v276 = vpow.pop %v275
        %v277 = vmul.f32 %v270, 1.442695
        %v278 = vpow.pop %v277
        %s279 = scalar_lea.vmem [#allocation5], 32
        %280 = vst [vmem:[%s279] sm:$0xff] %v272
        %281 = vst [vmem:[%s279 + $0x8] sm:$0xff] %v274
        %282 = vst [vmem:[%s279 + $0x10] sm:$0xff] %v276
        %283 = vst [vmem:[%s279 + $0x18] sm:$0xff] %v278
        %v284 = vadd.f32 %v250, %v272
        %v285 = vadd.f32 %v252, %v274
        %v286 = vadd.f32 %v254, %v276
        %v287 = vadd.f32 %v256, %v278
        %v288 = vld [vmem:[%s168] sm:$0xff]
        %v289 = vld [vmem:[%s168 + $0x8] sm:$0xff]
        %v290 = vunpack.c.l.bf16 %v288
        %v291 = vunpack.c.h.bf16 %v288
        %v292 = vunpack.c.l.bf16 %v289
        %v293 = vunpack.c.h.bf16 %v289
        %v294 = vsub.f32 %v290, %v241
        %v295 = vsub.f32 %v291, %v242
        %v296 = vsub.f32 %v292, %v243
        %v297 = vsub.f32 %v293, %v244
        %v298 = vmul.f32 %v294, 1.442695
        %v299 = vpow.pop %v298
        %v300 = vmul.f32 %v295, 1.442695
        %v301 = vpow.pop %v300
        %v302 = vmul.f32 %v296, 1.442695
        %v303 = vpow.pop %v302
        %v304 = vmul.f32 %v297, 1.442695
        %v305 = vpow.pop %v304
        %s306 = scalar_lea.vmem [#allocation5], 64
        %307 = vst [vmem:[%s306] sm:$0xff] %v299
        %308 = vst [vmem:[%s306 + $0x8] sm:$0xff] %v301
        %309 = vst [vmem:[%s306 + $0x10] sm:$0xff] %v303
        %310 = vst [vmem:[%s306 + $0x18] sm:$0xff] %v305
        %v311 = vadd.f32 %v284, %v299
        %v312 = vadd.f32 %v285, %v301
        %v313 = vadd.f32 %v286, %v303
        %v314 = vadd.f32 %v287, %v305
        %v315 = vld [vmem:[%s179] sm:$0xff]
        %v316 = vld [vmem:[%s179 + $0x8] sm:$0xff]
        %v317 = vunpack.c.l.bf16 %v315
        %v318 = vunpack.c.h.bf16 %v315
        %v319 = vunpack.c.l.bf16 %v316
        %v320 = vunpack.c.h.bf16 %v316
        %v321 = vsub.f32 %v317, %v241
        %v322 = vsub.f32 %v318, %v242
        %v323 = vsub.f32 %v319, %v243
        %v324 = vsub.f32 %v320, %v244
        %v325 = vmul.f32 %v321, 1.442695
        %v326 = vpow.pop %v325
        %v327 = vmul.f32 %v322, 1.442695
        %v328 = vpow.pop %v327
        %v329 = vmul.f32 %v323, 1.442695
        %v330 = vpow.pop %v329
        %v331 = vmul.f32 %v324, 1.442695
        %v332 = vpow.pop %v331
        %s333 = scalar_lea.vmem [#allocation5], 96
        %334 = vst [vmem:[%s333] sm:$0xff] %v326
        %335 = vst [vmem:[%s333 + $0x8] sm:$0xff] %v328
        %336 = vst [vmem:[%s333 + $0x10] sm:$0xff] %v330
        %337 = vst [vmem:[%s333 + $0x18] sm:$0xff] %v332
        %v338 = vadd.f32 %v311, %v326
        %v339 = vadd.f32 %v312, %v328
        %v340 = vadd.f32 %v313, %v330
        %v341 = vadd.f32 %v314, %v332
        %v342 = vld [vmem:[%s190] sm:$0xff]
        %v343 = vld [vmem:[%s190 + $0x8] sm:$0xff]
        %v344 = vunpack.c.l.bf16 %v342
        %v345 = vunpack.c.h.bf16 %v342
        %v346 = vunpack.c.l.bf16 %v343
        %v347 = vunpack.c.h.bf16 %v343
        %v348 = vsub.f32 %v344, %v241
        %v349 = vsub.f32 %v345, %v242
        %v350 = vsub.f32 %v346, %v243
        %v351 = vsub.f32 %v347, %v244
        %v352 = vmul.f32 %v348, 1.442695
        %v353 = vpow.pop %v352
        %v354 = vmul.f32 %v349, 1.442695
        %v355 = vpow.pop %v354
        %v356 = vmul.f32 %v350, 1.442695
        %v357 = vpow.pop %v356
        %v358 = vmul.f32 %v351, 1.442695
        %v359 = vpow.pop %v358
        %s360 = scalar_lea.vmem [#allocation5], 128
        %361 = vst [vmem:[%s360] sm:$0xff] %v353
        %362 = vst [vmem:[%s360 + $0x8] sm:$0xff] %v355
        %363 = vst [vmem:[%s360 + $0x10] sm:$0xff] %v357
        %364 = vst [vmem:[%s360 + $0x18] sm:$0xff] %v359
        %v365 = vadd.f32 %v338, %v353
        %v366 = vadd.f32 %v339, %v355
        %v367 = vadd.f32 %v340, %v357
        %v368 = vadd.f32 %v341, %v359
        %v369 = vld [vmem:[%s201] sm:$0xff]
        %v370 = vld [vmem:[%s201 + $0x8] sm:$0xff]
        %v371 = vunpack.c.l.bf16 %v369
        %v372 = vunpack.c.h.bf16 %v369
        %v373 = vunpack.c.l.bf16 %v370
        %v374 = vunpack.c.h.bf16 %v370
        %v375 = vsub.f32 %v371, %v241
        %v376 = vsub.f32 %v372, %v242
        %v377 = vsub.f32 %v373, %v243
        %v378 = vsub.f32 %v374, %v244
        %v379 = vmul.f32 %v375, 1.442695
        %v380 = vpow.pop %v379
        %v381 = vmul.f32 %v376, 1.442695
        %v382 = vpow.pop %v381
        %v383 = vmul.f32 %v377, 1.442695
        %v384 = vpow.pop %v383
        %v385 = vmul.f32 %v378, 1.442695
        %v386 = vpow.pop %v385
        %s387 = scalar_lea.vmem [#allocation5], 160
        %388 = vst [vmem:[%s387] sm:$0xff] %v380
        %389 = vst [vmem:[%s387 + $0x8] sm:$0xff] %v382
        %390 = vst [vmem:[%s387 + $0x10] sm:$0xff] %v384
        %391 = vst [vmem:[%s387 + $0x18] sm:$0xff] %v386
        %v392 = vadd.f32 %v365, %v380
        %v393 = vadd.f32 %v366, %v382
        %v394 = vadd.f32 %v367, %v384
        %v395 = vadd.f32 %v368, %v386
        %v396 = vld [vmem:[%s212] sm:$0xff]
        %v397 = vld [vmem:[%s212 + $0x8] sm:$0xff]
        %v398 = vunpack.c.l.bf16 %v396
        %v399 = vunpack.c.h.bf16 %v396
        %v400 = vunpack.c.l.bf16 %v397
        %v401 = vunpack.c.h.bf16 %v397
        %v402 = vsub.f32 %v398, %v241
        %v403 = vsub.f32 %v399, %v242
        %v404 = vsub.f32 %v400, %v243
        %v405 = vsub.f32 %v401, %v244
        %v406 = vmul.f32 %v402, 1.442695
        %v407 = vpow.pop %v406
        %v408 = vmul.f32 %v403, 1.442695
        %v409 = vpow.pop %v408
        %v410 = vmul.f32 %v404, 1.442695
        %v411 = vpow.pop %v410
        %v412 = vmul.f32 %v405, 1.442695
        %v413 = vpow.pop %v412
        %s414 = scalar_lea.vmem [#allocation5], 192
        %415 = vst [vmem:[%s414] sm:$0xff] %v407
        %416 = vst [vmem:[%s414 + $0x8] sm:$0xff] %v409
        %417 = vst [vmem:[%s414 + $0x10] sm:$0xff] %v411
        %418 = vst [vmem:[%s414 + $0x18] sm:$0xff] %v413
        %v419 = vadd.f32 %v392, %v407
        %v420 = vadd.f32 %v393, %v409
        %v421 = vadd.f32 %v394, %v411
        %v422 = vadd.f32 %v395, %v413
        %v423 = vld [vmem:[%s223] sm:$0xff]
        %v424 = vld [vmem:[%s223 + $0x8] sm:$0xff]
        %v425 = vunpack.c.l.bf16 %v423
        %v426 = vunpack.c.h.bf16 %v423
        %v427 = vunpack.c.l.bf16 %v424
        %v428 = vunpack.c.h.bf16 %v424
        %v429 = vsub.f32 %v425, %v241
        %v430 = vsub.f32 %v426, %v242
        %v431 = vsub.f32 %v427, %v243
        %v432 = vsub.f32 %v428, %v244
        %v433 = vmul.f32 %v429, 1.442695
        %v434 = vpow.pop %v433
        %v435 = vmul.f32 %v430, 1.442695
        %v436 = vpow.pop %v435
        %v437 = vmul.f32 %v431, 1.442695
        %v438 = vpow.pop %v437
        %v439 = vmul.f32 %v432, 1.442695
        %v440 = vpow.pop %v439
        %s441 = scalar_lea.vmem [#allocation5], 224
        %442 = vst [vmem:[%s441] sm:$0xff] %v434
        %443 = vst [vmem:[%s441 + $0x8] sm:$0xff] %v436
        %444 = vst [vmem:[%s441 + $0x10] sm:$0xff] %v438
        %445 = vst [vmem:[%s441 + $0x18] sm:$0xff] %v440
        %v446 = vadd.f32 %v419, %v434
        %v447 = vadd.f32 %v420, %v436
        %v448 = vadd.f32 %v421, %v438
        %v449 = vadd.f32 %v422, %v440
        %v450 = vld [vmem:[%s234] sm:$0xff]
        %v451 = vld [vmem:[%s234 + $0x8] sm:$0xff]
        %v452 = vunpack.c.l.bf16 %v450
        %v453 = vunpack.c.h.bf16 %v450
        %v454 = vunpack.c.l.bf16 %v451
        %v455 = vunpack.c.h.bf16 %v451
        %v456 = vsub.f32 %v452, %v241
        %v457 = vsub.f32 %v453, %v242
        %v458 = vsub.f32 %v454, %v243
        %v459 = vsub.f32 %v455, %v244
        %v460 = vmul.f32 %v456, 1.442695
        %v461 = vpow.pop %v460
        %v462 = vmul.f32 %v457, 1.442695
        %v463 = vpow.pop %v462
        %v464 = vmul.f32 %v458, 1.442695
        %v465 = vpow.pop %v464
        %v466 = vmul.f32 %v459, 1.442695
        %v467 = vpow.pop %v466
        %s468 = scalar_lea.vmem [#allocation5], 256
        %469 = vst [vmem:[%s468] sm:$0xff] %v461
        %470 = vst [vmem:[%s468 + $0x8] sm:$0xff] %v463
        %471 = vst [vmem:[%s468 + $0x10] sm:$0xff] %v465
        %472 = vst [vmem:[%s468 + $0x18] sm:$0xff] %v467
        %v473 = vadd.f32 %v446, %v461
        %v474 = vadd.f32 %v447, %v463
        %v475 = vadd.f32 %v448, %v465
        %v476 = vadd.f32 %v449, %v467
        %v477 = vrcp.pop %v473
        %v478 = vrcp.pop %v474
        %v479 = vrcp.pop %v475
        %v480 = vrcp.pop %v476
        %v481 = vmul.f32 %v473, %v477
        %v482 = vmul.f32 %v474, %v478
        %v483 = vmul.f32 %v475, %v479
        %v484 = vmul.f32 %v476, %v480
        %v485 = vsub.f32 2.0, %v481
        %v486 = vsub.f32 2.0, %v482
        %v487 = vsub.f32 2.0, %v483
        %v488 = vsub.f32 2.0, %v484
        %v489 = vmul.f32 %v477, %v485
        %v490 = vmul.f32 %v478, %v486
        %v491 = vmul.f32 %v479, %v487
        %v492 = vmul.f32 %v480, %v488
        %v493 = vld [vmem:[#allocation4] sm:$0xff]
        %v494 = vld [vmem:[#allocation4 + $0x8] sm:$0xff]
        %v495 = vunpack.c.l.bf16 %v493
        %v496 = vunpack.c.h.bf16 %v493
        %v497 = vunpack.c.l.bf16 %v494
        %v498 = vunpack.c.h.bf16 %v494
        %v499 = vmul.f32 %v495, %v489
        %v500 = vmul.f32 %v496, %v490
        %v501 = vmul.f32 %v497, %v491
        %v502 = vmul.f32 %v498, %v492
        %v503 = vld [vmem:[#allocation5] sm:$0xff]
        %v504 = vld [vmem:[#allocation5 + $0x8] sm:$0xff]
        %v505 = vld [vmem:[#allocation5 + $0x10] sm:$0xff]
        %v506 = vld [vmem:[#allocation5 + $0x18] sm:$0xff]
        %v507 = vmul.f32 %v503, %v499
        %v508 = vmul.f32 %v504, %v500
        %v509 = vmul.f32 %v505, %v501
        %v510 = vmul.f32 %v506, %v502
        %511 = vst [vmem:[#allocation5] sm:$0xff] %v507
        %512 = vst [vmem:[#allocation5 + $0x8] sm:$0xff] %v508
        %513 = vst [vmem:[#allocation5 + $0x10] sm:$0xff] %v509
        %514 = vst [vmem:[#allocation5 + $0x18] sm:$0xff] %v510
        %v515 = vld [vmem:[%s279] sm:$0xff]
        %v516 = vld [vmem:[%s279 + $0x8] sm:$0xff]
        %v517 = vld [vmem:[%s279 + $0x10] sm:$0xff]
        %v518 = vld [vmem:[%s279 + $0x18] sm:$0xff]
        %v519 = vmul.f32 %v515, %v499
        %v520 = vmul.f32 %v516, %v500
        %v521 = vmul.f32 %v517, %v501
        %v522 = vmul.f32 %v518, %v502
        %523 = vst [vmem:[%s279] sm:$0xff] %v519
        %524 = vst [vmem:[%s279 + $0x8] sm:$0xff] %v520
        %525 = vst [vmem:[%s279 + $0x10] sm:$0xff] %v521
        %526 = vst [vmem:[%s279 + $0x18] sm:$0xff] %v522
        %v527 = vld [vmem:[%s306] sm:$0xff]
        %v528 = vld [vmem:[%s306 + $0x8] sm:$0xff]
        %v529 = vld [vmem:[%s306 + $0x10] sm:$0xff]
        %v530 = vld [vmem:[%s306 + $0x18] sm:$0xff]
        %v531 = vmul.f32 %v527, %v499
        %v532 = vmul.f32 %v528, %v500
        %v533 = vmul.f32 %v529, %v501
        %v534 = vmul.f32 %v530, %v502
        %535 = vst [vmem:[%s306] sm:$0xff] %v531
        %536 = vst [vmem:[%s306 + $0x8] sm:$0xff] %v532
        %537 = vst [vmem:[%s306 + $0x10] sm:$0xff] %v533
        %538 = vst [vmem:[%s306 + $0x18] sm:$0xff] %v534
        %v539 = vld [vmem:[%s333] sm:$0xff]
        %v540 = vld [vmem:[%s333 + $0x8] sm:$0xff]
        %v541 = vld [vmem:[%s333 + $0x10] sm:$0xff]
        %v542 = vld [vmem:[%s333 + $0x18] sm:$0xff]
        %v543 = vmul.f32 %v539, %v499
        %v544 = vmul.f32 %v540, %v500
        %v545 = vmul.f32 %v541, %v501
        %v546 = vmul.f32 %v542, %v502
        %547 = vst [vmem:[%s333] sm:$0xff] %v543
        %548 = vst [vmem:[%s333 + $0x8] sm:$0xff] %v544
        %549 = vst [vmem:[%s333 + $0x10] sm:$0xff] %v545
        %550 = vst [vmem:[%s333 + $0x18] sm:$0xff] %v546
        %v551 = vld [vmem:[%s360] sm:$0xff]
        %v552 = vld [vmem:[%s360 + $0x8] sm:$0xff]
        %v553 = vld [vmem:[%s360 + $0x10] sm:$0xff]
        %v554 = vld [vmem:[%s360 + $0x18] sm:$0xff]
        %v555 = vmul.f32 %v551, %v499
        %v556 = vmul.f32 %v552, %v500
        %v557 = vmul.f32 %v553, %v501
        %v558 = vmul.f32 %v554, %v502
        %559 = vst [vmem:[%s360] sm:$0xff] %v555
        %560 = vst [vmem:[%s360 + $0x8] sm:$0xff] %v556
        %561 = vst [vmem:[%s360 + $0x10] sm:$0xff] %v557
        %562 = vst [vmem:[%s360 + $0x18] sm:$0xff] %v558
        %v563 = vld [vmem:[%s387] sm:$0xff]
        %v564 = vld [vmem:[%s387 + $0x8] sm:$0xff]
        %v565 = vld [vmem:[%s387 + $0x10] sm:$0xff]
        %v566 = vld [vmem:[%s387 + $0x18] sm:$0xff]
        %v567 = vmul.f32 %v563, %v499
        %v568 = vmul.f32 %v564, %v500
        %v569 = vmul.f32 %v565, %v501
        %v570 = vmul.f32 %v566, %v502
        %571 = vst [vmem:[%s387] sm:$0xff] %v567
        %572 = vst [vmem:[%s387 + $0x8] sm:$0xff] %v568
        %573 = vst [vmem:[%s387 + $0x10] sm:$0xff] %v569
        %574 = vst [vmem:[%s387 + $0x18] sm:$0xff] %v570
        %v575 = vld [vmem:[%s414] sm:$0xff]
        %v576 = vld [vmem:[%s414 + $0x8] sm:$0xff]
        %v577 = vld [vmem:[%s414 + $0x10] sm:$0xff]
        %v578 = vld [vmem:[%s414 + $0x18] sm:$0xff]
        %v579 = vmul.f32 %v575, %v499
        %v580 = vmul.f32 %v576, %v500
        %v581 = vmul.f32 %v577, %v501
        %v582 = vmul.f32 %v578, %v502
        %583 = vst [vmem:[%s414] sm:$0xff] %v579
        %584 = vst [vmem:[%s414 + $0x8] sm:$0xff] %v580
        %585 = vst [vmem:[%s414 + $0x10] sm:$0xff] %v581
        %586 = vst [vmem:[%s414 + $0x18] sm:$0xff] %v582
        %v587 = vld [vmem:[%s441] sm:$0xff]
        %v588 = vld [vmem:[%s441 + $0x8] sm:$0xff]
        %v589 = vld [vmem:[%s441 + $0x10] sm:$0xff]
        %v590 = vld [vmem:[%s441 + $0x18] sm:$0xff]
        %v591 = vmul.f32 %v587, %v499
        %v592 = vmul.f32 %v588, %v500
        %v593 = vmul.f32 %v589, %v501
        %v594 = vmul.f32 %v590, %v502
        %595 = vst [vmem:[%s441] sm:$0xff] %v591
        %596 = vst [vmem:[%s441 + $0x8] sm:$0xff] %v592
        %597 = vst [vmem:[%s441 + $0x10] sm:$0xff] %v593
        %598 = vst [vmem:[%s441 + $0x18] sm:$0xff] %v594
        %v599 = vld [vmem:[%s468] sm:$0xff]
        %v600 = vld [vmem:[%s468 + $0x8] sm:$0xff]
        %v601 = vld [vmem:[%s468 + $0x10] sm:$0xff]
        %v602 = vld [vmem:[%s468 + $0x18] sm:$0xff]
        %v603 = vmul.f32 %v599, %v499
        %v604 = vmul.f32 %v600, %v500
        %v605 = vmul.f32 %v601, %v501
        %v606 = vmul.f32 %v602, %v502
        %607 = vst [vmem:[%s468] sm:$0xff] %v603
        %608 = vst [vmem:[%s468 + $0x8] sm:$0xff] %v604
        %609 = vst [vmem:[%s468 + $0x10] sm:$0xff] %v605
        %610 = vst [vmem:[%s468 + $0x18] sm:$0xff] %v606
        %s611 = sshll.u32 %s143, 4
        %612 = dma.done %s99, %s611
        %v613 = vld [vmem:[#allocation3] sm:$0xff]
        %v614 = vld [vmem:[#allocation3 + $0x8] sm:$0xff]
        %v615 = vunpack.c.l.bf16 %v613
        %v616 = vunpack.c.h.bf16 %v613
        %v617 = vunpack.c.l.bf16 %v614
        %v618 = vunpack.c.h.bf16 %v614
        %s619 = scalar_lea.vmem [#allocation3], 16
        %v620 = vld [vmem:[%s619] sm:$0xff]
        %v621 = vld [vmem:[%s619 + $0x8] sm:$0xff]
        %v622 = vunpack.c.l.bf16 %v620
        %v623 = vunpack.c.h.bf16 %v620
        %v624 = vunpack.c.l.bf16 %v621
        %v625 = vunpack.c.h.bf16 %v621
        %v626 = vmax.f32 %v615, %v622
        %v627 = vmax.f32 %v616, %v623
        %v628 = vmax.f32 %v617, %v624
        %v629 = vmax.f32 %v618, %v625
        %s630 = scalar_lea.vmem [#allocation3], 32
        %v631 = vld [vmem:[%s630] sm:$0xff]
        %v632 = vld [vmem:[%s630 + $0x8] sm:$0xff]
        %v633 = vunpack.c.l.bf16 %v631
        %v634 = vunpack.c.h.bf16 %v631
        %v635 = vunpack.c.l.bf16 %v632
        %v636 = vunpack.c.h.bf16 %v632
        %v637 = vmax.f32 %v626, %v633
        %v638 = vmax.f32 %v627, %v634
        %v639 = vmax.f32 %v628, %v635
        %v640 = vmax.f32 %v629, %v636
        %s641 = scalar_lea.vmem [#allocation3], 48
        %v642 = vld [vmem:[%s641] sm:$0xff]
        %v643 = vld [vmem:[%s641 + $0x8] sm:$0xff]
        %v644 = vunpack.c.l.bf16 %v642
        %v645 = vunpack.c.h.bf16 %v642
        %v646 = vunpack.c.l.bf16 %v643
        %v647 = vunpack.c.h.bf16 %v643
        %v648 = vmax.f32 %v637, %v644
        %v649 = vmax.f32 %v638, %v645
        %v650 = vmax.f32 %v639, %v646
        %v651 = vmax.f32 %v640, %v647
        %s652 = scalar_lea.vmem [#allocation3], 64
        %v653 = vld [vmem:[%s652] sm:$0xff]
        %v654 = vld [vmem:[%s652 + $0x8] sm:$0xff]
        %v655 = vunpack.c.l.bf16 %v653
        %v656 = vunpack.c.h.bf16 %v653
        %v657 = vunpack.c.l.bf16 %v654
        %v658 = vunpack.c.h.bf16 %v654
        %v659 = vmax.f32 %v648, %v655
        %v660 = vmax.f32 %v649, %v656
        %v661 = vmax.f32 %v650, %v657
        %v662 = vmax.f32 %v651, %v658
        %s663 = scalar_lea.vmem [#allocation3], 80
        %v664 = vld [vmem:[%s663] sm:$0xff]
        %v665 = vld [vmem:[%s663 + $0x8] sm:$0xff]
        %v666 = vunpack.c.l.bf16 %v664
        %v667 = vunpack.c.h.bf16 %v664
        %v668 = vunpack.c.l.bf16 %v665
        %v669 = vunpack.c.h.bf16 %v665
        %v670 = vmax.f32 %v659, %v666
        %v671 = vmax.f32 %v660, %v667
        %v672 = vmax.f32 %v661, %v668
        %v673 = vmax.f32 %v662, %v669
        %s674 = scalar_lea.vmem [#allocation3], 96
        %v675 = vld [vmem:[%s674] sm:$0xff]
        %v676 = vld [vmem:[%s674 + $0x8] sm:$0xff]
        %v677 = vunpack.c.l.bf16 %v675
        %v678 = vunpack.c.h.bf16 %v675
        %v679 = vunpack.c.l.bf16 %v676
        %v680 = vunpack.c.h.bf16 %v676
        %v681 = vmax.f32 %v670, %v677
        %v682 = vmax.f32 %v671, %v678
        %v683 = vmax.f32 %v672, %v679
        %v684 = vmax.f32 %v673, %v680
        %s685 = scalar_lea.vmem [#allocation3], 112
        %v686 = vld [vmem:[%s685] sm:$0xff]
        %v687 = vld [vmem:[%s685 + $0x8] sm:$0xff]
        %v688 = vunpack.c.l.bf16 %v686
        %v689 = vunpack.c.h.bf16 %v686
        %v690 = vunpack.c.l.bf16 %v687
        %v691 = vunpack.c.h.bf16 %v687
        %v692 = vmax.f32 %v681, %v688
        %v693 = vmax.f32 %v682, %v689
        %v694 = vmax.f32 %v683, %v690
        %v695 = vmax.f32 %v684, %v691
        %s696 = scalar_lea.vmem [#allocation3], 128
        %v697 = vld [vmem:[%s696] sm:$0xff]
        %v698 = vld [vmem:[%s696 + $0x8] sm:$0xff]
        %v699 = vunpack.c.l.bf16 %v697
        %v700 = vunpack.c.h.bf16 %v697
        %v701 = vunpack.c.l.bf16 %v698
        %v702 = vunpack.c.h.bf16 %v698
        %v703 = vmax.f32 %v692, %v699
        %v704 = vmax.f32 %v693, %v700
        %v705 = vmax.f32 %v694, %v701
        %v706 = vmax.f32 %v695, %v702
        %v707 = vsub.f32 %v615, %v703
        %v708 = vsub.f32 %v616, %v704
        %v709 = vsub.f32 %v617, %v705
        %v710 = vsub.f32 %v618, %v706
        %v711 = vmul.f32 %v707, 1.442695
        %v712 = vpow.pop %v711
        %v713 = vmul.f32 %v708, 1.442695
        %v714 = vpow.pop %v713
        %v715 = vmul.f32 %v709, 1.442695
        %v716 = vpow.pop %v715
        %v717 = vmul.f32 %v710, 1.442695
        %v718 = vpow.pop %v717
        %s719 = scalar_lea.vmem [#allocation5], 288
        %720 = vst [vmem:[%s719] sm:$0xff] %v712
        %721 = vst [vmem:[%s719 + $0x8] sm:$0xff] %v714
        %722 = vst [vmem:[%s719 + $0x10] sm:$0xff] %v716
        %723 = vst [vmem:[%s719 + $0x18] sm:$0xff] %v718
        %v724 = vld [vmem:[%s619] sm:$0xff]
        %v725 = vld [vmem:[%s619 + $0x8] sm:$0xff]
        %v726 = vunpack.c.l.bf16 %v724
        %v727 = vunpack.c.h.bf16 %v724
        %v728 = vunpack.c.l.bf16 %v725
        %v729 = vunpack.c.h.bf16 %v725
        %v730 = vsub.f32 %v726, %v703
        %v731 = vsub.f32 %v727, %v704
        %v732 = vsub.f32 %v728, %v705
        %v733 = vsub.f32 %v729, %v706
        %v734 = vmul.f32 %v730, 1.442695
        %v735 = vpow.pop %v734
        %v736 = vmul.f32 %v731, 1.442695
        %v737 = vpow.pop %v736
        %v738 = vmul.f32 %v732, 1.442695
        %v739 = vpow.pop %v738
        %v740 = vmul.f32 %v733, 1.442695
        %v741 = vpow.pop %v740
        %s742 = scalar_lea.vmem [#allocation5], 320
        %743 = vst [vmem:[%s742] sm:$0xff] %v735
        %744 = vst [vmem:[%s742 + $0x8] sm:$0xff] %v737
        %745 = vst [vmem:[%s742 + $0x10] sm:$0xff] %v739
        %746 = vst [vmem:[%s742 + $0x18] sm:$0xff] %v741
        %v747 = vadd.f32 %v712, %v735
        %v748 = vadd.f32 %v714, %v737
        %v749 = vadd.f32 %v716, %v739
        %v750 = vadd.f32 %v718, %v741
        %v751 = vld [vmem:[%s630] sm:$0xff]
        %v752 = vld [vmem:[%s630 + $0x8] sm:$0xff]
        %v753 = vunpack.c.l.bf16 %v751
        %v754 = vunpack.c.h.bf16 %v751
        %v755 = vunpack.c.l.bf16 %v752
        %v756 = vunpack.c.h.bf16 %v752
        %v757 = vsub.f32 %v753, %v703
        %v758 = vsub.f32 %v754, %v704
        %v759 = vsub.f32 %v755, %v705
        %v760 = vsub.f32 %v756, %v706
        %v761 = vmul.f32 %v757, 1.442695
        %v762 = vpow.pop %v761
        %v763 = vmul.f32 %v758, 1.442695
        %v764 = vpow.pop %v763
        %v765 = vmul.f32 %v759, 1.442695
        %v766 = vpow.pop %v765
        %v767 = vmul.f32 %v760, 1.442695
        %v768 = vpow.pop %v767
        %s769 = scalar_lea.vmem [#allocation5], 352
        %770 = vst [vmem:[%s769] sm:$0xff] %v762
        %771 = vst [vmem:[%s769 + $0x8] sm:$0xff] %v764
        %772 = vst [vmem:[%s769 + $0x10] sm:$0xff] %v766
        %773 = vst [vmem:[%s769 + $0x18] sm:$0xff] %v768
        %v774 = vadd.f32 %v747, %v762
        %v775 = vadd.f32 %v748, %v764
        %v776 = vadd.f32 %v749, %v766
        %v777 = vadd.f32 %v750, %v768
        %v778 = vld [vmem:[%s641] sm:$0xff]
        %v779 = vld [vmem:[%s641 + $0x8] sm:$0xff]
        %v780 = vunpack.c.l.bf16 %v778
        %v781 = vunpack.c.h.bf16 %v778
        %v782 = vunpack.c.l.bf16 %v779
        %v783 = vunpack.c.h.bf16 %v779
        %v784 = vsub.f32 %v780, %v703
        %v785 = vsub.f32 %v781, %v704
        %v786 = vsub.f32 %v782, %v705
        %v787 = vsub.f32 %v783, %v706
        %v788 = vmul.f32 %v784, 1.442695
        %v789 = vpow.pop %v788
        %v790 = vmul.f32 %v785, 1.442695
        %v791 = vpow.pop %v790
        %v792 = vmul.f32 %v786, 1.442695
        %v793 = vpow.pop %v792
        %v794 = vmul.f32 %v787, 1.442695
        %v795 = vpow.pop %v794
        %s796 = scalar_lea.vmem [#allocation5], 384
        %797 = vst [vmem:[%s796] sm:$0xff] %v789
        %798 = vst [vmem:[%s796 + $0x8] sm:$0xff] %v791
        %799 = vst [vmem:[%s796 + $0x10] sm:$0xff] %v793
        %800 = vst [vmem:[%s796 + $0x18] sm:$0xff] %v795
        %v801 = vadd.f32 %v774, %v789
        %v802 = vadd.f32 %v775, %v791
        %v803 = vadd.f32 %v776, %v793
        %v804 = vadd.f32 %v777, %v795
        %v805 = vld [vmem:[%s652] sm:$0xff]
        %v806 = vld [vmem:[%s652 + $0x8] sm:$0xff]
        %v807 = vunpack.c.l.bf16 %v805
        %v808 = vunpack.c.h.bf16 %v805
        %v809 = vunpack.c.l.bf16 %v806
        %v810 = vunpack.c.h.bf16 %v806
        %v811 = vsub.f32 %v807, %v703
        %v812 = vsub.f32 %v808, %v704
        %v813 = vsub.f32 %v809, %v705
        %v814 = vsub.f32 %v810, %v706
        %v815 = vmul.f32 %v811, 1.442695
        %v816 = vpow.pop %v815
        %v817 = vmul.f32 %v812, 1.442695
        %v818 = vpow.pop %v817
        %v819 = vmul.f32 %v813, 1.442695
        %v820 = vpow.pop %v819
        %v821 = vmul.f32 %v814, 1.442695
        %v822 = vpow.pop %v821
        %s823 = scalar_lea.vmem [#allocation5], 416
        %824 = vst [vmem:[%s823] sm:$0xff] %v816
        %825 = vst [vmem:[%s823 + $0x8] sm:$0xff] %v818
        %826 = vst [vmem:[%s823 + $0x10] sm:$0xff] %v820
        %827 = vst [vmem:[%s823 + $0x18] sm:$0xff] %v822
        %v828 = vadd.f32 %v801, %v816
        %v829 = vadd.f32 %v802, %v818
        %v830 = vadd.f32 %v803, %v820
        %v831 = vadd.f32 %v804, %v822
        %v832 = vld [vmem:[%s663] sm:$0xff]
        %v833 = vld [vmem:[%s663 + $0x8] sm:$0xff]
        %v834 = vunpack.c.l.bf16 %v832
        %v835 = vunpack.c.h.bf16 %v832
        %v836 = vunpack.c.l.bf16 %v833
        %v837 = vunpack.c.h.bf16 %v833
        %v838 = vsub.f32 %v834, %v703
        %v839 = vsub.f32 %v835, %v704
        %v840 = vsub.f32 %v836, %v705
        %v841 = vsub.f32 %v837, %v706
        %v842 = vmul.f32 %v838, 1.442695
        %v843 = vpow.pop %v842
        %v844 = vmul.f32 %v839, 1.442695
        %v845 = vpow.pop %v844
        %v846 = vmul.f32 %v840, 1.442695
        %v847 = vpow.pop %v846
        %v848 = vmul.f32 %v841, 1.442695
        %v849 = vpow.pop %v848
        %s850 = scalar_lea.vmem [#allocation5], 448
        %851 = vst [vmem:[%s850] sm:$0xff] %v843
        %852 = vst [vmem:[%s850 + $0x8] sm:$0xff] %v845
        %853 = vst [vmem:[%s850 + $0x10] sm:$0xff] %v847
        %854 = vst [vmem:[%s850 + $0x18] sm:$0xff] %v849
        %v855 = vadd.f32 %v828, %v843
        %v856 = vadd.f32 %v829, %v845
        %v857 = vadd.f32 %v830, %v847
        %v858 = vadd.f32 %v831, %v849
        %v859 = vld [vmem:[%s674] sm:$0xff]
        %v860 = vld [vmem:[%s674 + $0x8] sm:$0xff]
        %v861 = vunpack.c.l.bf16 %v859
        %v862 = vunpack.c.h.bf16 %v859
        %v863 = vunpack.c.l.bf16 %v860
        %v864 = vunpack.c.h.bf16 %v860
        %v865 = vsub.f32 %v861, %v703
        %v866 = vsub.f32 %v862, %v704
        %v867 = vsub.f32 %v863, %v705
        %v868 = vsub.f32 %v864, %v706
        %v869 = vmul.f32 %v865, 1.442695
        %v870 = vpow.pop %v869
        %v871 = vmul.f32 %v866, 1.442695
        %v872 = vpow.pop %v871
        %v873 = vmul.f32 %v867, 1.442695
        %v874 = vpow.pop %v873
        %v875 = vmul.f32 %v868, 1.442695
        %v876 = vpow.pop %v875
        %s877 = scalar_lea.vmem [#allocation5], 480
        %878 = vst [vmem:[%s877] sm:$0xff] %v870
        %879 = vst [vmem:[%s877 + $0x8] sm:$0xff] %v872
        %880 = vst [vmem:[%s877 + $0x10] sm:$0xff] %v874
        %881 = vst [vmem:[%s877 + $0x18] sm:$0xff] %v876
        %v882 = vadd.f32 %v855, %v870
        %v883 = vadd.f32 %v856, %v872
        %v884 = vadd.f32 %v857, %v874
        %v885 = vadd.f32 %v858, %v876
        %v886 = vld [vmem:[%s685] sm:$0xff]
        %v887 = vld [vmem:[%s685 + $0x8] sm:$0xff]
        %v888 = vunpack.c.l.bf16 %v886
        %v889 = vunpack.c.h.bf16 %v886
        %v890 = vunpack.c.l.bf16 %v887
        %v891 = vunpack.c.h.bf16 %v887
        %v892 = vsub.f32 %v888, %v703
        %v893 = vsub.f32 %v889, %v704
        %v894 = vsub.f32 %v890, %v705
        %v895 = vsub.f32 %v891, %v706
        %v896 = vmul.f32 %v892, 1.442695
        %v897 = vpow.pop %v896
        %v898 = vmul.f32 %v893, 1.442695
        %v899 = vpow.pop %v898
        %v900 = vmul.f32 %v894, 1.442695
        %v901 = vpow.pop %v900
        %v902 = vmul.f32 %v895, 1.442695
        %v903 = vpow.pop %v902
        %s904 = scalar_lea.vmem [#allocation5], 512
        %905 = vst [vmem:[%s904] sm:$0xff] %v897
        %906 = vst [vmem:[%s904 + $0x8] sm:$0xff] %v899
        %907 = vst [vmem:[%s904 + $0x10] sm:$0xff] %v901
        %908 = vst [vmem:[%s904 + $0x18] sm:$0xff] %v903
        %v909 = vadd.f32 %v882, %v897
        %v910 = vadd.f32 %v883, %v899
        %v911 = vadd.f32 %v884, %v901
        %v912 = vadd.f32 %v885, %v903
        %v913 = vld [vmem:[%s696] sm:$0xff]
        %v914 = vld [vmem:[%s696 + $0x8] sm:$0xff]
        %v915 = vunpack.c.l.bf16 %v913
        %v916 = vunpack.c.h.bf16 %v913
        %v917 = vunpack.c.l.bf16 %v914
        %v918 = vunpack.c.h.bf16 %v914
        %v919 = vsub.f32 %v915, %v703
        %v920 = vsub.f32 %v916, %v704
        %v921 = vsub.f32 %v917, %v705
        %v922 = vsub.f32 %v918, %v706
        %v923 = vmul.f32 %v919, 1.442695
        %v924 = vpow.pop %v923
        %v925 = vmul.f32 %v920, 1.442695
        %v926 = vpow.pop %v925
        %v927 = vmul.f32 %v921, 1.442695
        %v928 = vpow.pop %v927
        %v929 = vmul.f32 %v922, 1.442695
        %v930 = vpow.pop %v929
        %s931 = scalar_lea.vmem [#allocation5], 544
        %932 = vst [vmem:[%s931] sm:$0xff] %v924
        %933 = vst [vmem:[%s931 + $0x8] sm:$0xff] %v926
        %934 = vst [vmem:[%s931 + $0x10] sm:$0xff] %v928
        %935 = vst [vmem:[%s931 + $0x18] sm:$0xff] %v930
        %v936 = vadd.f32 %v909, %v924
        %v937 = vadd.f32 %v910, %v926
        %v938 = vadd.f32 %v911, %v928
        %v939 = vadd.f32 %v912, %v930
        %v940 = vrcp.pop %v936
        %v941 = vrcp.pop %v937
        %v942 = vrcp.pop %v938
        %v943 = vrcp.pop %v939
        %v944 = vmul.f32 %v936, %v940
        %v945 = vmul.f32 %v937, %v941
        %v946 = vmul.f32 %v938, %v942
        %v947 = vmul.f32 %v939, %v943
        %v948 = vsub.f32 2.0, %v944
        %v949 = vsub.f32 2.0, %v945
        %v950 = vsub.f32 2.0, %v946
        %v951 = vsub.f32 2.0, %v947
        %v952 = vmul.f32 %v940, %v948
        %v953 = vmul.f32 %v941, %v949
        %v954 = vmul.f32 %v942, %v950
        %v955 = vmul.f32 %v943, %v951
        %s956 = scalar_lea.vmem [#allocation4], 16
        %v957 = vld [vmem:[%s956] sm:$0xff]
        %v958 = vld [vmem:[%s956 + $0x8] sm:$0xff]
        %v959 = vunpack.c.l.bf16 %v957
        %v960 = vunpack.c.h.bf16 %v957
        %v961 = vunpack.c.l.bf16 %v958
        %v962 = vunpack.c.h.bf16 %v958
        %v963 = vmul.f32 %v959, %v952
        %v964 = vmul.f32 %v960, %v953
        %v965 = vmul.f32 %v961, %v954
        %v966 = vmul.f32 %v962, %v955
        %v967 = vld [vmem:[%s719] sm:$0xff]
        %v968 = vld [vmem:[%s719 + $0x8] sm:$0xff]
        %v969 = vld [vmem:[%s719 + $0x10] sm:$0xff]
        %v970 = vld [vmem:[%s719 + $0x18] sm:$0xff]
        %v971 = vmul.f32 %v967, %v963
        %v972 = vmul.f32 %v968, %v964
        %v973 = vmul.f32 %v969, %v965
        %v974 = vmul.f32 %v970, %v966
        %975 = vst [vmem:[%s719] sm:$0xff] %v971
        %976 = vst [vmem:[%s719 + $0x8] sm:$0xff] %v972
        %977 = vst [vmem:[%s719 + $0x10] sm:$0xff] %v973
        %978 = vst [vmem:[%s719 + $0x18] sm:$0xff] %v974
        %v979 = vld [vmem:[%s742] sm:$0xff]
        %v980 = vld [vmem:[%s742 + $0x8] sm:$0xff]
        %v981 = vld [vmem:[%s742 + $0x10] sm:$0xff]
        %v982 = vld [vmem:[%s742 + $0x18] sm:$0xff]
        %v983 = vmul.f32 %v979, %v963
        %v984 = vmul.f32 %v980, %v964
        %v985 = vmul.f32 %v981, %v965
        %v986 = vmul.f32 %v982, %v966
        %987 = vst [vmem:[%s742] sm:$0xff] %v983
        %988 = vst [vmem:[%s742 + $0x8] sm:$0xff] %v984
        %989 = vst [vmem:[%s742 + $0x10] sm:$0xff] %v985
        %990 = vst [vmem:[%s742 + $0x18] sm:$0xff] %v986
        %v991 = vld [vmem:[%s769] sm:$0xff]
        %v992 = vld [vmem:[%s769 + $0x8] sm:$0xff]
        %v993 = vld [vmem:[%s769 + $0x10] sm:$0xff]
        %v994 = vld [vmem:[%s769 + $0x18] sm:$0xff]
        %v995 = vmul.f32 %v991, %v963
        %v996 = vmul.f32 %v992, %v964
        %v997 = vmul.f32 %v993, %v965
        %v998 = vmul.f32 %v994, %v966
        %999 = vst [vmem:[%s769] sm:$0xff] %v995
        %1000 = vst [vmem:[%s769 + $0x8] sm:$0xff] %v996
        %1001 = vst [vmem:[%s769 + $0x10] sm:$0xff] %v997
        %1002 = vst [vmem:[%s769 + $0x18] sm:$0xff] %v998
        %v1003 = vld [vmem:[%s796] sm:$0xff]
        %v1004 = vld [vmem:[%s796 + $0x8] sm:$0xff]
        %v1005 = vld [vmem:[%s796 + $0x10] sm:$0xff]
        %v1006 = vld [vmem:[%s796 + $0x18] sm:$0xff]
        %v1007 = vmul.f32 %v1003, %v963
        %v1008 = vmul.f32 %v1004, %v964
        %v1009 = vmul.f32 %v1005, %v965
        %v1010 = vmul.f32 %v1006, %v966
        %1011 = vst [vmem:[%s796] sm:$0xff] %v1007
        %1012 = vst [vmem:[%s796 + $0x8] sm:$0xff] %v1008
        %1013 = vst [vmem:[%s796 + $0x10] sm:$0xff] %v1009
        %1014 = vst [vmem:[%s796 + $0x18] sm:$0xff] %v1010
        %v1015 = vld [vmem:[%s823] sm:$0xff]
        %v1016 = vld [vmem:[%s823 + $0x8] sm:$0xff]
        %v1017 = vld [vmem:[%s823 + $0x10] sm:$0xff]
        %v1018 = vld [vmem:[%s823 + $0x18] sm:$0xff]
        %v1019 = vmul.f32 %v1015, %v963
        %v1020 = vmul.f32 %v1016, %v964
        %v1021 = vmul.f32 %v1017, %v965
        %v1022 = vmul.f32 %v1018, %v966
        %1023 = vst [vmem:[%s823] sm:$0xff] %v1019
        %1024 = vst [vmem:[%s823 + $0x8] sm:$0xff] %v1020
        %1025 = vst [vmem:[%s823 + $0x10] sm:$0xff] %v1021
        %1026 = vst [vmem:[%s823 + $0x18] sm:$0xff] %v1022
        %v1027 = vld [vmem:[%s850] sm:$0xff]
        %v1028 = vld [vmem:[%s850 + $0x8] sm:$0xff]
        %v1029 = vld [vmem:[%s850 + $0x10] sm:$0xff]
        %v1030 = vld [vmem:[%s850 + $0x18] sm:$0xff]
        %v1031 = vmul.f32 %v1027, %v963
        %v1032 = vmul.f32 %v1028, %v964
        %v1033 = vmul.f32 %v1029, %v965
        %v1034 = vmul.f32 %v1030, %v966
        %1035 = vst [vmem:[%s850] sm:$0xff] %v1031
        %1036 = vst [vmem:[%s850 + $0x8] sm:$0xff] %v1032
        %1037 = vst [vmem:[%s850 + $0x10] sm:$0xff] %v1033
        %1038 = vst [vmem:[%s850 + $0x18] sm:$0xff] %v1034
        %v1039 = vld [vmem:[%s877] sm:$0xff]
        %v1040 = vld [vmem:[%s877 + $0x8] sm:$0xff]
        %v1041 = vld [vmem:[%s877 + $0x10] sm:$0xff]
        %v1042 = vld [vmem:[%s877 + $0x18] sm:$0xff]
        %v1043 = vmul.f32 %v1039, %v963
        %v1044 = vmul.f32 %v1040, %v964
        %v1045 = vmul.f32 %v1041, %v965
        %v1046 = vmul.f32 %v1042, %v966
        %1047 = vst [vmem:[%s877] sm:$0xff] %v1043
        %1048 = vst [vmem:[%s877 + $0x8] sm:$0xff] %v1044
        %1049 = vst [vmem:[%s877 + $0x10] sm:$0xff] %v1045
        %1050 = vst [vmem:[%s877 + $0x18] sm:$0xff] %v1046
        %v1051 = vld [vmem:[%s904] sm:$0xff]
        %v1052 = vld [vmem:[%s904 + $0x8] sm:$0xff]
        %v1053 = vld [vmem:[%s904 + $0x10] sm:$0xff]
        %v1054 = vld [vmem:[%s904 + $0x18] sm:$0xff]
        %v1055 = vmul.f32 %v1051, %v963
        %v1056 = vmul.f32 %v1052, %v964
        %v1057 = vmul.f32 %v1053, %v965
        %v1058 = vmul.f32 %v1054, %v966
        %1059 = vst [vmem:[%s904] sm:$0xff] %v1055
        %1060 = vst [vmem:[%s904 + $0x8] sm:$0xff] %v1056
        %1061 = vst [vmem:[%s904 + $0x10] sm:$0xff] %v1057
        %1062 = vst [vmem:[%s904 + $0x18] sm:$0xff] %v1058
        %v1063 = vld [vmem:[%s931] sm:$0xff]
        %v1064 = vld [vmem:[%s931 + $0x8] sm:$0xff]
        %v1065 = vld [vmem:[%s931 + $0x10] sm:$0xff]
        %v1066 = vld [vmem:[%s931 + $0x18] sm:$0xff]
        %v1067 = vmul.f32 %v1063, %v963
        %v1068 = vmul.f32 %v1064, %v964
        %v1069 = vmul.f32 %v1065, %v965
        %v1070 = vmul.f32 %v1066, %v966
        %1071 = vst [vmem:[%s931] sm:$0xff] %v1067
        %1072 = vst [vmem:[%s931 + $0x8] sm:$0xff] %v1068
        %1073 = vst [vmem:[%s931 + $0x10] sm:$0xff] %v1069
        %1074 = vst [vmem:[%s931 + $0x18] sm:$0xff] %v1070
        %s1075 = smul.u32 32, 1
        %s1076 = sshll.u32 %s1075, 4
        %1077 = dma.done %s115, %s1076
        %v1078 = vld [vmem:[#allocation6] sm:$0xff]
        %v1079 = vld [vmem:[#allocation6 + $0x8] sm:$0xff]
        %v1080 = vld [vmem:[#allocation6 + $0x10] sm:$0xff]
        %v1081 = vld [vmem:[#allocation6 + $0x18] sm:$0xff]
        %1082 = vst [vmem:[#allocation7 + $0x20] sm:$0xff] %v1078
        %1083 = vst [vmem:[#allocation7 + $0x38] sm:$0xff] %v1079
        %1084 = vst [vmem:[#allocation7 + $0x50] sm:$0xff] %v1080
        %1085 = vst [vmem:[#allocation7 + $0x68] sm:$0xff] %v1081
        %v1086 = vld [vmem:[#allocation7] sm:$0x80]
        %v1087 = vld [vmem:[#allocation7 + $0x8] sm:$0x80]
        %v1088 = vld [vmem:[#allocation7 + $0x18] sm:$0xff]
        %v1089 = vld [vmem:[#allocation7 + $0x20] sm:$0xff]
        %v1090 = vld [vmem:[#allocation7 + $0x30] sm:$0xff]
        %v1091 = vld [vmem:[#allocation7 + $0x38] sm:$0xff]
        %v1092 = vld [vmem:[#allocation7 + $0x48] sm:$0xff]
        %v1093 = vld [vmem:[#allocation7 + $0x50] sm:$0xff]
        %v1094 = vld [vmem:[#allocation7 + $0x60] sm:$0x7f]
        %v1095 = vld [vmem:[#allocation7 + $0x68] sm:$0x7f]
        %v1096 = vld [vmem:[#allocation5] sm:$0xff]
        %v1097 = vld [vmem:[#allocation5 + $0x8] sm:$0xff]
        %v1098 = vld [vmem:[#allocation5 + $0x10] sm:$0xff]
        %v1099 = vld [vmem:[#allocation5 + $0x18] sm:$0xff]
        %vm1104 = vcmask 1046528
        %v1105 = vrot.slane %v1096, 1
        %v1106 = vrot.slane %v1097, 1
        %v1107 = vsel %vm1104, %v1105, %v1106
        %v1108 = vrot.slane %v1098, 1
        %v1109 = vsel %vm1104, %v1106, %v1108
        %v1110 = vrot.slane %v1099, 1
        %v1111 = vsel %vm1104, %v1108, %v1110
        %1112 = vrot.lane.b32.xlu0 %v1105, 127
        %v1113 = vpop.permute.xlu0 %1112
        %1114 = vrot.lane.b32.xlu0 %v1107, 127
        %v1115 = vpop.permute.xlu0 %1114
        %1116 = vrot.lane.b32.xlu0 %v1109, 127
        %v1117 = vpop.permute.xlu0 %1116
        %1118 = vrot.lane.b32.xlu0 %v1111, 127
        %v1119 = vpop.permute.xlu0 %1118
        %1120 = vrot.lane.b32.xlu0 %v1110, 127
        %v1121 = vpop.permute.xlu0 %1120
        %v1127 = vmul.f32 %v1086, %v1113
        %v1128 = vmul.f32 %v1087, %v1113
        %v1129 = vmul.f32 %v1088, %v1115
        %v1130 = vmul.f32 %v1089, %v1115
        %v1131 = vmul.f32 %v1090, %v1117
        %v1132 = vmul.f32 %v1091, %v1117
        %v1133 = vmul.f32 %v1092, %v1119
        %v1134 = vmul.f32 %v1093, %v1119
        %v1135 = vmul.f32 %v1094, %v1121
        %v1136 = vmul.f32 %v1095, %v1121
        %v1137 = vld [vmem:[%s279] sm:$0xff]
        %v1138 = vld [vmem:[%s279 + $0x8] sm:$0xff]
        %v1139 = vld [vmem:[%s279 + $0x10] sm:$0xff]
        %v1140 = vld [vmem:[%s279 + $0x18] sm:$0xff]
        %v1145 = vrot.slane %v1137, 1
        %v1146 = vrot.slane %v1138, 1
        %v1147 = vsel %vm1104, %v1145, %v1146
        %v1148 = vrot.slane %v1139, 1
        %v1149 = vsel %vm1104, %v1146, %v1148
        %v1150 = vrot.slane %v1140, 1
        %v1151 = vsel %vm1104, %v1148, %v1150
        %v1157 = vmul.f32 %v1087, %v1145
        %v1158 = vmul.f32 %v1089, %v1147
        %v1159 = vmul.f32 %v1091, %v1149
        %v1160 = vmul.f32 %v1093, %v1151
        %v1161 = vmul.f32 %v1095, %v1150
        %1167 = vrot.lane.b32.xlu0 %v1157, 127
        %v1168 = vpop.permute.xlu0 %1167
        %1169 = vrot.lane.b32.xlu0 %v1158, 127
        %v1170 = vpop.permute.xlu0 %1169
        %1171 = vrot.lane.b32.xlu0 %v1159, 127
        %v1172 = vpop.permute.xlu0 %1171
        %1173 = vrot.lane.b32.xlu0 %v1160, 127
        %v1174 = vpop.permute.xlu0 %1173
        %1175 = vrot.lane.b32.xlu0 %v1161, 127
        %v1176 = vpop.permute.xlu0 %1175
        %v1182 = vadd.f32 %v1127, %v1168
        %v1183 = vadd.f32 %v1128, %v1168
        %v1184 = vadd.f32 %v1129, %v1170
        %v1185 = vadd.f32 %v1130, %v1170
        %v1186 = vadd.f32 %v1131, %v1172
        %v1187 = vadd.f32 %v1132, %v1172
        %v1188 = vadd.f32 %v1133, %v1174
        %v1189 = vadd.f32 %v1134, %v1174
        %v1190 = vadd.f32 %v1135, %v1176
        %v1191 = vadd.f32 %v1136, %v1176
        %v1192 = vld [vmem:[#allocation7 + $0x10] sm:$0x80]
        %v1193 = vld [vmem:[#allocation7 + $0x28] sm:$0xff]
        %v1194 = vld [vmem:[#allocation7 + $0x40] sm:$0xff]
        %v1195 = vld [vmem:[#allocation7 + $0x58] sm:$0xff]
        %v1196 = vld [vmem:[#allocation7 + $0x70] sm:$0x7f]
        %v1197 = vld [vmem:[%s306] sm:$0xff]
        %v1198 = vld [vmem:[%s306 + $0x8] sm:$0xff]
        %v1199 = vld [vmem:[%s306 + $0x10] sm:$0xff]
        %v1200 = vld [vmem:[%s306 + $0x18] sm:$0xff]
        %v1205 = vrot.slane %v1197, 1
        %v1206 = vrot.slane %v1198, 1
        %v1207 = vsel %vm1104, %v1205, %v1206
        %v1208 = vrot.slane %v1199, 1
        %v1209 = vsel %vm1104, %v1206, %v1208
        %v1210 = vrot.slane %v1200, 1
        %v1211 = vsel %vm1104, %v1208, %v1210
        %1212 = vrot.lane.b32.xlu0 %v1205, 1
        %v1213 = vpop.permute.xlu0 %1212
        %1214 = vrot.lane.b32.xlu0 %v1207, 1
        %v1215 = vpop.permute.xlu0 %1214
        %1216 = vrot.lane.b32.xlu0 %v1209, 1
        %v1217 = vpop.permute.xlu0 %1216
        %1218 = vrot.lane.b32.xlu0 %v1211, 1
        %v1219 = vpop.permute.xlu0 %1218
        %1220 = vrot.lane.b32.xlu0 %v1210, 1
        %v1221 = vpop.permute.xlu0 %1220
        %v1227 = vmul.f32 %v1087, %v1213
        %v1228 = vmul.f32 %v1192, %v1213
        %v1229 = vmul.f32 %v1089, %v1215
        %v1230 = vmul.f32 %v1193, %v1215
        %v1231 = vmul.f32 %v1091, %v1217
        %v1232 = vmul.f32 %v1194, %v1217
        %v1233 = vmul.f32 %v1093, %v1219
        %v1234 = vmul.f32 %v1195, %v1219
        %v1235 = vmul.f32 %v1095, %v1221
        %v1236 = vmul.f32 %v1196, %v1221
        %1247 = vrot.lane.b32.xlu0 %v1227, 126
        %v1248 = vpop.permute.xlu0 %1247
        %1249 = vrot.lane.b32.xlu0 %v1228, 126
        %v1250 = vpop.permute.xlu0 %1249
        %1251 = vrot.lane.b32.xlu0 %v1229, 126
        %v1252 = vpop.permute.xlu0 %1251
        %1253 = vrot.lane.b32.xlu0 %v1230, 126
        %v1254 = vpop.permute.xlu0 %1253
        %1255 = vrot.lane.b32.xlu0 %v1231, 126
        %v1256 = vpop.permute.xlu0 %1255
        %1257 = vrot.lane.b32.xlu0 %v1232, 126
        %v1258 = vpop.permute.xlu0 %1257
        %1259 = vrot.lane.b32.xlu0 %v1233, 126
        %v1260 = vpop.permute.xlu0 %1259
        %1261 = vrot.lane.b32.xlu0 %v1234, 126
        %v1262 = vpop.permute.xlu0 %1261
        %1263 = vrot.lane.b32.xlu0 %v1235, 126
        %v1264 = vpop.permute.xlu0 %1263
        %1265 = vrot.lane.b32.xlu0 %v1236, 126
        %v1266 = vpop.permute.xlu0 %1265
        %vm1267 = vcmask 1031168
        %v1268 = vsel %vm1267, %v1248, %v1250
        %v1269 = vsel %vm1267, %v1252, %v1254
        %v1270 = vsel %vm1267, %v1256, %v1258
        %v1271 = vsel %vm1267, %v1260, %v1262
        %v1272 = vsel %vm1267, %v1264, %v1266
        %v1283 = vadd.f32 %v1182, %v1248
        %v1284 = vadd.f32 %v1183, %v1268
        %v1285 = vadd.f32 %v1184, %v1252
        %v1286 = vadd.f32 %v1185, %v1269
        %v1287 = vadd.f32 %v1186, %v1256
        %v1288 = vadd.f32 %v1187, %v1270
        %v1289 = vadd.f32 %v1188, %v1260
        %v1290 = vadd.f32 %v1189, %v1271
        %v1291 = vadd.f32 %v1190, %v1264
        %v1292 = vadd.f32 %v1191, %v1272
        %v1293 = vld [vmem:[#allocation7 + $0x60] sm:$0xff]
        %v1294 = vld [vmem:[#allocation7 + $0x68] sm:$0xff]
        %v1295 = vld [vmem:[%s333] sm:$0xff]
        %v1296 = vld [vmem:[%s333 + $0x8] sm:$0xff]
        %v1297 = vld [vmem:[%s333 + $0x10] sm:$0xff]
        %v1298 = vld [vmem:[%s333 + $0x18] sm:$0xff]
        %1303 = vrot.lane.b32.xlu0 %v1295, 127
        %v1304 = vpop.permute.xlu0 %1303
        %1305 = vrot.lane.b32.xlu0 %v1296, 127
        %v1306 = vpop.permute.xlu0 %1305
        %1307 = vrot.lane.b32.xlu0 %v1297, 127
        %v1308 = vpop.permute.xlu0 %1307
        %1309 = vrot.lane.b32.xlu0 %v1298, 127
        %v1310 = vpop.permute.xlu0 %1309
        %v1315 = vmul.f32 %v1088, %v1304
        %v1316 = vmul.f32 %v1089, %v1304
        %v1317 = vmul.f32 %v1090, %v1306
        %v1318 = vmul.f32 %v1091, %v1306
        %v1319 = vmul.f32 %v1092, %v1308
        %v1320 = vmul.f32 %v1093, %v1308
        %v1321 = vmul.f32 %v1293, %v1310
        %v1322 = vmul.f32 %v1294, %v1310
        %v1331 = vrot.slane %v1315, 1
        %v1332 = vrot.slane %v1316, 1
        %v1333 = vrot.slane %v1317, 1
        %v1334 = vsel %vm1104, %v1331, %v1333
        %v1335 = vrot.slane %v1318, 1
        %v1336 = vsel %vm1104, %v1332, %v1335
        %v1337 = vrot.slane %v1319, 1
        %v1338 = vsel %vm1104, %v1333, %v1337
        %v1339 = vrot.slane %v1320, 1
        %v1340 = vsel %vm1104, %v1335, %v1339
        %v1341 = vrot.slane %v1321, 1
        %v1342 = vsel %vm1104, %v1337, %v1341
        %v1343 = vrot.slane %v1322, 1
        %v1344 = vsel %vm1104, %v1339, %v1343
        %v1355 = vadd.f32 %v1283, %v1331
        %v1356 = vadd.f32 %v1284, %v1332
        %v1357 = vadd.f32 %v1285, %v1334
        %v1358 = vadd.f32 %v1286, %v1336
        %v1359 = vadd.f32 %v1287, %v1338
        %v1360 = vadd.f32 %v1288, %v1340
        %v1361 = vadd.f32 %v1289, %v1342
        %v1362 = vadd.f32 %v1290, %v1344
        %v1363 = vadd.f32 %v1291, %v1341
        %v1364 = vadd.f32 %v1292, %v1343
        %v1365 = vld [vmem:[%s360] sm:$0xff]
        %v1366 = vld [vmem:[%s360 + $0x8] sm:$0xff]
        %v1367 = vld [vmem:[%s360 + $0x10] sm:$0xff]
        %v1368 = vld [vmem:[%s360 + $0x18] sm:$0xff]
        %v1369 = vmul.f32 %v1089, %v1365
        %v1370 = vmul.f32 %v1091, %v1366
        %v1371 = vmul.f32 %v1093, %v1367
        %v1372 = vmul.f32 %v1294, %v1368
        %v1377 = vrot.slane %v1369, 1
        %v1378 = vrot.slane %v1370, 1
        %v1379 = vsel %vm1104, %v1377, %v1378
        %v1380 = vrot.slane %v1371, 1
        %v1381 = vsel %vm1104, %v1378, %v1380
        %v1382 = vrot.slane %v1372, 1
        %v1383 = vsel %vm1104, %v1380, %v1382
        %1384 = vrot.lane.b32.xlu0 %v1377, 127
        %v1385 = vpop.permute.xlu0 %1384
        %1386 = vrot.lane.b32.xlu0 %v1379, 127
        %v1387 = vpop.permute.xlu0 %1386
        %1388 = vrot.lane.b32.xlu0 %v1381, 127
        %v1389 = vpop.permute.xlu0 %1388
        %1390 = vrot.lane.b32.xlu0 %v1383, 127
        %v1391 = vpop.permute.xlu0 %1390
        %1392 = vrot.lane.b32.xlu0 %v1382, 127
        %v1393 = vpop.permute.xlu0 %1392
        %v1399 = vadd.f32 %v1355, %v1385
        %v1400 = vadd.f32 %v1356, %v1385
        %v1401 = vadd.f32 %v1357, %v1387
        %v1402 = vadd.f32 %v1358, %v1387
        %v1403 = vadd.f32 %v1359, %v1389
        %v1404 = vadd.f32 %v1360, %v1389
        %v1405 = vadd.f32 %v1361, %v1391
        %v1406 = vadd.f32 %v1362, %v1391
        %v1407 = vadd.f32 %v1363, %v1393
        %v1408 = vadd.f32 %v1364, %v1393
        %v1409 = vld [vmem:[#allocation7 + $0x70] sm:$0xff]
        %v1410 = vld [vmem:[%s387] sm:$0xff]
        %v1411 = vld [vmem:[%s387 + $0x8] sm:$0xff]
        %v1412 = vld [vmem:[%s387 + $0x10] sm:$0xff]
        %v1413 = vld [vmem:[%s387 + $0x18] sm:$0xff]
        %1418 = vrot.lane.b32.xlu0 %v1410, 1
        %v1419 = vpop.permute.xlu0 %1418
        %1420 = vrot.lane.b32.xlu0 %v1411, 1
        %v1421 = vpop.permute.xlu0 %1420
        %1422 = vrot.lane.b32.xlu0 %v1412, 1
        %v1423 = vpop.permute.xlu0 %1422
        %1424 = vrot.lane.b32.xlu0 %v1413, 1
        %v1425 = vpop.permute.xlu0 %1424
        %v1430 = vmul.f32 %v1089, %v1419
        %v1431 = vmul.f32 %v1193, %v1419
        %v1432 = vmul.f32 %v1091, %v1421
        %v1433 = vmul.f32 %v1194, %v1421
        %v1434 = vmul.f32 %v1093, %v1423
        %v1435 = vmul.f32 %v1195, %v1423
        %v1436 = vmul.f32 %v1294, %v1425
        %v1437 = vmul.f32 %v1409, %v1425
        %v1446 = vrot.slane %v1430, 1
        %v1447 = vrot.slane %v1431, 1
        %v1448 = vrot.slane %v1432, 1
        %v1449 = vsel %vm1104, %v1446, %v1448
        %v1450 = vrot.slane %v1433, 1
        %v1451 = vsel %vm1104, %v1447, %v1450
        %v1452 = vrot.slane %v1434, 1
        %v1453 = vsel %vm1104, %v1448, %v1452
        %v1454 = vrot.slane %v1435, 1
        %v1455 = vsel %vm1104, %v1450, %v1454
        %v1456 = vrot.slane %v1436, 1
        %v1457 = vsel %vm1104, %v1452, %v1456
        %v1458 = vrot.slane %v1437, 1
        %v1459 = vsel %vm1104, %v1454, %v1458
        %1460 = vrot.lane.b32.xlu0 %v1446, 126
        %v1461 = vpop.permute.xlu0 %1460
        %1462 = vrot.lane.b32.xlu0 %v1447, 126
        %v1463 = vpop.permute.xlu0 %1462
        %1464 = vrot.lane.b32.xlu0 %v1449, 126
        %v1465 = vpop.permute.xlu0 %1464
        %1466 = vrot.lane.b32.xlu0 %v1451, 126
        %v1467 = vpop.permute.xlu0 %1466
        %1468 = vrot.lane.b32.xlu0 %v1453, 126
        %v1469 = vpop.permute.xlu0 %1468
        %1470 = vrot.lane.b32.xlu0 %v1455, 126
        %v1471 = vpop.permute.xlu0 %1470
        %1472 = vrot.lane.b32.xlu0 %v1457, 126
        %v1473 = vpop.permute.xlu0 %1472
        %1474 = vrot.lane.b32.xlu0 %v1459, 126
        %v1475 = vpop.permute.xlu0 %1474
        %1476 = vrot.lane.b32.xlu0 %v1456, 126
        %v1477 = vpop.permute.xlu0 %1476
        %1478 = vrot.lane.b32.xlu0 %v1458, 126
        %v1479 = vpop.permute.xlu0 %1478
        %v1480 = vsel %vm1267, %v1461, %v1463
        %v1481 = vsel %vm1267, %v1465, %v1467
        %v1482 = vsel %vm1267, %v1469, %v1471
        %v1483 = vsel %vm1267, %v1473, %v1475
        %v1484 = vsel %vm1267, %v1477, %v1479
        %v1495 = vadd.f32 %v1399, %v1461
        %v1496 = vadd.f32 %v1400, %v1480
        %v1497 = vadd.f32 %v1401, %v1465
        %v1498 = vadd.f32 %v1402, %v1481
        %v1499 = vadd.f32 %v1403, %v1469
        %v1500 = vadd.f32 %v1404, %v1482
        %v1501 = vadd.f32 %v1405, %v1473
        %v1502 = vadd.f32 %v1406, %v1483
        %v1503 = vadd.f32 %v1407, %v1477
        %v1504 = vadd.f32 %v1408, %v1484
        %v1505 = vld [vmem:[#allocation7 + $0x18] sm:$0xfe]
        %v1506 = vld [vmem:[#allocation7 + $0x20] sm:$0xfe]
        %v1507 = vld [vmem:[#allocation7 + $0x78] sm:$0x1]
        %v1508 = vld [vmem:[#allocation7 + $0x80] sm:$0x1]
        %v1509 = vld [vmem:[%s414] sm:$0xff]
        %v1510 = vld [vmem:[%s414 + $0x8] sm:$0xff]
        %v1511 = vld [vmem:[%s414 + $0x10] sm:$0xff]
        %v1512 = vld [vmem:[%s414 + $0x18] sm:$0xff]
        %vm1517 = vcmask 1040384
        %v1518 = vrot.slane %v1509, 7
        %v1519 = vrot.slane %v1510, 7
        %v1520 = vsel %vm1517, %v1518, %v1519
        %v1521 = vrot.slane %v1511, 7
        %v1522 = vsel %vm1517, %v1519, %v1521
        %v1523 = vrot.slane %v1512, 7
        %v1524 = vsel %vm1517, %v1521, %v1523
        %1525 = vrot.lane.b32.xlu0 %v1518, 127
        %v1526 = vpop.permute.xlu0 %1525
        %1527 = vrot.lane.b32.xlu0 %v1520, 127
        %v1528 = vpop.permute.xlu0 %1527
        %1529 = vrot.lane.b32.xlu0 %v1522, 127
        %v1530 = vpop.permute.xlu0 %1529
        %1531 = vrot.lane.b32.xlu0 %v1524, 127
        %v1532 = vpop.permute.xlu0 %1531
        %1533 = vrot.lane.b32.xlu0 %v1523, 127
        %v1534 = vpop.permute.xlu0 %1533
        %v1540 = vmul.f32 %v1505, %v1526
        %v1541 = vmul.f32 %v1506, %v1526
        %v1542 = vmul.f32 %v1090, %v1528
        %v1543 = vmul.f32 %v1091, %v1528
        %v1544 = vmul.f32 %v1092, %v1530
        %v1545 = vmul.f32 %v1093, %v1530
        %v1546 = vmul.f32 %v1293, %v1532
        %v1547 = vmul.f32 %v1294, %v1532
        %v1548 = vmul.f32 %v1507, %v1534
        %v1549 = vmul.f32 %v1508, %v1534
        %vm1560 = vcmask 1045504
        %v1561 = vrot.slane %v1540, 2
        %v1562 = vrot.slane %v1541, 2
        %v1563 = vrot.slane %v1542, 2
        %v1564 = vsel %vm1560, %v1561, %v1563
        %v1565 = vrot.slane %v1543, 2
        %v1566 = vsel %vm1560, %v1562, %v1565
        %v1567 = vrot.slane %v1544, 2
        %v1568 = vsel %vm1560, %v1563, %v1567
        %v1569 = vrot.slane %v1545, 2
        %v1570 = vsel %vm1560, %v1565, %v1569
        %v1571 = vrot.slane %v1546, 2
        %v1572 = vsel %vm1560, %v1567, %v1571
        %v1573 = vrot.slane %v1547, 2
        %v1574 = vsel %vm1560, %v1569, %v1573
        %v1575 = vrot.slane %v1548, 2
        %v1576 = vsel %vm1560, %v1571, %v1575
        %v1577 = vrot.slane %v1549, 2
        %v1578 = vsel %vm1560, %v1573, %v1577
        %v1589 = vadd.f32 %v1495, %v1561
        %v1590 = vadd.f32 %v1496, %v1562
        %v1591 = vadd.f32 %v1497, %v1564
        %v1592 = vadd.f32 %v1498, %v1566
        %v1593 = vadd.f32 %v1499, %v1568
        %v1594 = vadd.f32 %v1500, %v1570
        %v1595 = vadd.f32 %v1501, %v1572
        %v1596 = vadd.f32 %v1502, %v1574
        %v1597 = vadd.f32 %v1503, %v1576
        %v1598 = vadd.f32 %v1504, %v1578
        %v1599 = vld [vmem:[%s441] sm:$0xff]
        %v1600 = vld [vmem:[%s441 + $0x8] sm:$0xff]
        %v1601 = vld [vmem:[%s441 + $0x10] sm:$0xff]
        %v1602 = vld [vmem:[%s441 + $0x18] sm:$0xff]
        %v1607 = vrot.slane %v1599, 7
        %v1608 = vrot.slane %v1600, 7
        %v1609 = vsel %vm1517, %v1607, %v1608
        %v1610 = vrot.slane %v1601, 7
        %v1611 = vsel %vm1517, %v1608, %v1610
        %v1612 = vrot.slane %v1602, 7
        %v1613 = vsel %vm1517, %v1610, %v1612
        %v1619 = vmul.f32 %v1506, %v1607
        %v1620 = vmul.f32 %v1091, %v1609
        %v1621 = vmul.f32 %v1093, %v1611
        %v1622 = vmul.f32 %v1294, %v1613
        %v1623 = vmul.f32 %v1508, %v1612
        %v1629 = vrot.slane %v1619, 2
        %v1630 = vrot.slane %v1620, 2
        %v1631 = vsel %vm1560, %v1629, %v1630
        %v1632 = vrot.slane %v1621, 2
        %v1633 = vsel %vm1560, %v1630, %v1632
        %v1634 = vrot.slane %v1622, 2
        %v1635 = vsel %vm1560, %v1632, %v1634
        %v1636 = vrot.slane %v1623, 2
        %v1637 = vsel %vm1560, %v1634, %v1636
        %1638 = vrot.lane.b32.xlu0 %v1629, 127
        %v1639 = vpop.permute.xlu0 %1638
        %1640 = vrot.lane.b32.xlu0 %v1631, 127
        %v1641 = vpop.permute.xlu0 %1640
        %1642 = vrot.lane.b32.xlu0 %v1633, 127
        %v1643 = vpop.permute.xlu0 %1642
        %1644 = vrot.lane.b32.xlu0 %v1635, 127
        %v1645 = vpop.permute.xlu0 %1644
        %1646 = vrot.lane.b32.xlu0 %v1637, 127
        %v1647 = vpop.permute.xlu0 %1646
        %v1653 = vadd.f32 %v1589, %v1639
        %v1654 = vadd.f32 %v1590, %v1639
        %v1655 = vadd.f32 %v1591, %v1641
        %v1656 = vadd.f32 %v1592, %v1641
        %v1657 = vadd.f32 %v1593, %v1643
        %v1658 = vadd.f32 %v1594, %v1643
        %v1659 = vadd.f32 %v1595, %v1645
        %v1660 = vadd.f32 %v1596, %v1645
        %v1661 = vadd.f32 %v1597, %v1647
        %v1662 = vadd.f32 %v1598, %v1647
        %v1663 = vld [vmem:[#allocation7 + $0x20] sm:$0xfe]
        %v1664 = vld [vmem:[#allocation7 + $0x28] sm:$0xfe]
        %v1665 = vld [vmem:[#allocation7 + $0x38] sm:$0xff]
        %v1666 = vld [vmem:[#allocation7 + $0x40] sm:$0xff]
        %v1667 = vld [vmem:[#allocation7 + $0x50] sm:$0xff]
        %v1668 = vld [vmem:[#allocation7 + $0x58] sm:$0xff]
        %v1669 = vld [vmem:[#allocation7 + $0x68] sm:$0xff]
        %v1670 = vld [vmem:[#allocation7 + $0x70] sm:$0xff]
        %v1671 = vld [vmem:[#allocation7 + $0x80] sm:$0x1]
        %v1672 = vld [vmem:[#allocation7 + $0x88] sm:$0x1]
        %v1673 = vld [vmem:[%s468] sm:$0xff]
        %v1674 = vld [vmem:[%s468 + $0x8] sm:$0xff]
        %v1675 = vld [vmem:[%s468 + $0x10] sm:$0xff]
        %v1676 = vld [vmem:[%s468 + $0x18] sm:$0xff]
        %v1681 = vrot.slane %v1673, 7
        %v1682 = vrot.slane %v1674, 7
        %v1683 = vsel %vm1517, %v1681, %v1682
        %v1684 = vrot.slane %v1675, 7
        %v1685 = vsel %vm1517, %v1682, %v1684
        %v1686 = vrot.slane %v1676, 7
        %v1687 = vsel %vm1517, %v1684, %v1686
        %1688 = vrot.lane.b32.xlu0 %v1681, 1
        %v1689 = vpop.permute.xlu0 %1688
        %1690 = vrot.lane.b32.xlu0 %v1683, 1
        %v1691 = vpop.permute.xlu0 %1690
        %1692 = vrot.lane.b32.xlu0 %v1685, 1
        %v1693 = vpop.permute.xlu0 %1692
        %1694 = vrot.lane.b32.xlu0 %v1687, 1
        %v1695 = vpop.permute.xlu0 %1694
        %1696 = vrot.lane.b32.xlu0 %v1686, 1
        %v1697 = vpop.permute.xlu0 %1696
        %v1703 = vmul.f32 %v1663, %v1689
        %v1704 = vmul.f32 %v1664, %v1689
        %v1705 = vmul.f32 %v1665, %v1691
        %v1706 = vmul.f32 %v1666, %v1691
        %v1707 = vmul.f32 %v1667, %v1693
        %v1708 = vmul.f32 %v1668, %v1693
        %v1709 = vmul.f32 %v1669, %v1695
        %v1710 = vmul.f32 %v1670, %v1695
        %v1711 = vmul.f32 %v1671, %v1697
        %v1712 = vmul.f32 %v1672, %v1697
        %v1723 = vrot.slane %v1703, 2
        %v1724 = vrot.slane %v1704, 2
        %v1725 = vrot.slane %v1705, 2
        %v1726 = vsel %vm1560, %v1723, %v1725
        %v1727 = vrot.slane %v1706, 2
        %v1728 = vsel %vm1560, %v1724, %v1727
        %v1729 = vrot.slane %v1707, 2
        %v1730 = vsel %vm1560, %v1725, %v1729
        %v1731 = vrot.slane %v1708, 2
        %v1732 = vsel %vm1560, %v1727, %v1731
        %v1733 = vrot.slane %v1709, 2
        %v1734 = vsel %vm1560, %v1729, %v1733
        %v1735 = vrot.slane %v1710, 2
        %v1736 = vsel %vm1560, %v1731, %v1735
        %v1737 = vrot.slane %v1711, 2
        %v1738 = vsel %vm1560, %v1733, %v1737
        %v1739 = vrot.slane %v1712, 2
        %v1740 = vsel %vm1560, %v1735, %v1739
        %1741 = vrot.lane.b32.xlu0 %v1723, 126
        %v1742 = vpop.permute.xlu0 %1741
        %1743 = vrot.lane.b32.xlu0 %v1724, 126
        %v1744 = vpop.permute.xlu0 %1743
        %1745 = vrot.lane.b32.xlu0 %v1726, 126
        %v1746 = vpop.permute.xlu0 %1745
        %1747 = vrot.lane.b32.xlu0 %v1728, 126
        %v1748 = vpop.permute.xlu0 %1747
        %1749 = vrot.lane.b32.xlu0 %v1730, 126
        %v1750 = vpop.permute.xlu0 %1749
        %1751 = vrot.lane.b32.xlu0 %v1732, 126
        %v1752 = vpop.permute.xlu0 %1751
        %1753 = vrot.lane.b32.xlu0 %v1734, 126
        %v1754 = vpop.permute.xlu0 %1753
        %1755 = vrot.lane.b32.xlu0 %v1736, 126
        %v1756 = vpop.permute.xlu0 %1755
        %1757 = vrot.lane.b32.xlu0 %v1738, 126
        %v1758 = vpop.permute.xlu0 %1757
        %1759 = vrot.lane.b32.xlu0 %v1740, 126
        %v1760 = vpop.permute.xlu0 %1759
        %v1761 = vsel %vm1267, %v1742, %v1744
        %v1762 = vsel %vm1267, %v1746, %v1748
        %v1763 = vsel %vm1267, %v1750, %v1752
        %v1764 = vsel %vm1267, %v1754, %v1756
        %v1765 = vsel %vm1267, %v1758, %v1760
        %v1776 = vadd.f32 %v1653, %v1742
        %v1777 = vadd.f32 %v1654, %v1761
        %v1778 = vadd.f32 %v1655, %v1746
        %v1779 = vadd.f32 %v1656, %v1762
        %v1780 = vadd.f32 %v1657, %v1750
        %v1781 = vadd.f32 %v1658, %v1763
        %v1782 = vadd.f32 %v1659, %v1754
        %v1783 = vadd.f32 %v1660, %v1764
        %v1784 = vadd.f32 %v1661, %v1758
        %v1785 = vadd.f32 %v1662, %v1765
        %v1786 = vld [vmem:[#allocation7] sm:$0xc0]
        %v1787 = vld [vmem:[#allocation7 + $0x8] sm:$0xc0]
        %v1788 = vld [vmem:[#allocation7 + $0x60] sm:$0x3f]
        %v1789 = vld [vmem:[#allocation7 + $0x68] sm:$0x3f]
        %v1790 = vld [vmem:[%s719] sm:$0xff]
        %v1791 = vld [vmem:[%s719 + $0x8] sm:$0xff]
        %v1792 = vld [vmem:[%s719 + $0x10] sm:$0xff]
        %v1793 = vld [vmem:[%s719 + $0x18] sm:$0xff]
        %v1798 = vrot.slane %v1790, 2
        %v1799 = vrot.slane %v1791, 2
        %v1800 = vsel %vm1560, %v1798, %v1799
        %v1801 = vrot.slane %v1792, 2
        %v1802 = vsel %vm1560, %v1799, %v1801
        %v1803 = vrot.slane %v1793, 2
        %v1804 = vsel %vm1560, %v1801, %v1803
        %1805 = vrot.lane.b32.xlu0 %v1798, 126
        %v1806 = vpop.permute.xlu0 %1805
        %1807 = vrot.lane.b32.xlu0 %v1800, 126
        %v1808 = vpop.permute.xlu0 %1807
        %1809 = vrot.lane.b32.xlu0 %v1802, 126
        %v1810 = vpop.permute.xlu0 %1809
        %1811 = vrot.lane.b32.xlu0 %v1804, 126
        %v1812 = vpop.permute.xlu0 %1811
        %1813 = vrot.lane.b32.xlu0 %v1803, 126
        %v1814 = vpop.permute.xlu0 %1813
        %v1820 = vmul.f32 %v1786, %v1806
        %v1821 = vmul.f32 %v1787, %v1806
        %v1822 = vmul.f32 %v1088, %v1808
        %v1823 = vmul.f32 %v1089, %v1808
        %v1824 = vmul.f32 %v1090, %v1810
        %v1825 = vmul.f32 %v1091, %v1810
        %v1826 = vmul.f32 %v1092, %v1812
        %v1827 = vmul.f32 %v1093, %v1812
        %v1828 = vmul.f32 %v1788, %v1814
        %v1829 = vmul.f32 %v1789, %v1814
        %v1840 = vrot.slane %v1820, 7
        %v1841 = vrot.slane %v1821, 7
        %v1842 = vrot.slane %v1822, 7
        %v1843 = vsel %vm1517, %v1840, %v1842
        %v1844 = vrot.slane %v1823, 7
        %v1845 = vsel %vm1517, %v1841, %v1844
        %v1846 = vrot.slane %v1824, 7
        %v1847 = vsel %vm1517, %v1842, %v1846
        %v1848 = vrot.slane %v1825, 7
        %v1849 = vsel %vm1517, %v1844, %v1848
        %v1850 = vrot.slane %v1826, 7
        %v1851 = vsel %vm1517, %v1846, %v1850
        %v1852 = vrot.slane %v1827, 7
        %v1853 = vsel %vm1517, %v1848, %v1852
        %v1854 = vrot.slane %v1828, 7
        %v1855 = vsel %vm1517, %v1850, %v1854
        %v1856 = vrot.slane %v1829, 7
        %v1857 = vsel %vm1517, %v1852, %v1856
        %1858 = vrot.lane.b32.xlu0 %v1840, 1
        %v1859 = vpop.permute.xlu0 %1858
        %1860 = vrot.lane.b32.xlu0 %v1841, 1
        %v1861 = vpop.permute.xlu0 %1860
        %1862 = vrot.lane.b32.xlu0 %v1843, 1
        %v1863 = vpop.permute.xlu0 %1862
        %1864 = vrot.lane.b32.xlu0 %v1845, 1
        %v1865 = vpop.permute.xlu0 %1864
        %1866 = vrot.lane.b32.xlu0 %v1847, 1
        %v1867 = vpop.permute.xlu0 %1866
        %1868 = vrot.lane.b32.xlu0 %v1849, 1
        %v1869 = vpop.permute.xlu0 %1868
        %1870 = vrot.lane.b32.xlu0 %v1851, 1
        %v1871 = vpop.permute.xlu0 %1870
        %1872 = vrot.lane.b32.xlu0 %v1853, 1
        %v1873 = vpop.permute.xlu0 %1872
        %1874 = vrot.lane.b32.xlu0 %v1855, 1
        %v1875 = vpop.permute.xlu0 %1874
        %1876 = vrot.lane.b32.xlu0 %v1857, 1
        %v1877 = vpop.permute.xlu0 %1876
        %vm1878 = vcmask 7168
        %v1879 = vsel %vm1878, %v1859, %v1861
        %v1880 = vsel %vm1878, %v1863, %v1865
        %v1881 = vsel %vm1878, %v1867, %v1869
        %v1882 = vsel %vm1878, %v1871, %v1873
        %v1883 = vsel %vm1878, %v1875, %v1877
        %v1894 = vadd.f32 %v1776, %v1859
        %v1895 = vadd.f32 %v1777, %v1879
        %v1896 = vadd.f32 %v1778, %v1863
        %v1897 = vadd.f32 %v1779, %v1880
        %v1898 = vadd.f32 %v1780, %v1867
        %v1899 = vadd.f32 %v1781, %v1881
        %v1900 = vadd.f32 %v1782, %v1871
        %v1901 = vadd.f32 %v1783, %v1882
        %v1902 = vadd.f32 %v1784, %v1875
        %v1903 = vadd.f32 %v1785, %v1883
        %v1904 = vld [vmem:[%s742] sm:$0xff]
        %v1905 = vld [vmem:[%s742 + $0x8] sm:$0xff]
        %v1906 = vld [vmem:[%s742 + $0x10] sm:$0xff]
        %v1907 = vld [vmem:[%s742 + $0x18] sm:$0xff]
        %v1912 = vrot.slane %v1904, 2
        %v1913 = vrot.slane %v1905, 2
        %v1914 = vsel %vm1560, %v1912, %v1913
        %v1915 = vrot.slane %v1906, 2
        %v1916 = vsel %vm1560, %v1913, %v1915
        %v1917 = vrot.slane %v1907, 2
        %v1918 = vsel %vm1560, %v1915, %v1917
        %v1924 = vmul.f32 %v1787, %v1912
        %v1925 = vmul.f32 %v1089, %v1914
        %v1926 = vmul.f32 %v1091, %v1916
        %v1927 = vmul.f32 %v1093, %v1918
        %v1928 = vmul.f32 %v1789, %v1917
        %v1934 = vrot.slane %v1924, 7
        %v1935 = vrot.slane %v1925, 7
        %v1936 = vsel %vm1517, %v1934, %v1935
        %v1937 = vrot.slane %v1926, 7
        %v1938 = vsel %vm1517, %v1935, %v1937
        %v1939 = vrot.slane %v1927, 7
        %v1940 = vsel %vm1517, %v1937, %v1939
        %v1941 = vrot.slane %v1928, 7
        %v1942 = vsel %vm1517, %v1939, %v1941
        %1943 = vrot.lane.b32.xlu0 %v1934, 127
        %v1944 = vpop.permute.xlu0 %1943
        %1945 = vrot.lane.b32.xlu0 %v1936, 127
        %v1946 = vpop.permute.xlu0 %1945
        %1947 = vrot.lane.b32.xlu0 %v1938, 127
        %v1948 = vpop.permute.xlu0 %1947
        %1949 = vrot.lane.b32.xlu0 %v1940, 127
        %v1950 = vpop.permute.xlu0 %1949
        %1951 = vrot.lane.b32.xlu0 %v1942, 127
        %v1952 = vpop.permute.xlu0 %1951
        %v1958 = vadd.f32 %v1894, %v1944
        %v1959 = vadd.f32 %v1895, %v1944
        %v1960 = vadd.f32 %v1896, %v1946
        %v1961 = vadd.f32 %v1897, %v1946
        %v1962 = vadd.f32 %v1898, %v1948
        %v1963 = vadd.f32 %v1899, %v1948
        %v1964 = vadd.f32 %v1900, %v1950
        %v1965 = vadd.f32 %v1901, %v1950
        %v1966 = vadd.f32 %v1902, %v1952
        %v1967 = vadd.f32 %v1903, %v1952
        %v1968 = vld [vmem:[#allocation7 + $0x10] sm:$0xc0]
        %v1969 = vld [vmem:[#allocation7 + $0x70] sm:$0x3f]
        %v1970 = vld [vmem:[%s769] sm:$0xff]
        %v1971 = vld [vmem:[%s769 + $0x8] sm:$0xff]
        %v1972 = vld [vmem:[%s769 + $0x10] sm:$0xff]
        %v1973 = vld [vmem:[%s769 + $0x18] sm:$0xff]
        %v1978 = vrot.slane %v1970, 2
        %v1979 = vrot.slane %v1971, 2
        %v1980 = vsel %vm1560, %v1978, %v1979
        %v1981 = vrot.slane %v1972, 2
        %v1982 = vsel %vm1560, %v1979, %v1981
        %v1983 = vrot.slane %v1973, 2
        %v1984 = vsel %vm1560, %v1981, %v1983
        %1985 = vrot.lane.b32.xlu0 %v1978, 2
        %v1986 = vpop.permute.xlu0 %1985
        %1987 = vrot.lane.b32.xlu0 %v1980, 2
        %v1988 = vpop.permute.xlu0 %1987
        %1989 = vrot.lane.b32.xlu0 %v1982, 2
        %v1990 = vpop.permute.xlu0 %1989
        %1991 = vrot.lane.b32.xlu0 %v1984, 2
        %v1992 = vpop.permute.xlu0 %1991
        %1993 = vrot.lane.b32.xlu0 %v1983, 2
        %v1994 = vpop.permute.xlu0 %1993
        %v2000 = vmul.f32 %v1787, %v1986
        %v2001 = vmul.f32 %v1968, %v1986
        %v2002 = vmul.f32 %v1089, %v1988
        %v2003 = vmul.f32 %v1193, %v1988
        %v2004 = vmul.f32 %v1091, %v1990
        %v2005 = vmul.f32 %v1194, %v1990
        %v2006 = vmul.f32 %v1093, %v1992
        %v2007 = vmul.f32 %v1195, %v1992
        %v2008 = vmul.f32 %v1789, %v1994
        %v2009 = vmul.f32 %v1969, %v1994
        %v2020 = vrot.slane %v2000, 7
        %v2021 = vrot.slane %v2001, 7
        %v2022 = vrot.slane %v2002, 7
        %v2023 = vsel %vm1517, %v2020, %v2022
        %v2024 = vrot.slane %v2003, 7
        %v2025 = vsel %vm1517, %v2021, %v2024
        %v2026 = vrot.slane %v2004, 7
        %v2027 = vsel %vm1517, %v2022, %v2026
        %v2028 = vrot.slane %v2005, 7
        %v2029 = vsel %vm1517, %v2024, %v2028
        %v2030 = vrot.slane %v2006, 7
        %v2031 = vsel %vm1517, %v2026, %v2030
        %v2032 = vrot.slane %v2007, 7
        %v2033 = vsel %vm1517, %v2028, %v2032
        %v2034 = vrot.slane %v2008, 7
        %v2035 = vsel %vm1517, %v2030, %v2034
        %v2036 = vrot.slane %v2009, 7
        %v2037 = vsel %vm1517, %v2032, %v2036
        %2038 = vrot.lane.b32.xlu0 %v2020, 125
        %v2039 = vpop.permute.xlu0 %2038
        %2040 = vrot.lane.b32.xlu0 %v2021, 125
        %v2041 = vpop.permute.xlu0 %2040
        %2042 = vrot.lane.b32.xlu0 %v2023, 125
        %v2043 = vpop.permute.xlu0 %2042
        %2044 = vrot.lane.b32.xlu0 %v2025, 125
        %v2045 = vpop.permute.xlu0 %2044
        %2046 = vrot.lane.b32.xlu0 %v2027, 125
        %v2047 = vpop.permute.xlu0 %2046
        %2048 = vrot.lane.b32.xlu0 %v2029, 125
        %v2049 = vpop.permute.xlu0 %2048
        %2050 = vrot.lane.b32.xlu0 %v2031, 125
        %v2051 = vpop.permute.xlu0 %2050
        %2052 = vrot.lane.b32.xlu0 %v2033, 125
        %v2053 = vpop.permute.xlu0 %2052
        %2054 = vrot.lane.b32.xlu0 %v2035, 125
        %v2055 = vpop.permute.xlu0 %2054
        %2056 = vrot.lane.b32.xlu0 %v2037, 125
        %v2057 = vpop.permute.xlu0 %2056
        %vm2058 = vcmask 1022976
        %v2059 = vsel %vm2058, %v2039, %v2041
        %v2060 = vsel %vm2058, %v2043, %v2045
        %v2061 = vsel %vm2058, %v2047, %v2049
        %v2062 = vsel %vm2058, %v2051, %v2053
        %v2063 = vsel %vm2058, %v2055, %v2057
        %v2074 = vadd.f32 %v1958, %v2039
        %v2075 = vadd.f32 %v1959, %v2059
        %v2076 = vadd.f32 %v1960, %v2043
        %v2077 = vadd.f32 %v1961, %v2060
        %v2078 = vadd.f32 %v1962, %v2047
        %v2079 = vadd.f32 %v1963, %v2061
        %v2080 = vadd.f32 %v1964, %v2051
        %v2081 = vadd.f32 %v1965, %v2062
        %v2082 = vadd.f32 %v1966, %v2055
        %v2083 = vadd.f32 %v1967, %v2063
        %v2084 = vld [vmem:[%s796] sm:$0xff]
        %v2085 = vld [vmem:[%s796 + $0x8] sm:$0xff]
        %v2086 = vld [vmem:[%s796 + $0x10] sm:$0xff]
        %v2087 = vld [vmem:[%s796 + $0x18] sm:$0xff]
        %2092 = vrot.lane.b32.xlu0 %v2084, 126
        %v2093 = vpop.permute.xlu0 %2092
        %2094 = vrot.lane.b32.xlu0 %v2085, 126
        %v2095 = vpop.permute.xlu0 %2094
        %2096 = vrot.lane.b32.xlu0 %v2086, 126
        %v2097 = vpop.permute.xlu0 %2096
        %2098 = vrot.lane.b32.xlu0 %v2087, 126
        %v2099 = vpop.permute.xlu0 %2098
        %v2104 = vmul.f32 %v1088, %v2093
        %v2105 = vmul.f32 %v1089, %v2093
        %v2106 = vmul.f32 %v1090, %v2095
        %v2107 = vmul.f32 %v1091, %v2095
        %v2108 = vmul.f32 %v1092, %v2097
        %v2109 = vmul.f32 %v1093, %v2097
        %v2110 = vmul.f32 %v1293, %v2099
        %v2111 = vmul.f32 %v1294, %v2099
        %v2120 = vrot.slane %v2104, 1
        %v2121 = vrot.slane %v2105, 1
        %v2122 = vrot.slane %v2106, 1
        %v2123 = vsel %vm1104, %v2120, %v2122
        %v2124 = vrot.slane %v2107, 1
        %v2125 = vsel %vm1104, %v2121, %v2124
        %v2126 = vrot.slane %v2108, 1
        %v2127 = vsel %vm1104, %v2122, %v2126
        %v2128 = vrot.slane %v2109, 1
        %v2129 = vsel %vm1104, %v2124, %v2128
        %v2130 = vrot.slane %v2110, 1
        %v2131 = vsel %vm1104, %v2126, %v2130
        %v2132 = vrot.slane %v2111, 1
        %v2133 = vsel %vm1104, %v2128, %v2132
        %2134 = vrot.lane.b32.xlu0 %v2120, 1
        %v2135 = vpop.permute.xlu0 %2134
        %2136 = vrot.lane.b32.xlu0 %v2121, 1
        %v2137 = vpop.permute.xlu0 %2136
        %2138 = vrot.lane.b32.xlu0 %v2123, 1
        %v2139 = vpop.permute.xlu0 %2138
        %2140 = vrot.lane.b32.xlu0 %v2125, 1
        %v2141 = vpop.permute.xlu0 %2140
        %2142 = vrot.lane.b32.xlu0 %v2127, 1
        %v2143 = vpop.permute.xlu0 %2142
        %2144 = vrot.lane.b32.xlu0 %v2129, 1
        %v2145 = vpop.permute.xlu0 %2144
        %2146 = vrot.lane.b32.xlu0 %v2131, 1
        %v2147 = vpop.permute.xlu0 %2146
        %2148 = vrot.lane.b32.xlu0 %v2133, 1
        %v2149 = vpop.permute.xlu0 %2148
        %2150 = vrot.lane.b32.xlu0 %v2130, 1
        %v2151 = vpop.permute.xlu0 %2150
        %2152 = vrot.lane.b32.xlu0 %v2132, 1
        %v2153 = vpop.permute.xlu0 %2152
        %v2154 = vsel %vm1878, %v2135, %v2137
        %v2155 = vsel %vm1878, %v2139, %v2141
        %v2156 = vsel %vm1878, %v2143, %v2145
        %v2157 = vsel %vm1878, %v2147, %v2149
        %v2158 = vsel %vm1878, %v2151, %v2153
        %v2169 = vadd.f32 %v2074, %v2135
        %v2170 = vadd.f32 %v2075, %v2154
        %v2171 = vadd.f32 %v2076, %v2139
        %v2172 = vadd.f32 %v2077, %v2155
        %v2173 = vadd.f32 %v2078, %v2143
        %v2174 = vadd.f32 %v2079, %v2156
        %v2175 = vadd.f32 %v2080, %v2147
        %v2176 = vadd.f32 %v2081, %v2157
        %v2177 = vadd.f32 %v2082, %v2151
        %v2178 = vadd.f32 %v2083, %v2158
        %v2179 = vld [vmem:[%s823] sm:$0xff]
        %v2180 = vld [vmem:[%s823 + $0x8] sm:$0xff]
        %v2181 = vld [vmem:[%s823 + $0x10] sm:$0xff]
        %v2182 = vld [vmem:[%s823 + $0x18] sm:$0xff]
        %v2183 = vmul.f32 %v1089, %v2179
        %v2184 = vmul.f32 %v1091, %v2180
        %v2185 = vmul.f32 %v1093, %v2181
        %v2186 = vmul.f32 %v1294, %v2182
        %v2191 = vrot.slane %v2183, 1
        %v2192 = vrot.slane %v2184, 1
        %v2193 = vsel %vm1104, %v2191, %v2192
        %v2194 = vrot.slane %v2185, 1
        %v2195 = vsel %vm1104, %v2192, %v2194
        %v2196 = vrot.slane %v2186, 1
        %v2197 = vsel %vm1104, %v2194, %v2196
        %2198 = vrot.lane.b32.xlu0 %v2191, 127
        %v2199 = vpop.permute.xlu0 %2198
        %2200 = vrot.lane.b32.xlu0 %v2193, 127
        %v2201 = vpop.permute.xlu0 %2200
        %2202 = vrot.lane.b32.xlu0 %v2195, 127
        %v2203 = vpop.permute.xlu0 %2202
        %2204 = vrot.lane.b32.xlu0 %v2197, 127
        %v2205 = vpop.permute.xlu0 %2204
        %2206 = vrot.lane.b32.xlu0 %v2196, 127
        %v2207 = vpop.permute.xlu0 %2206
        %v2213 = vadd.f32 %v2169, %v2199
        %v2214 = vadd.f32 %v2170, %v2199
        %v2215 = vadd.f32 %v2171, %v2201
        %v2216 = vadd.f32 %v2172, %v2201
        %v2217 = vadd.f32 %v2173, %v2203
        %v2218 = vadd.f32 %v2174, %v2203
        %v2219 = vadd.f32 %v2175, %v2205
        %v2220 = vadd.f32 %v2176, %v2205
        %v2221 = vadd.f32 %v2177, %v2207
        %v2222 = vadd.f32 %v2178, %v2207
        %v2223 = vld [vmem:[%s850] sm:$0xff]
        %v2224 = vld [vmem:[%s850 + $0x8] sm:$0xff]
        %v2225 = vld [vmem:[%s850 + $0x10] sm:$0xff]
        %v2226 = vld [vmem:[%s850 + $0x18] sm:$0xff]
        %2231 = vrot.lane.b32.xlu0 %v2223, 2
        %v2232 = vpop.permute.xlu0 %2231
        %2233 = vrot.lane.b32.xlu0 %v2224, 2
        %v2234 = vpop.permute.xlu0 %2233
        %2235 = vrot.lane.b32.xlu0 %v2225, 2
        %v2236 = vpop.permute.xlu0 %2235
        %2237 = vrot.lane.b32.xlu0 %v2226, 2
        %v2238 = vpop.permute.xlu0 %2237
        %v2243 = vmul.f32 %v1089, %v2232
        %v2244 = vmul.f32 %v1193, %v2232
        %v2245 = vmul.f32 %v1091, %v2234
        %v2246 = vmul.f32 %v1194, %v2234
        %v2247 = vmul.f32 %v1093, %v2236
        %v2248 = vmul.f32 %v1195, %v2236
        %v2249 = vmul.f32 %v1294, %v2238
        %v2250 = vmul.f32 %v1409, %v2238
        %v2259 = vrot.slane %v2243, 1
        %v2260 = vrot.slane %v2244, 1
        %v2261 = vrot.slane %v2245, 1
        %v2262 = vsel %vm1104, %v2259, %v2261
        %v2263 = vrot.slane %v2246, 1
        %v2264 = vsel %vm1104, %v2260, %v2263
        %v2265 = vrot.slane %v2247, 1
        %v2266 = vsel %vm1104, %v2261, %v2265
        %v2267 = vrot.slane %v2248, 1
        %v2268 = vsel %vm1104, %v2263, %v2267
        %v2269 = vrot.slane %v2249, 1
        %v2270 = vsel %vm1104, %v2265, %v2269
        %v2271 = vrot.slane %v2250, 1
        %v2272 = vsel %vm1104, %v2267, %v2271
        %2273 = vrot.lane.b32.xlu0 %v2259, 125
        %v2274 = vpop.permute.xlu0 %2273
        %2275 = vrot.lane.b32.xlu0 %v2260, 125
        %v2276 = vpop.permute.xlu0 %2275
        %2277 = vrot.lane.b32.xlu0 %v2262, 125
        %v2278 = vpop.permute.xlu0 %2277
        %2279 = vrot.lane.b32.xlu0 %v2264, 125
        %v2280 = vpop.permute.xlu0 %2279
        %2281 = vrot.lane.b32.xlu0 %v2266, 125
        %v2282 = vpop.permute.xlu0 %2281
        %2283 = vrot.lane.b32.xlu0 %v2268, 125
        %v2284 = vpop.permute.xlu0 %2283
        %2285 = vrot.lane.b32.xlu0 %v2270, 125
        %v2286 = vpop.permute.xlu0 %2285
        %2287 = vrot.lane.b32.xlu0 %v2272, 125
        %v2288 = vpop.permute.xlu0 %2287
        %2289 = vrot.lane.b32.xlu0 %v2269, 125
        %v2290 = vpop.permute.xlu0 %2289
        %2291 = vrot.lane.b32.xlu0 %v2271, 125
        %v2292 = vpop.permute.xlu0 %2291
        %v2293 = vsel %vm2058, %v2274, %v2276
        %v2294 = vsel %vm2058, %v2278, %v2280
        %v2295 = vsel %vm2058, %v2282, %v2284
        %v2296 = vsel %vm2058, %v2286, %v2288
        %v2297 = vsel %vm2058, %v2290, %v2292
        %v2308 = vadd.f32 %v2213, %v2274
        %v2309 = vadd.f32 %v2214, %v2293
        %v2310 = vadd.f32 %v2215, %v2278
        %v2311 = vadd.f32 %v2216, %v2294
        %v2312 = vadd.f32 %v2217, %v2282
        %v2313 = vadd.f32 %v2218, %v2295
        %v2314 = vadd.f32 %v2219, %v2286
        %v2315 = vadd.f32 %v2220, %v2296
        %v2316 = vadd.f32 %v2221, %v2290
        %v2317 = vadd.f32 %v2222, %v2297
        %v2318 = vld [vmem:[#allocation7 + $0x18] sm:$0xfc]
        %v2319 = vld [vmem:[#allocation7 + $0x20] sm:$0xfc]
        %v2320 = vld [vmem:[#allocation7 + $0x78] sm:$0x3]
        %v2321 = vld [vmem:[#allocation7 + $0x80] sm:$0x3]
        %v2322 = vld [vmem:[%s877] sm:$0xff]
        %v2323 = vld [vmem:[%s877 + $0x8] sm:$0xff]
        %v2324 = vld [vmem:[%s877 + $0x10] sm:$0xff]
        %v2325 = vld [vmem:[%s877 + $0x18] sm:$0xff]
        %vm2330 = vcmask 1041408
        %v2331 = vrot.slane %v2322, 6
        %v2332 = vrot.slane %v2323, 6
        %v2333 = vsel %vm2330, %v2331, %v2332
        %v2334 = vrot.slane %v2324, 6
        %v2335 = vsel %vm2330, %v2332, %v2334
        %v2336 = vrot.slane %v2325, 6
        %v2337 = vsel %vm2330, %v2334, %v2336
        %2338 = vrot.lane.b32.xlu0 %v2331, 126
        %v2339 = vpop.permute.xlu0 %2338
        %2340 = vrot.lane.b32.xlu0 %v2333, 126
        %v2341 = vpop.permute.xlu0 %2340
        %2342 = vrot.lane.b32.xlu0 %v2335, 126
        %v2343 = vpop.permute.xlu0 %2342
        %2344 = vrot.lane.b32.xlu0 %v2337, 126
        %v2345 = vpop.permute.xlu0 %2344
        %2346 = vrot.lane.b32.xlu0 %v2336, 126
        %v2347 = vpop.permute.xlu0 %2346
        %v2353 = vmul.f32 %v2318, %v2339
        %v2354 = vmul.f32 %v2319, %v2339
        %v2355 = vmul.f32 %v1090, %v2341
        %v2356 = vmul.f32 %v1091, %v2341
        %v2357 = vmul.f32 %v1092, %v2343
        %v2358 = vmul.f32 %v1093, %v2343
        %v2359 = vmul.f32 %v1293, %v2345
        %v2360 = vmul.f32 %v1294, %v2345
        %v2361 = vmul.f32 %v2320, %v2347
        %v2362 = vmul.f32 %v2321, %v2347
        %vm2373 = vcmask 1044480
        %v2374 = vrot.slane %v2353, 3
        %v2375 = vrot.slane %v2354, 3
        %v2376 = vrot.slane %v2355, 3
        %v2377 = vsel %vm2373, %v2374, %v2376
        %v2378 = vrot.slane %v2356, 3
        %v2379 = vsel %vm2373, %v2375, %v2378
        %v2380 = vrot.slane %v2357, 3
        %v2381 = vsel %vm2373, %v2376, %v2380
        %v2382 = vrot.slane %v2358, 3
        %v2383 = vsel %vm2373, %v2378, %v2382
        %v2384 = vrot.slane %v2359, 3
        %v2385 = vsel %vm2373, %v2380, %v2384
        %v2386 = vrot.slane %v2360, 3
        %v2387 = vsel %vm2373, %v2382, %v2386
        %v2388 = vrot.slane %v2361, 3
        %v2389 = vsel %vm2373, %v2384, %v2388
        %v2390 = vrot.slane %v2362, 3
        %v2391 = vsel %vm2373, %v2386, %v2390
        %2392 = vrot.lane.b32.xlu0 %v2374, 1
        %v2393 = vpop.permute.xlu0 %2392
        %2394 = vrot.lane.b32.xlu0 %v2375, 1
        %v2395 = vpop.permute.xlu0 %2394
        %2396 = vrot.lane.b32.xlu0 %v2377, 1
        %v2397 = vpop.permute.xlu0 %2396
        %2398 = vrot.lane.b32.xlu0 %v2379, 1
        %v2399 = vpop.permute.xlu0 %2398
        %2400 = vrot.lane.b32.xlu0 %v2381, 1
        %v2401 = vpop.permute.xlu0 %2400
        %2402 = vrot.lane.b32.xlu0 %v2383, 1
        %v2403 = vpop.permute.xlu0 %2402
        %2404 = vrot.lane.b32.xlu0 %v2385, 1
        %v2405 = vpop.permute.xlu0 %2404
        %2406 = vrot.lane.b32.xlu0 %v2387, 1
        %v2407 = vpop.permute.xlu0 %2406
        %2408 = vrot.lane.b32.xlu0 %v2389, 1
        %v2409 = vpop.permute.xlu0 %2408
        %2410 = vrot.lane.b32.xlu0 %v2391, 1
        %v2411 = vpop.permute.xlu0 %2410
        %v2412 = vsel %vm1878, %v2393, %v2395
        %v2413 = vsel %vm1878, %v2397, %v2399
        %v2414 = vsel %vm1878, %v2401, %v2403
        %v2415 = vsel %vm1878, %v2405, %v2407
        %v2416 = vsel %vm1878, %v2409, %v2411
        %v2427 = vadd.f32 %v2308, %v2393
        %v2428 = vadd.f32 %v2309, %v2412
        %v2429 = vadd.f32 %v2310, %v2397
        %v2430 = vadd.f32 %v2311, %v2413
        %v2431 = vadd.f32 %v2312, %v2401
        %v2432 = vadd.f32 %v2313, %v2414
        %v2433 = vadd.f32 %v2314, %v2405
        %v2434 = vadd.f32 %v2315, %v2415
        %v2435 = vadd.f32 %v2316, %v2409
        %v2436 = vadd.f32 %v2317, %v2416
        %v2437 = vld [vmem:[%s904] sm:$0xff]
        %v2438 = vld [vmem:[%s904 + $0x8] sm:$0xff]
        %v2439 = vld [vmem:[%s904 + $0x10] sm:$0xff]
        %v2440 = vld [vmem:[%s904 + $0x18] sm:$0xff]
        %v2445 = vrot.slane %v2437, 6
        %v2446 = vrot.slane %v2438, 6
        %v2447 = vsel %vm2330, %v2445, %v2446
        %v2448 = vrot.slane %v2439, 6
        %v2449 = vsel %vm2330, %v2446, %v2448
        %v2450 = vrot.slane %v2440, 6
        %v2451 = vsel %vm2330, %v2448, %v2450
        %v2457 = vmul.f32 %v2319, %v2445
        %v2458 = vmul.f32 %v1091, %v2447
        %v2459 = vmul.f32 %v1093, %v2449
        %v2460 = vmul.f32 %v1294, %v2451
        %v2461 = vmul.f32 %v2321, %v2450
        %v2467 = vrot.slane %v2457, 3
        %v2468 = vrot.slane %v2458, 3
        %v2469 = vsel %vm2373, %v2467, %v2468
        %v2470 = vrot.slane %v2459, 3
        %v2471 = vsel %vm2373, %v2468, %v2470
        %v2472 = vrot.slane %v2460, 3
        %v2473 = vsel %vm2373, %v2470, %v2472
        %v2474 = vrot.slane %v2461, 3
        %v2475 = vsel %vm2373, %v2472, %v2474
        %2476 = vrot.lane.b32.xlu0 %v2467, 127
        %v2477 = vpop.permute.xlu0 %2476
        %2478 = vrot.lane.b32.xlu0 %v2469, 127
        %v2479 = vpop.permute.xlu0 %2478
        %2480 = vrot.lane.b32.xlu0 %v2471, 127
        %v2481 = vpop.permute.xlu0 %2480
        %2482 = vrot.lane.b32.xlu0 %v2473, 127
        %v2483 = vpop.permute.xlu0 %2482
        %2484 = vrot.lane.b32.xlu0 %v2475, 127
        %v2485 = vpop.permute.xlu0 %2484
        %v2491 = vadd.f32 %v2427, %v2477
        %v2492 = vadd.f32 %v2428, %v2477
        %v2493 = vadd.f32 %v2429, %v2479
        %v2494 = vadd.f32 %v2430, %v2479
        %v2495 = vadd.f32 %v2431, %v2481
        %v2496 = vadd.f32 %v2432, %v2481
        %v2497 = vadd.f32 %v2433, %v2483
        %v2498 = vadd.f32 %v2434, %v2483
        %v2499 = vadd.f32 %v2435, %v2485
        %v2500 = vadd.f32 %v2436, %v2485
        %v2501 = vld [vmem:[#allocation7 + $0x20] sm:$0xfc]
        %v2502 = vld [vmem:[#allocation7 + $0x28] sm:$0xfc]
        %v2503 = vld [vmem:[#allocation7 + $0x80] sm:$0x3]
        %v2504 = vld [vmem:[#allocation7 + $0x88] sm:$0x3]
        %v2505 = vld [vmem:[%s931] sm:$0xff]
        %v2506 = vld [vmem:[%s931 + $0x8] sm:$0xff]
        %v2507 = vld [vmem:[%s931 + $0x10] sm:$0xff]
        %v2508 = vld [vmem:[%s931 + $0x18] sm:$0xff]
        %v2513 = vrot.slane %v2505, 6
        %v2514 = vrot.slane %v2506, 6
        %v2515 = vsel %vm2330, %v2513, %v2514
        %v2516 = vrot.slane %v2507, 6
        %v2517 = vsel %vm2330, %v2514, %v2516
        %v2518 = vrot.slane %v2508, 6
        %v2519 = vsel %vm2330, %v2516, %v2518
        %2520 = vrot.lane.b32.xlu0 %v2513, 2
        %v2521 = vpop.permute.xlu0 %2520
        %2522 = vrot.lane.b32.xlu0 %v2515, 2
        %v2523 = vpop.permute.xlu0 %2522
        %2524 = vrot.lane.b32.xlu0 %v2517, 2
        %v2525 = vpop.permute.xlu0 %2524
        %2526 = vrot.lane.b32.xlu0 %v2519, 2
        %v2527 = vpop.permute.xlu0 %2526
        %2528 = vrot.lane.b32.xlu0 %v2518, 2
        %v2529 = vpop.permute.xlu0 %2528
        %v2535 = vmul.f32 %v2501, %v2521
        %v2536 = vmul.f32 %v2502, %v2521
        %v2537 = vmul.f32 %v1665, %v2523
        %v2538 = vmul.f32 %v1666, %v2523
        %v2539 = vmul.f32 %v1667, %v2525
        %v2540 = vmul.f32 %v1668, %v2525
        %v2541 = vmul.f32 %v1669, %v2527
        %v2542 = vmul.f32 %v1670, %v2527
        %v2543 = vmul.f32 %v2503, %v2529
        %v2544 = vmul.f32 %v2504, %v2529
        %v2555 = vrot.slane %v2535, 3
        %v2556 = vrot.slane %v2536, 3
        %v2557 = vrot.slane %v2537, 3
        %v2558 = vsel %vm2373, %v2555, %v2557
        %v2559 = vrot.slane %v2538, 3
        %v2560 = vsel %vm2373, %v2556, %v2559
        %v2561 = vrot.slane %v2539, 3
        %v2562 = vsel %vm2373, %v2557, %v2561
        %v2563 = vrot.slane %v2540, 3
        %v2564 = vsel %vm2373, %v2559, %v2563
        %v2565 = vrot.slane %v2541, 3
        %v2566 = vsel %vm2373, %v2561, %v2565
        %v2567 = vrot.slane %v2542, 3
        %v2568 = vsel %vm2373, %v2563, %v2567
        %v2569 = vrot.slane %v2543, 3
        %v2570 = vsel %vm2373, %v2565, %v2569
        %v2571 = vrot.slane %v2544, 3
        %v2572 = vsel %vm2373, %v2567, %v2571
        %2573 = vrot.lane.b32.xlu0 %v2555, 125
        %v2574 = vpop.permute.xlu0 %2573
        %2575 = vrot.lane.b32.xlu0 %v2556, 125
        %v2576 = vpop.permute.xlu0 %2575
        %2577 = vrot.lane.b32.xlu0 %v2558, 125
        %v2578 = vpop.permute.xlu0 %2577
        %2579 = vrot.lane.b32.xlu0 %v2560, 125
        %v2580 = vpop.permute.xlu0 %2579
        %2581 = vrot.lane.b32.xlu0 %v2562, 125
        %v2582 = vpop.permute.xlu0 %2581
        %2583 = vrot.lane.b32.xlu0 %v2564, 125
        %v2584 = vpop.permute.xlu0 %2583
        %2585 = vrot.lane.b32.xlu0 %v2566, 125
        %v2586 = vpop.permute.xlu0 %2585
        %2587 = vrot.lane.b32.xlu0 %v2568, 125
        %v2588 = vpop.permute.xlu0 %2587
        %2589 = vrot.lane.b32.xlu0 %v2570, 125
        %v2590 = vpop.permute.xlu0 %2589
        %2591 = vrot.lane.b32.xlu0 %v2572, 125
        %v2592 = vpop.permute.xlu0 %2591
        %v2593 = vsel %vm2058, %v2574, %v2576
        %v2594 = vsel %vm2058, %v2578, %v2580
        %v2595 = vsel %vm2058, %v2582, %v2584
        %v2596 = vsel %vm2058, %v2586, %v2588
        %v2597 = vsel %vm2058, %v2590, %v2592
        %v2608 = vadd.f32 %v2491, %v2574
        %v2609 = vadd.f32 %v2492, %v2593
        %v2610 = vadd.f32 %v2493, %v2578
        %v2611 = vadd.f32 %v2494, %v2594
        %v2612 = vadd.f32 %v2495, %v2582
        %v2613 = vadd.f32 %v2496, %v2595
        %v2614 = vadd.f32 %v2497, %v2586
        %v2615 = vadd.f32 %v2498, %v2596
        %v2616 = vadd.f32 %v2499, %v2590
        %v2617 = vadd.f32 %v2500, %v2597
        %v2628 = vrot.slane %v2608, 7
        %v2629 = vrot.slane %v2610, 7
        %v2630 = vsel %vm1517, %v2628, %v2629
        %v2631 = vrot.slane %v2609, 7
        %v2632 = vrot.slane %v2611, 7
        %v2633 = vsel %vm1517, %v2631, %v2632
        %v2634 = vrot.slane %v2612, 7
        %v2635 = vsel %vm1517, %v2629, %v2634
        %v2636 = vrot.slane %v2613, 7
        %v2637 = vsel %vm1517, %v2632, %v2636
        %v2638 = vrot.slane %v2614, 7
        %v2639 = vsel %vm1517, %v2634, %v2638
        %v2640 = vrot.slane %v2615, 7
        %v2641 = vsel %vm1517, %v2636, %v2640
        %v2642 = vrot.slane %v2616, 7
        %v2643 = vsel %vm1517, %v2638, %v2642
        %v2644 = vrot.slane %v2617, 7
        %v2645 = vsel %vm1517, %v2640, %v2644
        %2646 = vrot.lane.b32.xlu0 %v2630, 1
        %v2647 = vpop.permute.xlu0 %2646
        %2648 = vrot.lane.b32.xlu0 %v2633, 1
        %v2649 = vpop.permute.xlu0 %2648
        %2650 = vrot.lane.b32.xlu0 %v2635, 1
        %v2651 = vpop.permute.xlu0 %2650
        %2652 = vrot.lane.b32.xlu0 %v2637, 1
        %v2653 = vpop.permute.xlu0 %2652
        %2654 = vrot.lane.b32.xlu0 %v2639, 1
        %v2655 = vpop.permute.xlu0 %2654
        %2656 = vrot.lane.b32.xlu0 %v2641, 1
        %v2657 = vpop.permute.xlu0 %2656
        %2658 = vrot.lane.b32.xlu0 %v2643, 1
        %v2659 = vpop.permute.xlu0 %2658
        %2660 = vrot.lane.b32.xlu0 %v2645, 1
        %v2661 = vpop.permute.xlu0 %2660
        %v2662 = vsel %vm1878, %v2647, %v2649
        %v2663 = vsel %vm1878, %v2651, %v2653
        %v2664 = vsel %vm1878, %v2655, %v2657
        %v2665 = vsel %vm1878, %v2659, %v2661
        %2670 = vst [vmem:[#allocation7 + $0x20] sm:$0xff] %v2662
        %2671 = vst [vmem:[#allocation7 + $0x38] sm:$0xff] %v2663
        %2672 = vst [vmem:[#allocation7 + $0x50] sm:$0xff] %v2664
        %2673 = vst [vmem:[#allocation7 + $0x68] sm:$0xff] %v2665
        %v2674 = vld [vmem:[#allocation7] sm:$0x80]
        %v2675 = vld [vmem:[#allocation7 + $0x8] sm:$0x80]
        %v2676 = vld [vmem:[#allocation7 + $0x18] sm:$0xff]
        %v2677 = vld [vmem:[#allocation7 + $0x20] sm:$0xff]
        %v2678 = vld [vmem:[#allocation7 + $0x30] sm:$0xff]
        %v2679 = vld [vmem:[#allocation7 + $0x38] sm:$0xff]
        %v2680 = vld [vmem:[#allocation7 + $0x48] sm:$0xff]
        %v2681 = vld [vmem:[#allocation7 + $0x50] sm:$0xff]
        %v2682 = vld [vmem:[#allocation7 + $0x60] sm:$0x7f]
        %v2683 = vld [vmem:[#allocation7 + $0x68] sm:$0x7f]
        %v2684 = vld [vmem:[#allocation5] sm:$0xff]
        %v2685 = vld [vmem:[#allocation5 + $0x8] sm:$0xff]
        %v2686 = vld [vmem:[#allocation5 + $0x10] sm:$0xff]
        %v2687 = vld [vmem:[#allocation5 + $0x18] sm:$0xff]
        %v2692 = vrot.slane %v2684, 1
        %v2693 = vrot.slane %v2685, 1
        %v2694 = vsel %vm1104, %v2692, %v2693
        %v2695 = vrot.slane %v2686, 1
        %v2696 = vsel %vm1104, %v2693, %v2695
        %v2697 = vrot.slane %v2687, 1
        %v2698 = vsel %vm1104, %v2695, %v2697
        %2699 = vrot.lane.b32.xlu0 %v2692, 127
        %v2700 = vpop.permute.xlu0 %2699
        %2701 = vrot.lane.b32.xlu0 %v2694, 127
        %v2702 = vpop.permute.xlu0 %2701
        %2703 = vrot.lane.b32.xlu0 %v2696, 127
        %v2704 = vpop.permute.xlu0 %2703
        %2705 = vrot.lane.b32.xlu0 %v2698, 127
        %v2706 = vpop.permute.xlu0 %2705
        %2707 = vrot.lane.b32.xlu0 %v2697, 127
        %v2708 = vpop.permute.xlu0 %2707
        %v2714 = vmul.f32 %v2674, %v2700
        %v2715 = vmul.f32 %v2675, %v2700
        %v2716 = vmul.f32 %v2676, %v2702
        %v2717 = vmul.f32 %v2677, %v2702
        %v2718 = vmul.f32 %v2678, %v2704
        %v2719 = vmul.f32 %v2679, %v2704
        %v2720 = vmul.f32 %v2680, %v2706
        %v2721 = vmul.f32 %v2681, %v2706
        %v2722 = vmul.f32 %v2682, %v2708
        %v2723 = vmul.f32 %v2683, %v2708
        %v2724 = vld [vmem:[%s279] sm:$0xff]
        %v2725 = vld [vmem:[%s279 + $0x8] sm:$0xff]
        %v2726 = vld [vmem:[%s279 + $0x10] sm:$0xff]
        %v2727 = vld [vmem:[%s279 + $0x18] sm:$0xff]
        %v2732 = vrot.slane %v2724, 1
        %v2733 = vrot.slane %v2725, 1
        %v2734 = vsel %vm1104, %v2732, %v2733
        %v2735 = vrot.slane %v2726, 1
        %v2736 = vsel %vm1104, %v2733, %v2735
        %v2737 = vrot.slane %v2727, 1
        %v2738 = vsel %vm1104, %v2735, %v2737
        %v2744 = vmul.f32 %v2675, %v2732
        %v2745 = vmul.f32 %v2677, %v2734
        %v2746 = vmul.f32 %v2679, %v2736
        %v2747 = vmul.f32 %v2681, %v2738
        %v2748 = vmul.f32 %v2683, %v2737
        %2754 = vrot.lane.b32.xlu0 %v2744, 127
        %v2755 = vpop.permute.xlu0 %2754
        %2756 = vrot.lane.b32.xlu0 %v2745, 127
        %v2757 = vpop.permute.xlu0 %2756
        %2758 = vrot.lane.b32.xlu0 %v2746, 127
        %v2759 = vpop.permute.xlu0 %2758
        %2760 = vrot.lane.b32.xlu0 %v2747, 127
        %v2761 = vpop.permute.xlu0 %2760
        %2762 = vrot.lane.b32.xlu0 %v2748, 127
        %v2763 = vpop.permute.xlu0 %2762
        %v2769 = vadd.f32 %v2714, %v2755
        %v2770 = vadd.f32 %v2715, %v2755
        %v2771 = vadd.f32 %v2716, %v2757
        %v2772 = vadd.f32 %v2717, %v2757
        %v2773 = vadd.f32 %v2718, %v2759
        %v2774 = vadd.f32 %v2719, %v2759
        %v2775 = vadd.f32 %v2720, %v2761
        %v2776 = vadd.f32 %v2721, %v2761
        %v2777 = vadd.f32 %v2722, %v2763
        %v2778 = vadd.f32 %v2723, %v2763
        %v2779 = vld [vmem:[#allocation7 + $0x10] sm:$0x80]
        %v2780 = vld [vmem:[#allocation7 + $0x28] sm:$0xff]
        %v2781 = vld [vmem:[#allocation7 + $0x40] sm:$0xff]
        %v2782 = vld [vmem:[#allocation7 + $0x58] sm:$0xff]
        %v2783 = vld [vmem:[#allocation7 + $0x70] sm:$0x7f]
        %v2784 = vld [vmem:[%s306] sm:$0xff]
        %v2785 = vld [vmem:[%s306 + $0x8] sm:$0xff]
        %v2786 = vld [vmem:[%s306 + $0x10] sm:$0xff]
        %v2787 = vld [vmem:[%s306 + $0x18] sm:$0xff]
        %v2792 = vrot.slane %v2784, 1
        %v2793 = vrot.slane %v2785, 1
        %v2794 = vsel %vm1104, %v2792, %v2793
        %v2795 = vrot.slane %v2786, 1
        %v2796 = vsel %vm1104, %v2793, %v2795
        %v2797 = vrot.slane %v2787, 1
        %v2798 = vsel %vm1104, %v2795, %v2797
        %2799 = vrot.lane.b32.xlu0 %v2792, 1
        %v2800 = vpop.permute.xlu0 %2799
        %2801 = vrot.lane.b32.xlu0 %v2794, 1
        %v2802 = vpop.permute.xlu0 %2801
        %2803 = vrot.lane.b32.xlu0 %v2796, 1
        %v2804 = vpop.permute.xlu0 %2803
        %2805 = vrot.lane.b32.xlu0 %v2798, 1
        %v2806 = vpop.permute.xlu0 %2805
        %2807 = vrot.lane.b32.xlu0 %v2797, 1
        %v2808 = vpop.permute.xlu0 %2807
        %v2814 = vmul.f32 %v2675, %v2800
        %v2815 = vmul.f32 %v2779, %v2800
        %v2816 = vmul.f32 %v2677, %v2802
        %v2817 = vmul.f32 %v2780, %v2802
        %v2818 = vmul.f32 %v2679, %v2804
        %v2819 = vmul.f32 %v2781, %v2804
        %v2820 = vmul.f32 %v2681, %v2806
        %v2821 = vmul.f32 %v2782, %v2806
        %v2822 = vmul.f32 %v2683, %v2808
        %v2823 = vmul.f32 %v2783, %v2808
        %2834 = vrot.lane.b32.xlu0 %v2814, 126
        %v2835 = vpop.permute.xlu0 %2834
        %2836 = vrot.lane.b32.xlu0 %v2815, 126
        %v2837 = vpop.permute.xlu0 %2836
        %2838 = vrot.lane.b32.xlu0 %v2816, 126
        %v2839 = vpop.permute.xlu0 %2838
        %2840 = vrot.lane.b32.xlu0 %v2817, 126
        %v2841 = vpop.permute.xlu0 %2840
        %2842 = vrot.lane.b32.xlu0 %v2818, 126
        %v2843 = vpop.permute.xlu0 %2842
        %2844 = vrot.lane.b32.xlu0 %v2819, 126
        %v2845 = vpop.permute.xlu0 %2844
        %2846 = vrot.lane.b32.xlu0 %v2820, 126
        %v2847 = vpop.permute.xlu0 %2846
        %2848 = vrot.lane.b32.xlu0 %v2821, 126
        %v2849 = vpop.permute.xlu0 %2848
        %2850 = vrot.lane.b32.xlu0 %v2822, 126
        %v2851 = vpop.permute.xlu0 %2850
        %2852 = vrot.lane.b32.xlu0 %v2823, 126
        %v2853 = vpop.permute.xlu0 %2852
        %v2854 = vsel %vm1267, %v2835, %v2837
        %v2855 = vsel %vm1267, %v2839, %v2841
        %v2856 = vsel %vm1267, %v2843, %v2845
        %v2857 = vsel %vm1267, %v2847, %v2849
        %v2858 = vsel %vm1267, %v2851, %v2853
        %v2869 = vadd.f32 %v2769, %v2835
        %v2870 = vadd.f32 %v2770, %v2854
        %v2871 = vadd.f32 %v2771, %v2839
        %v2872 = vadd.f32 %v2772, %v2855
        %v2873 = vadd.f32 %v2773, %v2843
        %v2874 = vadd.f32 %v2774, %v2856
        %v2875 = vadd.f32 %v2775, %v2847
        %v2876 = vadd.f32 %v2776, %v2857
        %v2877 = vadd.f32 %v2777, %v2851
        %v2878 = vadd.f32 %v2778, %v2858
        %v2879 = vld [vmem:[#allocation7 + $0x60] sm:$0xff]
        %v2880 = vld [vmem:[#allocation7 + $0x68] sm:$0xff]
        %v2881 = vld [vmem:[%s333] sm:$0xff]
        %v2882 = vld [vmem:[%s333 + $0x8] sm:$0xff]
        %v2883 = vld [vmem:[%s333 + $0x10] sm:$0xff]
        %v2884 = vld [vmem:[%s333 + $0x18] sm:$0xff]
        %2889 = vrot.lane.b32.xlu0 %v2881, 127
        %v2890 = vpop.permute.xlu0 %2889
        %2891 = vrot.lane.b32.xlu0 %v2882, 127
        %v2892 = vpop.permute.xlu0 %2891
        %2893 = vrot.lane.b32.xlu0 %v2883, 127
        %v2894 = vpop.permute.xlu0 %2893
        %2895 = vrot.lane.b32.xlu0 %v2884, 127
        %v2896 = vpop.permute.xlu0 %2895
        %v2901 = vmul.f32 %v2676, %v2890
        %v2902 = vmul.f32 %v2677, %v2890
        %v2903 = vmul.f32 %v2678, %v2892
        %v2904 = vmul.f32 %v2679, %v2892
        %v2905 = vmul.f32 %v2680, %v2894
        %v2906 = vmul.f32 %v2681, %v2894
        %v2907 = vmul.f32 %v2879, %v2896
        %v2908 = vmul.f32 %v2880, %v2896
        %v2917 = vrot.slane %v2901, 1
        %v2918 = vrot.slane %v2902, 1
        %v2919 = vrot.slane %v2903, 1
        %v2920 = vsel %vm1104, %v2917, %v2919
        %v2921 = vrot.slane %v2904, 1
        %v2922 = vsel %vm1104, %v2918, %v2921
        %v2923 = vrot.slane %v2905, 1
        %v2924 = vsel %vm1104, %v2919, %v2923
        %v2925 = vrot.slane %v2906, 1
        %v2926 = vsel %vm1104, %v2921, %v2925
        %v2927 = vrot.slane %v2907, 1
        %v2928 = vsel %vm1104, %v2923, %v2927
        %v2929 = vrot.slane %v2908, 1
        %v2930 = vsel %vm1104, %v2925, %v2929
        %v2941 = vadd.f32 %v2869, %v2917
        %v2942 = vadd.f32 %v2870, %v2918
        %v2943 = vadd.f32 %v2871, %v2920
        %v2944 = vadd.f32 %v2872, %v2922
        %v2945 = vadd.f32 %v2873, %v2924
        %v2946 = vadd.f32 %v2874, %v2926
        %v2947 = vadd.f32 %v2875, %v2928
        %v2948 = vadd.f32 %v2876, %v2930
        %v2949 = vadd.f32 %v2877, %v2927
        %v2950 = vadd.f32 %v2878, %v2929
        %v2951 = vld [vmem:[%s360] sm:$0xff]
        %v2952 = vld [vmem:[%s360 + $0x8] sm:$0xff]
        %v2953 = vld [vmem:[%s360 + $0x10] sm:$0xff]
        %v2954 = vld [vmem:[%s360 + $0x18] sm:$0xff]
        %v2955 = vmul.f32 %v2677, %v2951
        %v2956 = vmul.f32 %v2679, %v2952
        %v2957 = vmul.f32 %v2681, %v2953
        %v2958 = vmul.f32 %v2880, %v2954
        %v2963 = vrot.slane %v2955, 1
        %v2964 = vrot.slane %v2956, 1
        %v2965 = vsel %vm1104, %v2963, %v2964
        %v2966 = vrot.slane %v2957, 1
        %v2967 = vsel %vm1104, %v2964, %v2966
        %v2968 = vrot.slane %v2958, 1
        %v2969 = vsel %vm1104, %v2966, %v2968
        %2970 = vrot.lane.b32.xlu0 %v2963, 127
        %v2971 = vpop.permute.xlu0 %2970
        %2972 = vrot.lane.b32.xlu0 %v2965, 127
        %v2973 = vpop.permute.xlu0 %2972
        %2974 = vrot.lane.b32.xlu0 %v2967, 127
        %v2975 = vpop.permute.xlu0 %2974
        %2976 = vrot.lane.b32.xlu0 %v2969, 127
        %v2977 = vpop.permute.xlu0 %2976
        %2978 = vrot.lane.b32.xlu0 %v2968, 127
        %v2979 = vpop.permute.xlu0 %2978
        %v2985 = vadd.f32 %v2941, %v2971
        %v2986 = vadd.f32 %v2942, %v2971
        %v2987 = vadd.f32 %v2943, %v2973
        %v2988 = vadd.f32 %v2944, %v2973
        %v2989 = vadd.f32 %v2945, %v2975
        %v2990 = vadd.f32 %v2946, %v2975
        %v2991 = vadd.f32 %v2947, %v2977
        %v2992 = vadd.f32 %v2948, %v2977
        %v2993 = vadd.f32 %v2949, %v2979
        %v2994 = vadd.f32 %v2950, %v2979
        %v2995 = vld [vmem:[#allocation7 + $0x70] sm:$0xff]
        %v2996 = vld [vmem:[%s387] sm:$0xff]
        %v2997 = vld [vmem:[%s387 + $0x8] sm:$0xff]
        %v2998 = vld [vmem:[%s387 + $0x10] sm:$0xff]
        %v2999 = vld [vmem:[%s387 + $0x18] sm:$0xff]
        %3004 = vrot.lane.b32.xlu0 %v2996, 1
        %v3005 = vpop.permute.xlu0 %3004
        %3006 = vrot.lane.b32.xlu0 %v2997, 1
        %v3007 = vpop.permute.xlu0 %3006
        %3008 = vrot.lane.b32.xlu0 %v2998, 1
        %v3009 = vpop.permute.xlu0 %3008
        %3010 = vrot.lane.b32.xlu0 %v2999, 1
        %v3011 = vpop.permute.xlu0 %3010
        %v3016 = vmul.f32 %v2677, %v3005
        %v3017 = vmul.f32 %v2780, %v3005
        %v3018 = vmul.f32 %v2679, %v3007
        %v3019 = vmul.f32 %v2781, %v3007
        %v3020 = vmul.f32 %v2681, %v3009
        %v3021 = vmul.f32 %v2782, %v3009
        %v3022 = vmul.f32 %v2880, %v3011
        %v3023 = vmul.f32 %v2995, %v3011
        %v3032 = vrot.slane %v3016, 1
        %v3033 = vrot.slane %v3017, 1
        %v3034 = vrot.slane %v3018, 1
        %v3035 = vsel %vm1104, %v3032, %v3034
        %v3036 = vrot.slane %v3019, 1
        %v3037 = vsel %vm1104, %v3033, %v3036
        %v3038 = vrot.slane %v3020, 1
        %v3039 = vsel %vm1104, %v3034, %v3038
        %v3040 = vrot.slane %v3021, 1
        %v3041 = vsel %vm1104, %v3036, %v3040
        %v3042 = vrot.slane %v3022, 1
        %v3043 = vsel %vm1104, %v3038, %v3042
        %v3044 = vrot.slane %v3023, 1
        %v3045 = vsel %vm1104, %v3040, %v3044
        %3046 = vrot.lane.b32.xlu0 %v3032, 126
        %v3047 = vpop.permute.xlu0 %3046
        %3048 = vrot.lane.b32.xlu0 %v3033, 126
        %v3049 = vpop.permute.xlu0 %3048
        %3050 = vrot.lane.b32.xlu0 %v3035, 126
        %v3051 = vpop.permute.xlu0 %3050
        %3052 = vrot.lane.b32.xlu0 %v3037, 126
        %v3053 = vpop.permute.xlu0 %3052
        %3054 = vrot.lane.b32.xlu0 %v3039, 126
        %v3055 = vpop.permute.xlu0 %3054
        %3056 = vrot.lane.b32.xlu0 %v3041, 126
        %v3057 = vpop.permute.xlu0 %3056
        %3058 = vrot.lane.b32.xlu0 %v3043, 126
        %v3059 = vpop.permute.xlu0 %3058
        %3060 = vrot.lane.b32.xlu0 %v3045, 126
        %v3061 = vpop.permute.xlu0 %3060
        %3062 = vrot.lane.b32.xlu0 %v3042, 126
        %v3063 = vpop.permute.xlu0 %3062
        %3064 = vrot.lane.b32.xlu0 %v3044, 126
        %v3065 = vpop.permute.xlu0 %3064
        %v3066 = vsel %vm1267, %v3047, %v3049
        %v3067 = vsel %vm1267, %v3051, %v3053
        %v3068 = vsel %vm1267, %v3055, %v3057
        %v3069 = vsel %vm1267, %v3059, %v3061
        %v3070 = vsel %vm1267, %v3063, %v3065
        %v3081 = vadd.f32 %v2985, %v3047
        %v3082 = vadd.f32 %v2986, %v3066
        %v3083 = vadd.f32 %v2987, %v3051
        %v3084 = vadd.f32 %v2988, %v3067
        %v3085 = vadd.f32 %v2989, %v3055
        %v3086 = vadd.f32 %v2990, %v3068
        %v3087 = vadd.f32 %v2991, %v3059
        %v3088 = vadd.f32 %v2992, %v3069
        %v3089 = vadd.f32 %v2993, %v3063
        %v3090 = vadd.f32 %v2994, %v3070
        %v3091 = vld [vmem:[#allocation7 + $0x18] sm:$0xfe]
        %v3092 = vld [vmem:[#allocation7 + $0x20] sm:$0xfe]
        %v3093 = vld [vmem:[#allocation7 + $0x78] sm:$0x1]
        %v3094 = vld [vmem:[#allocation7 + $0x80] sm:$0x1]
        %v3095 = vld [vmem:[%s414] sm:$0xff]
        %v3096 = vld [vmem:[%s414 + $0x8] sm:$0xff]
        %v3097 = vld [vmem:[%s414 + $0x10] sm:$0xff]
        %v3098 = vld [vmem:[%s414 + $0x18] sm:$0xff]
        %v3103 = vrot.slane %v3095, 7
        %v3104 = vrot.slane %v3096, 7
        %v3105 = vsel %vm1517, %v3103, %v3104
        %v3106 = vrot.slane %v3097, 7
        %v3107 = vsel %vm1517, %v3104, %v3106
        %v3108 = vrot.slane %v3098, 7
        %v3109 = vsel %vm1517, %v3106, %v3108
        %3110 = vrot.lane.b32.xlu0 %v3103, 127
        %v3111 = vpop.permute.xlu0 %3110
        %3112 = vrot.lane.b32.xlu0 %v3105, 127
        %v3113 = vpop.permute.xlu0 %3112
        %3114 = vrot.lane.b32.xlu0 %v3107, 127
        %v3115 = vpop.permute.xlu0 %3114
        %3116 = vrot.lane.b32.xlu0 %v3109, 127
        %v3117 = vpop.permute.xlu0 %3116
        %3118 = vrot.lane.b32.xlu0 %v3108, 127
        %v3119 = vpop.permute.xlu0 %3118
        %v3125 = vmul.f32 %v3091, %v3111
        %v3126 = vmul.f32 %v3092, %v3111
        %v3127 = vmul.f32 %v2678, %v3113
        %v3128 = vmul.f32 %v2679, %v3113
        %v3129 = vmul.f32 %v2680, %v3115
        %v3130 = vmul.f32 %v2681, %v3115
        %v3131 = vmul.f32 %v2879, %v3117
        %v3132 = vmul.f32 %v2880, %v3117
        %v3133 = vmul.f32 %v3093, %v3119
        %v3134 = vmul.f32 %v3094, %v3119
        %v3145 = vrot.slane %v3125, 2
        %v3146 = vrot.slane %v3126, 2
        %v3147 = vrot.slane %v3127, 2
        %v3148 = vsel %vm1560, %v3145, %v3147
        %v3149 = vrot.slane %v3128, 2
        %v3150 = vsel %vm1560, %v3146, %v3149
        %v3151 = vrot.slane %v3129, 2
        %v3152 = vsel %vm1560, %v3147, %v3151
        %v3153 = vrot.slane %v3130, 2
        %v3154 = vsel %vm1560, %v3149, %v3153
        %v3155 = vrot.slane %v3131, 2
        %v3156 = vsel %vm1560, %v3151, %v3155
        %v3157 = vrot.slane %v3132, 2
        %v3158 = vsel %vm1560, %v3153, %v3157
        %v3159 = vrot.slane %v3133, 2
        %v3160 = vsel %vm1560, %v3155, %v3159
        %v3161 = vrot.slane %v3134, 2
        %v3162 = vsel %vm1560, %v3157, %v3161
        %v3173 = vadd.f32 %v3081, %v3145
        %v3174 = vadd.f32 %v3082, %v3146
        %v3175 = vadd.f32 %v3083, %v3148
        %v3176 = vadd.f32 %v3084, %v3150
        %v3177 = vadd.f32 %v3085, %v3152
        %v3178 = vadd.f32 %v3086, %v3154
        %v3179 = vadd.f32 %v3087, %v3156
        %v3180 = vadd.f32 %v3088, %v3158
        %v3181 = vadd.f32 %v3089, %v3160
        %v3182 = vadd.f32 %v3090, %v3162
        %v3183 = vld [vmem:[%s441] sm:$0xff]
        %v3184 = vld [vmem:[%s441 + $0x8] sm:$0xff]
        %v3185 = vld [vmem:[%s441 + $0x10] sm:$0xff]
        %v3186 = vld [vmem:[%s441 + $0x18] sm:$0xff]
        %v3191 = vrot.slane %v3183, 7
        %v3192 = vrot.slane %v3184, 7
        %v3193 = vsel %vm1517, %v3191, %v3192
        %v3194 = vrot.slane %v3185, 7
        %v3195 = vsel %vm1517, %v3192, %v3194
        %v3196 = vrot.slane %v3186, 7
        %v3197 = vsel %vm1517, %v3194, %v3196
        %v3203 = vmul.f32 %v3092, %v3191
        %v3204 = vmul.f32 %v2679, %v3193
        %v3205 = vmul.f32 %v2681, %v3195
        %v3206 = vmul.f32 %v2880, %v3197
        %v3207 = vmul.f32 %v3094, %v3196
        %v3213 = vrot.slane %v3203, 2
        %v3214 = vrot.slane %v3204, 2
        %v3215 = vsel %vm1560, %v3213, %v3214
        %v3216 = vrot.slane %v3205, 2
        %v3217 = vsel %vm1560, %v3214, %v3216
        %v3218 = vrot.slane %v3206, 2
        %v3219 = vsel %vm1560, %v3216, %v3218
        %v3220 = vrot.slane %v3207, 2
        %v3221 = vsel %vm1560, %v3218, %v3220
        %3222 = vrot.lane.b32.xlu0 %v3213, 127
        %v3223 = vpop.permute.xlu0 %3222
        %3224 = vrot.lane.b32.xlu0 %v3215, 127
        %v3225 = vpop.permute.xlu0 %3224
        %3226 = vrot.lane.b32.xlu0 %v3217, 127
        %v3227 = vpop.permute.xlu0 %3226
        %3228 = vrot.lane.b32.xlu0 %v3219, 127
        %v3229 = vpop.permute.xlu0 %3228
        %3230 = vrot.lane.b32.xlu0 %v3221, 127
        %v3231 = vpop.permute.xlu0 %3230
        %v3237 = vadd.f32 %v3173, %v3223
        %v3238 = vadd.f32 %v3174, %v3223
        %v3239 = vadd.f32 %v3175, %v3225
        %v3240 = vadd.f32 %v3176, %v3225
        %v3241 = vadd.f32 %v3177, %v3227
        %v3242 = vadd.f32 %v3178, %v3227
        %v3243 = vadd.f32 %v3179, %v3229
        %v3244 = vadd.f32 %v3180, %v3229
        %v3245 = vadd.f32 %v3181, %v3231
        %v3246 = vadd.f32 %v3182, %v3231
        %v3247 = vld [vmem:[#allocation7 + $0x20] sm:$0xfe]
        %v3248 = vld [vmem:[#allocation7 + $0x28] sm:$0xfe]
        %v3249 = vld [vmem:[#allocation7 + $0x38] sm:$0xff]
        %v3250 = vld [vmem:[#allocation7 + $0x40] sm:$0xff]
        %v3251 = vld [vmem:[#allocation7 + $0x50] sm:$0xff]
        %v3252 = vld [vmem:[#allocation7 + $0x58] sm:$0xff]
        %v3253 = vld [vmem:[#allocation7 + $0x68] sm:$0xff]
        %v3254 = vld [vmem:[#allocation7 + $0x70] sm:$0xff]
        %v3255 = vld [vmem:[#allocation7 + $0x80] sm:$0x1]
        %v3256 = vld [vmem:[#allocation7 + $0x88] sm:$0x1]
        %v3257 = vld [vmem:[%s468] sm:$0xff]
        %v3258 = vld [vmem:[%s468 + $0x8] sm:$0xff]
        %v3259 = vld [vmem:[%s468 + $0x10] sm:$0xff]
        %v3260 = vld [vmem:[%s468 + $0x18] sm:$0xff]
        %v3265 = vrot.slane %v3257, 7
        %v3266 = vrot.slane %v3258, 7
        %v3267 = vsel %vm1517, %v3265, %v3266
        %v3268 = vrot.slane %v3259, 7
        %v3269 = vsel %vm1517, %v3266, %v3268
        %v3270 = vrot.slane %v3260, 7
        %v3271 = vsel %vm1517, %v3268, %v3270
        %3272 = vrot.lane.b32.xlu0 %v3265, 1
        %v3273 = vpop.permute.xlu0 %3272
        %3274 = vrot.lane.b32.xlu0 %v3267, 1
        %v3275 = vpop.permute.xlu0 %3274
        %3276 = vrot.lane.b32.xlu0 %v3269, 1
        %v3277 = vpop.permute.xlu0 %3276
        %3278 = vrot.lane.b32.xlu0 %v3271, 1
        %v3279 = vpop.permute.xlu0 %3278
        %3280 = vrot.lane.b32.xlu0 %v3270, 1
        %v3281 = vpop.permute.xlu0 %3280
        %v3287 = vmul.f32 %v3247, %v3273
        %v3288 = vmul.f32 %v3248, %v3273
        %v3289 = vmul.f32 %v3249, %v3275
        %v3290 = vmul.f32 %v3250, %v3275
        %v3291 = vmul.f32 %v3251, %v3277
        %v3292 = vmul.f32 %v3252, %v3277
        %v3293 = vmul.f32 %v3253, %v3279
        %v3294 = vmul.f32 %v3254, %v3279
        %v3295 = vmul.f32 %v3255, %v3281
        %v3296 = vmul.f32 %v3256, %v3281
        %v3307 = vrot.slane %v3287, 2
        %v3308 = vrot.slane %v3288, 2
        %v3309 = vrot.slane %v3289, 2
        %v3310 = vsel %vm1560, %v3307, %v3309
        %v3311 = vrot.slane %v3290, 2
        %v3312 = vsel %vm1560, %v3308, %v3311
        %v3313 = vrot.slane %v3291, 2
        %v3314 = vsel %vm1560, %v3309, %v3313
        %v3315 = vrot.slane %v3292, 2
        %v3316 = vsel %vm1560, %v3311, %v3315
        %v3317 = vrot.slane %v3293, 2
        %v3318 = vsel %vm1560, %v3313, %v3317
        %v3319 = vrot.slane %v3294, 2
        %v3320 = vsel %vm1560, %v3315, %v3319
        %v3321 = vrot.slane %v3295, 2
        %v3322 = vsel %vm1560, %v3317, %v3321
        %v3323 = vrot.slane %v3296, 2
        %v3324 = vsel %vm1560, %v3319, %v3323
        %3325 = vrot.lane.b32.xlu0 %v3307, 126
        %v3326 = vpop.permute.xlu0 %3325
        %3327 = vrot.lane.b32.xlu0 %v3308, 126
        %v3328 = vpop.permute.xlu0 %3327
        %3329 = vrot.lane.b32.xlu0 %v3310, 126
        %v3330 = vpop.permute.xlu0 %3329
        %3331 = vrot.lane.b32.xlu0 %v3312, 126
        %v3332 = vpop.permute.xlu0 %3331
        %3333 = vrot.lane.b32.xlu0 %v3314, 126
        %v3334 = vpop.permute.xlu0 %3333
        %3335 = vrot.lane.b32.xlu0 %v3316, 126
        %v3336 = vpop.permute.xlu0 %3335
        %3337 = vrot.lane.b32.xlu0 %v3318, 126
        %v3338 = vpop.permute.xlu0 %3337
        %3339 = vrot.lane.b32.xlu0 %v3320, 126
        %v3340 = vpop.permute.xlu0 %3339
        %3341 = vrot.lane.b32.xlu0 %v3322, 126
        %v3342 = vpop.permute.xlu0 %3341
        %3343 = vrot.lane.b32.xlu0 %v3324, 126
        %v3344 = vpop.permute.xlu0 %3343
        %v3345 = vsel %vm1267, %v3326, %v3328
        %v3346 = vsel %vm1267, %v3330, %v3332
        %v3347 = vsel %vm1267, %v3334, %v3336
        %v3348 = vsel %vm1267, %v3338, %v3340
        %v3349 = vsel %vm1267, %v3342, %v3344
        %v3360 = vadd.f32 %v3237, %v3326
        %v3361 = vadd.f32 %v3238, %v3345
        %v3362 = vadd.f32 %v3239, %v3330
        %v3363 = vadd.f32 %v3240, %v3346
        %v3364 = vadd.f32 %v3241, %v3334
        %v3365 = vadd.f32 %v3242, %v3347
        %v3366 = vadd.f32 %v3243, %v3338
        %v3367 = vadd.f32 %v3244, %v3348
        %v3368 = vadd.f32 %v3245, %v3342
        %v3369 = vadd.f32 %v3246, %v3349
        %v3370 = vld [vmem:[#allocation7] sm:$0xc0]
        %v3371 = vld [vmem:[#allocation7 + $0x8] sm:$0xc0]
        %v3372 = vld [vmem:[#allocation7 + $0x60] sm:$0x3f]
        %v3373 = vld [vmem:[#allocation7 + $0x68] sm:$0x3f]
        %v3374 = vld [vmem:[%s719] sm:$0xff]
        %v3375 = vld [vmem:[%s719 + $0x8] sm:$0xff]
        %v3376 = vld [vmem:[%s719 + $0x10] sm:$0xff]
        %v3377 = vld [vmem:[%s719 + $0x18] sm:$0xff]
        %v3382 = vrot.slane %v3374, 2
        %v3383 = vrot.slane %v3375, 2
        %v3384 = vsel %vm1560, %v3382, %v3383
        %v3385 = vrot.slane %v3376, 2
        %v3386 = vsel %vm1560, %v3383, %v3385
        %v3387 = vrot.slane %v3377, 2
        %v3388 = vsel %vm1560, %v3385, %v3387
        %3389 = vrot.lane.b32.xlu0 %v3382, 126
        %v3390 = vpop.permute.xlu0 %3389
        %3391 = vrot.lane.b32.xlu0 %v3384, 126
        %v3392 = vpop.permute.xlu0 %3391
        %3393 = vrot.lane.b32.xlu0 %v3386, 126
        %v3394 = vpop.permute.xlu0 %3393
        %3395 = vrot.lane.b32.xlu0 %v3388, 126
        %v3396 = vpop.permute.xlu0 %3395
        %3397 = vrot.lane.b32.xlu0 %v3387, 126
        %v3398 = vpop.permute.xlu0 %3397
        %v3404 = vmul.f32 %v3370, %v3390
        %v3405 = vmul.f32 %v3371, %v3390
        %v3406 = vmul.f32 %v2676, %v3392
        %v3407 = vmul.f32 %v2677, %v3392
        %v3408 = vmul.f32 %v2678, %v3394
        %v3409 = vmul.f32 %v2679, %v3394
        %v3410 = vmul.f32 %v2680, %v3396
        %v3411 = vmul.f32 %v2681, %v3396
        %v3412 = vmul.f32 %v3372, %v3398
        %v3413 = vmul.f32 %v3373, %v3398
        %v3424 = vrot.slane %v3404, 7
        %v3425 = vrot.slane %v3405, 7
        %v3426 = vrot.slane %v3406, 7
        %v3427 = vsel %vm1517, %v3424, %v3426
        %v3428 = vrot.slane %v3407, 7
        %v3429 = vsel %vm1517, %v3425, %v3428
        %v3430 = vrot.slane %v3408, 7
        %v3431 = vsel %vm1517, %v3426, %v3430
        %v3432 = vrot.slane %v3409, 7
        %v3433 = vsel %vm1517, %v3428, %v3432
        %v3434 = vrot.slane %v3410, 7
        %v3435 = vsel %vm1517, %v3430, %v3434
        %v3436 = vrot.slane %v3411, 7
        %v3437 = vsel %vm1517, %v3432, %v3436
        %v3438 = vrot.slane %v3412, 7
        %v3439 = vsel %vm1517, %v3434, %v3438
        %v3440 = vrot.slane %v3413, 7
        %v3441 = vsel %vm1517, %v3436, %v3440
        %3442 = vrot.lane.b32.xlu0 %v3424, 1
        %v3443 = vpop.permute.xlu0 %3442
        %3444 = vrot.lane.b32.xlu0 %v3425, 1
        %v3445 = vpop.permute.xlu0 %3444
        %3446 = vrot.lane.b32.xlu0 %v3427, 1
        %v3447 = vpop.permute.xlu0 %3446
        %3448 = vrot.lane.b32.xlu0 %v3429, 1
        %v3449 = vpop.permute.xlu0 %3448
        %3450 = vrot.lane.b32.xlu0 %v3431, 1
        %v3451 = vpop.permute.xlu0 %3450
        %3452 = vrot.lane.b32.xlu0 %v3433, 1
        %v3453 = vpop.permute.xlu0 %3452
        %3454 = vrot.lane.b32.xlu0 %v3435, 1
        %v3455 = vpop.permute.xlu0 %3454
        %3456 = vrot.lane.b32.xlu0 %v3437, 1
        %v3457 = vpop.permute.xlu0 %3456
        %3458 = vrot.lane.b32.xlu0 %v3439, 1
        %v3459 = vpop.permute.xlu0 %3458
        %3460 = vrot.lane.b32.xlu0 %v3441, 1
        %v3461 = vpop.permute.xlu0 %3460
        %v3462 = vsel %vm1878, %v3443, %v3445
        %v3463 = vsel %vm1878, %v3447, %v3449
        %v3464 = vsel %vm1878, %v3451, %v3453
        %v3465 = vsel %vm1878, %v3455, %v3457
        %v3466 = vsel %vm1878, %v3459, %v3461
        %v3477 = vadd.f32 %v3360, %v3443
        %v3478 = vadd.f32 %v3361, %v3462
        %v3479 = vadd.f32 %v3362, %v3447
        %v3480 = vadd.f32 %v3363, %v3463
        %v3481 = vadd.f32 %v3364, %v3451
        %v3482 = vadd.f32 %v3365, %v3464
        %v3483 = vadd.f32 %v3366, %v3455
        %v3484 = vadd.f32 %v3367, %v3465
        %v3485 = vadd.f32 %v3368, %v3459
        %v3486 = vadd.f32 %v3369, %v3466
        %v3487 = vld [vmem:[%s742] sm:$0xff]
        %v3488 = vld [vmem:[%s742 + $0x8] sm:$0xff]
        %v3489 = vld [vmem:[%s742 + $0x10] sm:$0xff]
        %v3490 = vld [vmem:[%s742 + $0x18] sm:$0xff]
        %v3495 = vrot.slane %v3487, 2
        %v3496 = vrot.slane %v3488, 2
        %v3497 = vsel %vm1560, %v3495, %v3496
        %v3498 = vrot.slane %v3489, 2
        %v3499 = vsel %vm1560, %v3496, %v3498
        %v3500 = vrot.slane %v3490, 2
        %v3501 = vsel %vm1560, %v3498, %v3500
        %v3507 = vmul.f32 %v3371, %v3495
        %v3508 = vmul.f32 %v2677, %v3497
        %v3509 = vmul.f32 %v2679, %v3499
        %v3510 = vmul.f32 %v2681, %v3501
        %v3511 = vmul.f32 %v3373, %v3500
        %v3517 = vrot.slane %v3507, 7
        %v3518 = vrot.slane %v3508, 7
        %v3519 = vsel %vm1517, %v3517, %v3518
        %v3520 = vrot.slane %v3509, 7
        %v3521 = vsel %vm1517, %v3518, %v3520
        %v3522 = vrot.slane %v3510, 7
        %v3523 = vsel %vm1517, %v3520, %v3522
        %v3524 = vrot.slane %v3511, 7
        %v3525 = vsel %vm1517, %v3522, %v3524
        %3526 = vrot.lane.b32.xlu0 %v3517, 127
        %v3527 = vpop.permute.xlu0 %3526
        %3528 = vrot.lane.b32.xlu0 %v3519, 127
        %v3529 = vpop.permute.xlu0 %3528
        %3530 = vrot.lane.b32.xlu0 %v3521, 127
        %v3531 = vpop.permute.xlu0 %3530
        %3532 = vrot.lane.b32.xlu0 %v3523, 127
        %v3533 = vpop.permute.xlu0 %3532
        %3534 = vrot.lane.b32.xlu0 %v3525, 127
        %v3535 = vpop.permute.xlu0 %3534
        %v3541 = vadd.f32 %v3477, %v3527
        %v3542 = vadd.f32 %v3478, %v3527
        %v3543 = vadd.f32 %v3479, %v3529
        %v3544 = vadd.f32 %v3480, %v3529
        %v3545 = vadd.f32 %v3481, %v3531
        %v3546 = vadd.f32 %v3482, %v3531
        %v3547 = vadd.f32 %v3483, %v3533
        %v3548 = vadd.f32 %v3484, %v3533
        %v3549 = vadd.f32 %v3485, %v3535
        %v3550 = vadd.f32 %v3486, %v3535
        %v3551 = vld [vmem:[#allocation7 + $0x10] sm:$0xc0]
        %v3552 = vld [vmem:[#allocation7 + $0x70] sm:$0x3f]
        %v3553 = vld [vmem:[%s769] sm:$0xff]
        %v3554 = vld [vmem:[%s769 + $0x8] sm:$0xff]
        %v3555 = vld [vmem:[%s769 + $0x10] sm:$0xff]
        %v3556 = vld [vmem:[%s769 + $0x18] sm:$0xff]
        %v3561 = vrot.slane %v3553, 2
        %v3562 = vrot.slane %v3554, 2
        %v3563 = vsel %vm1560, %v3561, %v3562
        %v3564 = vrot.slane %v3555, 2
        %v3565 = vsel %vm1560, %v3562, %v3564
        %v3566 = vrot.slane %v3556, 2
        %v3567 = vsel %vm1560, %v3564, %v3566
        %3568 = vrot.lane.b32.xlu0 %v3561, 2
        %v3569 = vpop.permute.xlu0 %3568
        %3570 = vrot.lane.b32.xlu0 %v3563, 2
        %v3571 = vpop.permute.xlu0 %3570
        %3572 = vrot.lane.b32.xlu0 %v3565, 2
        %v3573 = vpop.permute.xlu0 %3572
        %3574 = vrot.lane.b32.xlu0 %v3567, 2
        %v3575 = vpop.permute.xlu0 %3574
        %3576 = vrot.lane.b32.xlu0 %v3566, 2
        %v3577 = vpop.permute.xlu0 %3576
        %v3583 = vmul.f32 %v3371, %v3569
        %v3584 = vmul.f32 %v3551, %v3569
        %v3585 = vmul.f32 %v2677, %v3571
        %v3586 = vmul.f32 %v2780, %v3571
        %v3587 = vmul.f32 %v2679, %v3573
        %v3588 = vmul.f32 %v2781, %v3573
        %v3589 = vmul.f32 %v2681, %v3575
        %v3590 = vmul.f32 %v2782, %v3575
        %v3591 = vmul.f32 %v3373, %v3577
        %v3592 = vmul.f32 %v3552, %v3577
        %v3603 = vrot.slane %v3583, 7
        %v3604 = vrot.slane %v3584, 7
        %v3605 = vrot.slane %v3585, 7
        %v3606 = vsel %vm1517, %v3603, %v3605
        %v3607 = vrot.slane %v3586, 7
        %v3608 = vsel %vm1517, %v3604, %v3607
        %v3609 = vrot.slane %v3587, 7
        %v3610 = vsel %vm1517, %v3605, %v3609
        %v3611 = vrot.slane %v3588, 7
        %v3612 = vsel %vm1517, %v3607, %v3611
        %v3613 = vrot.slane %v3589, 7
        %v3614 = vsel %vm1517, %v3609, %v3613
        %v3615 = vrot.slane %v3590, 7
        %v3616 = vsel %vm1517, %v3611, %v3615
        %v3617 = vrot.slane %v3591, 7
        %v3618 = vsel %vm1517, %v3613, %v3617
        %v3619 = vrot.slane %v3592, 7
        %v3620 = vsel %vm1517, %v3615, %v3619
        %3621 = vrot.lane.b32.xlu0 %v3603, 125
        %v3622 = vpop.permute.xlu0 %3621
        %3623 = vrot.lane.b32.xlu0 %v3604, 125
        %v3624 = vpop.permute.xlu0 %3623
        %3625 = vrot.lane.b32.xlu0 %v3606, 125
        %v3626 = vpop.permute.xlu0 %3625
        %3627 = vrot.lane.b32.xlu0 %v3608, 125
        %v3628 = vpop.permute.xlu0 %3627
        %3629 = vrot.lane.b32.xlu0 %v3610, 125
        %v3630 = vpop.permute.xlu0 %3629
        %3631 = vrot.lane.b32.xlu0 %v3612, 125
        %v3632 = vpop.permute.xlu0 %3631
        %3633 = vrot.lane.b32.xlu0 %v3614, 125
        %v3634 = vpop.permute.xlu0 %3633
        %3635 = vrot.lane.b32.xlu0 %v3616, 125
        %v3636 = vpop.permute.xlu0 %3635
        %3637 = vrot.lane.b32.xlu0 %v3618, 125
        %v3638 = vpop.permute.xlu0 %3637
        %3639 = vrot.lane.b32.xlu0 %v3620, 125
        %v3640 = vpop.permute.xlu0 %3639
        %v3641 = vsel %vm2058, %v3622, %v3624
        %v3642 = vsel %vm2058, %v3626, %v3628
        %v3643 = vsel %vm2058, %v3630, %v3632
        %v3644 = vsel %vm2058, %v3634, %v3636
        %v3645 = vsel %vm2058, %v3638, %v3640
        %v3656 = vadd.f32 %v3541, %v3622
        %v3657 = vadd.f32 %v3542, %v3641
        %v3658 = vadd.f32 %v3543, %v3626
        %v3659 = vadd.f32 %v3544, %v3642
        %v3660 = vadd.f32 %v3545, %v3630
        %v3661 = vadd.f32 %v3546, %v3643
        %v3662 = vadd.f32 %v3547, %v3634
        %v3663 = vadd.f32 %v3548, %v3644
        %v3664 = vadd.f32 %v3549, %v3638
        %v3665 = vadd.f32 %v3550, %v3645
        %v3666 = vld [vmem:[%s796] sm:$0xff]
        %v3667 = vld [vmem:[%s796 + $0x8] sm:$0xff]
        %v3668 = vld [vmem:[%s796 + $0x10] sm:$0xff]
        %v3669 = vld [vmem:[%s796 + $0x18] sm:$0xff]
        %3674 = vrot.lane.b32.xlu0 %v3666, 126
        %v3675 = vpop.permute.xlu0 %3674
        %3676 = vrot.lane.b32.xlu0 %v3667, 126
        %v3677 = vpop.permute.xlu0 %3676
        %3678 = vrot.lane.b32.xlu0 %v3668, 126
        %v3679 = vpop.permute.xlu0 %3678
        %3680 = vrot.lane.b32.xlu0 %v3669, 126
        %v3681 = vpop.permute.xlu0 %3680
        %v3686 = vmul.f32 %v2676, %v3675
        %v3687 = vmul.f32 %v2677, %v3675
        %v3688 = vmul.f32 %v2678, %v3677
        %v3689 = vmul.f32 %v2679, %v3677
        %v3690 = vmul.f32 %v2680, %v3679
        %v3691 = vmul.f32 %v2681, %v3679
        %v3692 = vmul.f32 %v2879, %v3681
        %v3693 = vmul.f32 %v2880, %v3681
        %v3702 = vrot.slane %v3686, 1
        %v3703 = vrot.slane %v3687, 1
        %v3704 = vrot.slane %v3688, 1
        %v3705 = vsel %vm1104, %v3702, %v3704
        %v3706 = vrot.slane %v3689, 1
        %v3707 = vsel %vm1104, %v3703, %v3706
        %v3708 = vrot.slane %v3690, 1
        %v3709 = vsel %vm1104, %v3704, %v3708
        %v3710 = vrot.slane %v3691, 1
        %v3711 = vsel %vm1104, %v3706, %v3710
        %v3712 = vrot.slane %v3692, 1
        %v3713 = vsel %vm1104, %v3708, %v3712
        %v3714 = vrot.slane %v3693, 1
        %v3715 = vsel %vm1104, %v3710, %v3714
        %3716 = vrot.lane.b32.xlu0 %v3702, 1
        %v3717 = vpop.permute.xlu0 %3716
        %3718 = vrot.lane.b32.xlu0 %v3703, 1
        %v3719 = vpop.permute.xlu0 %3718
        %3720 = vrot.lane.b32.xlu0 %v3705, 1
        %v3721 = vpop.permute.xlu0 %3720
        %3722 = vrot.lane.b32.xlu0 %v3707, 1
        %v3723 = vpop.permute.xlu0 %3722
        %3724 = vrot.lane.b32.xlu0 %v3709, 1
        %v3725 = vpop.permute.xlu0 %3724
        %3726 = vrot.lane.b32.xlu0 %v3711, 1
        %v3727 = vpop.permute.xlu0 %3726
        %3728 = vrot.lane.b32.xlu0 %v3713, 1
        %v3729 = vpop.permute.xlu0 %3728
        %3730 = vrot.lane.b32.xlu0 %v3715, 1
        %v3731 = vpop.permute.xlu0 %3730
        %3732 = vrot.lane.b32.xlu0 %v3712, 1
        %v3733 = vpop.permute.xlu0 %3732
        %3734 = vrot.lane.b32.xlu0 %v3714, 1
        %v3735 = vpop.permute.xlu0 %3734
        %v3736 = vsel %vm1878, %v3717, %v3719
        %v3737 = vsel %vm1878, %v3721, %v3723
        %v3738 = vsel %vm1878, %v3725, %v3727
        %v3739 = vsel %vm1878, %v3729, %v3731
        %v3740 = vsel %vm1878, %v3733, %v3735
        %v3751 = vadd.f32 %v3656, %v3717
        %v3752 = vadd.f32 %v3657, %v3736
        %v3753 = vadd.f32 %v3658, %v3721
        %v3754 = vadd.f32 %v3659, %v3737
        %v3755 = vadd.f32 %v3660, %v3725
        %v3756 = vadd.f32 %v3661, %v3738
        %v3757 = vadd.f32 %v3662, %v3729
        %v3758 = vadd.f32 %v3663, %v3739
        %v3759 = vadd.f32 %v3664, %v3733
        %v3760 = vadd.f32 %v3665, %v3740
        %v3761 = vld [vmem:[%s823] sm:$0xff]
        %v3762 = vld [vmem:[%s823 + $0x8] sm:$0xff]
        %v3763 = vld [vmem:[%s823 + $0x10] sm:$0xff]
        %v3764 = vld [vmem:[%s823 + $0x18] sm:$0xff]
        %v3765 = vmul.f32 %v2677, %v3761
        %v3766 = vmul.f32 %v2679, %v3762
        %v3767 = vmul.f32 %v2681, %v3763
        %v3768 = vmul.f32 %v2880, %v3764
        %v3773 = vrot.slane %v3765, 1
        %v3774 = vrot.slane %v3766, 1
        %v3775 = vsel %vm1104, %v3773, %v3774
        %v3776 = vrot.slane %v3767, 1
        %v3777 = vsel %vm1104, %v3774, %v3776
        %v3778 = vrot.slane %v3768, 1
        %v3779 = vsel %vm1104, %v3776, %v3778
        %3780 = vrot.lane.b32.xlu0 %v3773, 127
        %v3781 = vpop.permute.xlu0 %3780
        %3782 = vrot.lane.b32.xlu0 %v3775, 127
        %v3783 = vpop.permute.xlu0 %3782
        %3784 = vrot.lane.b32.xlu0 %v3777, 127
        %v3785 = vpop.permute.xlu0 %3784
        %3786 = vrot.lane.b32.xlu0 %v3779, 127
        %v3787 = vpop.permute.xlu0 %3786
        %3788 = vrot.lane.b32.xlu0 %v3778, 127
        %v3789 = vpop.permute.xlu0 %3788
        %v3795 = vadd.f32 %v3751, %v3781
        %v3796 = vadd.f32 %v3752, %v3781
        %v3797 = vadd.f32 %v3753, %v3783
        %v3798 = vadd.f32 %v3754, %v3783
        %v3799 = vadd.f32 %v3755, %v3785
        %v3800 = vadd.f32 %v3756, %v3785
        %v3801 = vadd.f32 %v3757, %v3787
        %v3802 = vadd.f32 %v3758, %v3787
        %v3803 = vadd.f32 %v3759, %v3789
        %v3804 = vadd.f32 %v3760, %v3789
        %v3805 = vld [vmem:[%s850] sm:$0xff]
        %v3806 = vld [vmem:[%s850 + $0x8] sm:$0xff]
        %v3807 = vld [vmem:[%s850 + $0x10] sm:$0xff]
        %v3808 = vld [vmem:[%s850 + $0x18] sm:$0xff]
        %3813 = vrot.lane.b32.xlu0 %v3805, 2
        %v3814 = vpop.permute.xlu0 %3813
        %3815 = vrot.lane.b32.xlu0 %v3806, 2
        %v3816 = vpop.permute.xlu0 %3815
        %3817 = vrot.lane.b32.xlu0 %v3807, 2
        %v3818 = vpop.permute.xlu0 %3817
        %3819 = vrot.lane.b32.xlu0 %v3808, 2
        %v3820 = vpop.permute.xlu0 %3819
        %v3825 = vmul.f32 %v2677, %v3814
        %v3826 = vmul.f32 %v2780, %v3814
        %v3827 = vmul.f32 %v2679, %v3816
        %v3828 = vmul.f32 %v2781, %v3816
        %v3829 = vmul.f32 %v2681, %v3818
        %v3830 = vmul.f32 %v2782, %v3818
        %v3831 = vmul.f32 %v2880, %v3820
        %v3832 = vmul.f32 %v2995, %v3820
        %v3841 = vrot.slane %v3825, 1
        %v3842 = vrot.slane %v3826, 1
        %v3843 = vrot.slane %v3827, 1
        %v3844 = vsel %vm1104, %v3841, %v3843
        %v3845 = vrot.slane %v3828, 1
        %v3846 = vsel %vm1104, %v3842, %v3845
        %v3847 = vrot.slane %v3829, 1
        %v3848 = vsel %vm1104, %v3843, %v3847
        %v3849 = vrot.slane %v3830, 1
        %v3850 = vsel %vm1104, %v3845, %v3849
        %v3851 = vrot.slane %v3831, 1
        %v3852 = vsel %vm1104, %v3847, %v3851
        %v3853 = vrot.slane %v3832, 1
        %v3854 = vsel %vm1104, %v3849, %v3853
        %3855 = vrot.lane.b32.xlu0 %v3841, 125
        %v3856 = vpop.permute.xlu0 %3855
        %3857 = vrot.lane.b32.xlu0 %v3842, 125
        %v3858 = vpop.permute.xlu0 %3857
        %3859 = vrot.lane.b32.xlu0 %v3844, 125
        %v3860 = vpop.permute.xlu0 %3859
        %3861 = vrot.lane.b32.xlu0 %v3846, 125
        %v3862 = vpop.permute.xlu0 %3861
        %3863 = vrot.lane.b32.xlu0 %v3848, 125
        %v3864 = vpop.permute.xlu0 %3863
        %3865 = vrot.lane.b32.xlu0 %v3850, 125
        %v3866 = vpop.permute.xlu0 %3865
        %3867 = vrot.lane.b32.xlu0 %v3852, 125
        %v3868 = vpop.permute.xlu0 %3867
        %3869 = vrot.lane.b32.xlu0 %v3854, 125
        %v3870 = vpop.permute.xlu0 %3869
        %3871 = vrot.lane.b32.xlu0 %v3851, 125
        %v3872 = vpop.permute.xlu0 %3871
        %3873 = vrot.lane.b32.xlu0 %v3853, 125
        %v3874 = vpop.permute.xlu0 %3873
        %v3875 = vsel %vm2058, %v3856, %v3858
        %v3876 = vsel %vm2058, %v3860, %v3862
        %v3877 = vsel %vm2058, %v3864, %v3866
        %v3878 = vsel %vm2058, %v3868, %v3870
        %v3879 = vsel %vm2058, %v3872, %v3874
        %v3890 = vadd.f32 %v3795, %v3856
        %v3891 = vadd.f32 %v3796, %v3875
        %v3892 = vadd.f32 %v3797, %v3860
        %v3893 = vadd.f32 %v3798, %v3876
        %v3894 = vadd.f32 %v3799, %v3864
        %v3895 = vadd.f32 %v3800, %v3877
        %v3896 = vadd.f32 %v3801, %v3868
        %v3897 = vadd.f32 %v3802, %v3878
        %v3898 = vadd.f32 %v3803, %v3872
        %v3899 = vadd.f32 %v3804, %v3879
        %v3900 = vld [vmem:[#allocation7 + $0x18] sm:$0xfc]
        %v3901 = vld [vmem:[#allocation7 + $0x20] sm:$0xfc]
        %v3902 = vld [vmem:[#allocation7 + $0x78] sm:$0x3]
        %v3903 = vld [vmem:[#allocation7 + $0x80] sm:$0x3]
        %v3904 = vld [vmem:[%s877] sm:$0xff]
        %v3905 = vld [vmem:[%s877 + $0x8] sm:$0xff]
        %v3906 = vld [vmem:[%s877 + $0x10] sm:$0xff]
        %v3907 = vld [vmem:[%s877 + $0x18] sm:$0xff]
        %v3912 = vrot.slane %v3904, 6
        %v3913 = vrot.slane %v3905, 6
        %v3914 = vsel %vm2330, %v3912, %v3913
        %v3915 = vrot.slane %v3906, 6
        %v3916 = vsel %vm2330, %v3913, %v3915
        %v3917 = vrot.slane %v3907, 6
        %v3918 = vsel %vm2330, %v3915, %v3917
        %3919 = vrot.lane.b32.xlu0 %v3912, 126
        %v3920 = vpop.permute.xlu0 %3919
        %3921 = vrot.lane.b32.xlu0 %v3914, 126
        %v3922 = vpop.permute.xlu0 %3921
        %3923 = vrot.lane.b32.xlu0 %v3916, 126
        %v3924 = vpop.permute.xlu0 %3923
        %3925 = vrot.lane.b32.xlu0 %v3918, 126
        %v3926 = vpop.permute.xlu0 %3925
        %3927 = vrot.lane.b32.xlu0 %v3917, 126
        %v3928 = vpop.permute.xlu0 %3927
        %v3934 = vmul.f32 %v3900, %v3920
        %v3935 = vmul.f32 %v3901, %v3920
        %v3936 = vmul.f32 %v2678, %v3922
        %v3937 = vmul.f32 %v2679, %v3922
        %v3938 = vmul.f32 %v2680, %v3924
        %v3939 = vmul.f32 %v2681, %v3924
        %v3940 = vmul.f32 %v2879, %v3926
        %v3941 = vmul.f32 %v2880, %v3926
        %v3942 = vmul.f32 %v3902, %v3928
        %v3943 = vmul.f32 %v3903, %v3928
        %v3954 = vrot.slane %v3934, 3
        %v3955 = vrot.slane %v3935, 3
        %v3956 = vrot.slane %v3936, 3
        %v3957 = vsel %vm2373, %v3954, %v3956
        %v3958 = vrot.slane %v3937, 3
        %v3959 = vsel %vm2373, %v3955, %v3958
        %v3960 = vrot.slane %v3938, 3
        %v3961 = vsel %vm2373, %v3956, %v3960
        %v3962 = vrot.slane %v3939, 3
        %v3963 = vsel %vm2373, %v3958, %v3962
        %v3964 = vrot.slane %v3940, 3
        %v3965 = vsel %vm2373, %v3960, %v3964
        %v3966 = vrot.slane %v3941, 3
        %v3967 = vsel %vm2373, %v3962, %v3966
        %v3968 = vrot.slane %v3942, 3
        %v3969 = vsel %vm2373, %v3964, %v3968
        %v3970 = vrot.slane %v3943, 3
        %v3971 = vsel %vm2373, %v3966, %v3970
        %3972 = vrot.lane.b32.xlu0 %v3954, 1
        %v3973 = vpop.permute.xlu0 %3972
        %3974 = vrot.lane.b32.xlu0 %v3955, 1
        %v3975 = vpop.permute.xlu0 %3974
        %3976 = vrot.lane.b32.xlu0 %v3957, 1
        %v3977 = vpop.permute.xlu0 %3976
        %3978 = vrot.lane.b32.xlu0 %v3959, 1
        %v3979 = vpop.permute.xlu0 %3978
        %3980 = vrot.lane.b32.xlu0 %v3961, 1
        %v3981 = vpop.permute.xlu0 %3980
        %3982 = vrot.lane.b32.xlu0 %v3963, 1
        %v3983 = vpop.permute.xlu0 %3982
        %3984 = vrot.lane.b32.xlu0 %v3965, 1
        %v3985 = vpop.permute.xlu0 %3984
        %3986 = vrot.lane.b32.xlu0 %v3967, 1
        %v3987 = vpop.permute.xlu0 %3986
        %3988 = vrot.lane.b32.xlu0 %v3969, 1
        %v3989 = vpop.permute.xlu0 %3988
        %3990 = vrot.lane.b32.xlu0 %v3971, 1
        %v3991 = vpop.permute.xlu0 %3990
        %v3992 = vsel %vm1878, %v3973, %v3975
        %v3993 = vsel %vm1878, %v3977, %v3979
        %v3994 = vsel %vm1878, %v3981, %v3983
        %v3995 = vsel %vm1878, %v3985, %v3987
        %v3996 = vsel %vm1878, %v3989, %v3991
        %v4007 = vadd.f32 %v3890, %v3973
        %v4008 = vadd.f32 %v3891, %v3992
        %v4009 = vadd.f32 %v3892, %v3977
        %v4010 = vadd.f32 %v3893, %v3993
        %v4011 = vadd.f32 %v3894, %v3981
        %v4012 = vadd.f32 %v3895, %v3994
        %v4013 = vadd.f32 %v3896, %v3985
        %v4014 = vadd.f32 %v3897, %v3995
        %v4015 = vadd.f32 %v3898, %v3989
        %v4016 = vadd.f32 %v3899, %v3996
        %v4017 = vld [vmem:[%s904] sm:$0xff]
        %v4018 = vld [vmem:[%s904 + $0x8] sm:$0xff]
        %v4019 = vld [vmem:[%s904 + $0x10] sm:$0xff]
        %v4020 = vld [vmem:[%s904 + $0x18] sm:$0xff]
        %v4025 = vrot.slane %v4017, 6
        %v4026 = vrot.slane %v4018, 6
        %v4027 = vsel %vm2330, %v4025, %v4026
        %v4028 = vrot.slane %v4019, 6
        %v4029 = vsel %vm2330, %v4026, %v4028
        %v4030 = vrot.slane %v4020, 6
        %v4031 = vsel %vm2330, %v4028, %v4030
        %v4037 = vmul.f32 %v3901, %v4025
        %v4038 = vmul.f32 %v2679, %v4027
        %v4039 = vmul.f32 %v2681, %v4029
        %v4040 = vmul.f32 %v2880, %v4031
        %v4041 = vmul.f32 %v3903, %v4030
        %v4047 = vrot.slane %v4037, 3
        %v4048 = vrot.slane %v4038, 3
        %v4049 = vsel %vm2373, %v4047, %v4048
        %v4050 = vrot.slane %v4039, 3
        %v4051 = vsel %vm2373, %v4048, %v4050
        %v4052 = vrot.slane %v4040, 3
        %v4053 = vsel %vm2373, %v4050, %v4052
        %v4054 = vrot.slane %v4041, 3
        %v4055 = vsel %vm2373, %v4052, %v4054
        %4056 = vrot.lane.b32.xlu0 %v4047, 127
        %v4057 = vpop.permute.xlu0 %4056
        %4058 = vrot.lane.b32.xlu0 %v4049, 127
        %v4059 = vpop.permute.xlu0 %4058
        %4060 = vrot.lane.b32.xlu0 %v4051, 127
        %v4061 = vpop.permute.xlu0 %4060
        %4062 = vrot.lane.b32.xlu0 %v4053, 127
        %v4063 = vpop.permute.xlu0 %4062
        %4064 = vrot.lane.b32.xlu0 %v4055, 127
        %v4065 = vpop.permute.xlu0 %4064
        %v4071 = vadd.f32 %v4007, %v4057
        %v4072 = vadd.f32 %v4008, %v4057
        %v4073 = vadd.f32 %v4009, %v4059
        %v4074 = vadd.f32 %v4010, %v4059
        %v4075 = vadd.f32 %v4011, %v4061
        %v4076 = vadd.f32 %v4012, %v4061
        %v4077 = vadd.f32 %v4013, %v4063
        %v4078 = vadd.f32 %v4014, %v4063
        %v4079 = vadd.f32 %v4015, %v4065
        %v4080 = vadd.f32 %v4016, %v4065
        %v4081 = vld [vmem:[#allocation7 + $0x20] sm:$0xfc]
        %v4082 = vld [vmem:[#allocation7 + $0x28] sm:$0xfc]
        %v4083 = vld [vmem:[#allocation7 + $0x80] sm:$0x3]
        %v4084 = vld [vmem:[#allocation7 + $0x88] sm:$0x3]
        %v4085 = vld [vmem:[%s931] sm:$0xff]
        %v4086 = vld [vmem:[%s931 + $0x8] sm:$0xff]
        %v4087 = vld [vmem:[%s931 + $0x10] sm:$0xff]
        %v4088 = vld [vmem:[%s931 + $0x18] sm:$0xff]
        %v4093 = vrot.slane %v4085, 6
        %v4094 = vrot.slane %v4086, 6
        %v4095 = vsel %vm2330, %v4093, %v4094
        %v4096 = vrot.slane %v4087, 6
        %v4097 = vsel %vm2330, %v4094, %v4096
        %v4098 = vrot.slane %v4088, 6
        %v4099 = vsel %vm2330, %v4096, %v4098
        %4100 = vrot.lane.b32.xlu0 %v4093, 2
        %v4101 = vpop.permute.xlu0 %4100
        %4102 = vrot.lane.b32.xlu0 %v4095, 2
        %v4103 = vpop.permute.xlu0 %4102
        %4104 = vrot.lane.b32.xlu0 %v4097, 2
        %v4105 = vpop.permute.xlu0 %4104
        %4106 = vrot.lane.b32.xlu0 %v4099, 2
        %v4107 = vpop.permute.xlu0 %4106
        %4108 = vrot.lane.b32.xlu0 %v4098, 2
        %v4109 = vpop.permute.xlu0 %4108
        %v4115 = vmul.f32 %v4081, %v4101
        %v4116 = vmul.f32 %v4082, %v4101
        %v4117 = vmul.f32 %v3249, %v4103
        %v4118 = vmul.f32 %v3250, %v4103
        %v4119 = vmul.f32 %v3251, %v4105
        %v4120 = vmul.f32 %v3252, %v4105
        %v4121 = vmul.f32 %v3253, %v4107
        %v4122 = vmul.f32 %v3254, %v4107
        %v4123 = vmul.f32 %v4083, %v4109
        %v4124 = vmul.f32 %v4084, %v4109
        %v4135 = vrot.slane %v4115, 3
        %v4136 = vrot.slane %v4116, 3
        %v4137 = vrot.slane %v4117, 3
        %v4138 = vsel %vm2373, %v4135, %v4137
        %v4139 = vrot.slane %v4118, 3
        %v4140 = vsel %vm2373, %v4136, %v4139
        %v4141 = vrot.slane %v4119, 3
        %v4142 = vsel %vm2373, %v4137, %v4141
        %v4143 = vrot.slane %v4120, 3
        %v4144 = vsel %vm2373, %v4139, %v4143
        %v4145 = vrot.slane %v4121, 3
        %v4146 = vsel %vm2373, %v4141, %v4145
        %v4147 = vrot.slane %v4122, 3
        %v4148 = vsel %vm2373, %v4143, %v4147
        %v4149 = vrot.slane %v4123, 3
        %v4150 = vsel %vm2373, %v4145, %v4149
        %v4151 = vrot.slane %v4124, 3
        %v4152 = vsel %vm2373, %v4147, %v4151
        %4153 = vrot.lane.b32.xlu0 %v4135, 125
        %v4154 = vpop.permute.xlu0 %4153
        %4155 = vrot.lane.b32.xlu0 %v4136, 125
        %v4156 = vpop.permute.xlu0 %4155
        %4157 = vrot.lane.b32.xlu0 %v4138, 125
        %v4158 = vpop.permute.xlu0 %4157
        %4159 = vrot.lane.b32.xlu0 %v4140, 125
        %v4160 = vpop.permute.xlu0 %4159
        %4161 = vrot.lane.b32.xlu0 %v4142, 125
        %v4162 = vpop.permute.xlu0 %4161
        %4163 = vrot.lane.b32.xlu0 %v4144, 125
        %v4164 = vpop.permute.xlu0 %4163
        %4165 = vrot.lane.b32.xlu0 %v4146, 125
        %v4166 = vpop.permute.xlu0 %4165
        %4167 = vrot.lane.b32.xlu0 %v4148, 125
        %v4168 = vpop.permute.xlu0 %4167
        %4169 = vrot.lane.b32.xlu0 %v4150, 125
        %v4170 = vpop.permute.xlu0 %4169
        %4171 = vrot.lane.b32.xlu0 %v4152, 125
        %v4172 = vpop.permute.xlu0 %4171
        %v4173 = vsel %vm2058, %v4154, %v4156
        %v4174 = vsel %vm2058, %v4158, %v4160
        %v4175 = vsel %vm2058, %v4162, %v4164
        %v4176 = vsel %vm2058, %v4166, %v4168
        %v4177 = vsel %vm2058, %v4170, %v4172
        %v4188 = vadd.f32 %v4071, %v4154
        %v4189 = vadd.f32 %v4072, %v4173
        %v4190 = vadd.f32 %v4073, %v4158
        %v4191 = vadd.f32 %v4074, %v4174
        %v4192 = vadd.f32 %v4075, %v4162
        %v4193 = vadd.f32 %v4076, %v4175
        %v4194 = vadd.f32 %v4077, %v4166
        %v4195 = vadd.f32 %v4078, %v4176
        %v4196 = vadd.f32 %v4079, %v4170
        %v4197 = vadd.f32 %v4080, %v4177
        %v4208 = vrot.slane %v4188, 7
        %v4209 = vrot.slane %v4190, 7
        %v4210 = vsel %vm1517, %v4208, %v4209
        %v4211 = vrot.slane %v4189, 7
        %v4212 = vrot.slane %v4191, 7
        %v4213 = vsel %vm1517, %v4211, %v4212
        %v4214 = vrot.slane %v4192, 7
        %v4215 = vsel %vm1517, %v4209, %v4214
        %v4216 = vrot.slane %v4193, 7
        %v4217 = vsel %vm1517, %v4212, %v4216
        %v4218 = vrot.slane %v4194, 7
        %v4219 = vsel %vm1517, %v4214, %v4218
        %v4220 = vrot.slane %v4195, 7
        %v4221 = vsel %vm1517, %v4216, %v4220
        %v4222 = vrot.slane %v4196, 7
        %v4223 = vsel %vm1517, %v4218, %v4222
        %v4224 = vrot.slane %v4197, 7
        %v4225 = vsel %vm1517, %v4220, %v4224
        %4226 = vrot.lane.b32.xlu0 %v4210, 1
        %v4227 = vpop.permute.xlu0 %4226
        %4228 = vrot.lane.b32.xlu0 %v4213, 1
        %v4229 = vpop.permute.xlu0 %4228
        %4230 = vrot.lane.b32.xlu0 %v4215, 1
        %v4231 = vpop.permute.xlu0 %4230
        %4232 = vrot.lane.b32.xlu0 %v4217, 1
        %v4233 = vpop.permute.xlu0 %4232
        %4234 = vrot.lane.b32.xlu0 %v4219, 1
        %v4235 = vpop.permute.xlu0 %4234
        %4236 = vrot.lane.b32.xlu0 %v4221, 1
        %v4237 = vpop.permute.xlu0 %4236
        %4238 = vrot.lane.b32.xlu0 %v4223, 1
        %v4239 = vpop.permute.xlu0 %4238
        %4240 = vrot.lane.b32.xlu0 %v4225, 1
        %v4241 = vpop.permute.xlu0 %4240
        %v4242 = vsel %vm1878, %v4227, %v4229
        %v4243 = vsel %vm1878, %v4231, %v4233
        %v4244 = vsel %vm1878, %v4235, %v4237
        %v4245 = vsel %vm1878, %v4239, %v4241
        %4250 = vst [vmem:[#allocation7 + $0x20] sm:$0xff] %v4242
        %4251 = vst [vmem:[#allocation7 + $0x38] sm:$0xff] %v4243
        %4252 = vst [vmem:[#allocation7 + $0x50] sm:$0xff] %v4244
        %4253 = vst [vmem:[#allocation7 + $0x68] sm:$0xff] %v4245
        %v4254 = vld [vmem:[#allocation7 + $0x18] sm:$0xff]
        %v4255 = vld [vmem:[#allocation7 + $0x20] sm:$0xff]
        %v4256 = vld [vmem:[#allocation7 + $0x30] sm:$0xff]
        %v4257 = vld [vmem:[#allocation7 + $0x38] sm:$0xff]
        %v4258 = vld [vmem:[#allocation7 + $0x48] sm:$0xff]
        %v4259 = vld [vmem:[#allocation7 + $0x50] sm:$0xff]
        %v4260 = vld [vmem:[#allocation5] sm:$0xff]
        %v4261 = vld [vmem:[#allocation5 + $0x8] sm:$0xff]
        %v4262 = vld [vmem:[#allocation5 + $0x10] sm:$0xff]
        %v4263 = vld [vmem:[#allocation5 + $0x18] sm:$0xff]
        %v4268 = vrot.slane %v4260, 1
        %v4269 = vrot.slane %v4261, 1
        %v4270 = vsel %vm1104, %v4268, %v4269
        %v4271 = vrot.slane %v4262, 1
        %v4272 = vsel %vm1104, %v4269, %v4271
        %v4273 = vrot.slane %v4263, 1
        %v4274 = vsel %vm1104, %v4271, %v4273
        %4275 = vrot.lane.b32.xlu0 %v4270, 127
        %v4276 = vpop.permute.xlu0 %4275
        %4277 = vrot.lane.b32.xlu0 %v4272, 127
        %v4278 = vpop.permute.xlu0 %4277
        %4279 = vrot.lane.b32.xlu0 %v4274, 127
        %v4280 = vpop.permute.xlu0 %4279
        %v4284 = vmul.f32 %v4254, %v4276
        %v4285 = vmul.f32 %v4255, %v4276
        %v4286 = vmul.f32 %v4256, %v4278
        %v4287 = vmul.f32 %v4257, %v4278
        %v4288 = vmul.f32 %v4258, %v4280
        %v4289 = vmul.f32 %v4259, %v4280
        %v4290 = vld [vmem:[%s279] sm:$0xff]
        %v4291 = vld [vmem:[%s279 + $0x8] sm:$0xff]
        %v4292 = vld [vmem:[%s279 + $0x10] sm:$0xff]
        %v4293 = vld [vmem:[%s279 + $0x18] sm:$0xff]
        %v4298 = vrot.slane %v4290, 1
        %v4299 = vrot.slane %v4291, 1
        %v4300 = vsel %vm1104, %v4298, %v4299
        %v4301 = vrot.slane %v4292, 1
        %v4302 = vsel %vm1104, %v4299, %v4301
        %v4303 = vrot.slane %v4293, 1
        %v4304 = vsel %vm1104, %v4301, %v4303
        %v4308 = vmul.f32 %v4255, %v4300
        %v4309 = vmul.f32 %v4257, %v4302
        %v4310 = vmul.f32 %v4259, %v4304
        %4314 = vrot.lane.b32.xlu0 %v4308, 127
        %v4315 = vpop.permute.xlu0 %4314
        %4316 = vrot.lane.b32.xlu0 %v4309, 127
        %v4317 = vpop.permute.xlu0 %4316
        %4318 = vrot.lane.b32.xlu0 %v4310, 127
        %v4319 = vpop.permute.xlu0 %4318
        %v4323 = vadd.f32 %v4284, %v4315
        %v4324 = vadd.f32 %v4285, %v4315
        %v4325 = vadd.f32 %v4286, %v4317
        %v4326 = vadd.f32 %v4287, %v4317
        %v4327 = vadd.f32 %v4288, %v4319
        %v4328 = vadd.f32 %v4289, %v4319
        %v4329 = vld [vmem:[#allocation7 + $0x28] sm:$0xff]
        %v4330 = vld [vmem:[#allocation7 + $0x40] sm:$0xff]
        %v4331 = vld [vmem:[#allocation7 + $0x58] sm:$0xff]
        %v4332 = vld [vmem:[%s306] sm:$0xff]
        %v4333 = vld [vmem:[%s306 + $0x8] sm:$0xff]
        %v4334 = vld [vmem:[%s306 + $0x10] sm:$0xff]
        %v4335 = vld [vmem:[%s306 + $0x18] sm:$0xff]
        %v4340 = vrot.slane %v4332, 1
        %v4341 = vrot.slane %v4333, 1
        %v4342 = vsel %vm1104, %v4340, %v4341
        %v4343 = vrot.slane %v4334, 1
        %v4344 = vsel %vm1104, %v4341, %v4343
        %v4345 = vrot.slane %v4335, 1
        %v4346 = vsel %vm1104, %v4343, %v4345
        %4347 = vrot.lane.b32.xlu0 %v4342, 1
        %v4348 = vpop.permute.xlu0 %4347
        %4349 = vrot.lane.b32.xlu0 %v4344, 1
        %v4350 = vpop.permute.xlu0 %4349
        %4351 = vrot.lane.b32.xlu0 %v4346, 1
        %v4352 = vpop.permute.xlu0 %4351
        %v4356 = vmul.f32 %v4255, %v4348
        %v4357 = vmul.f32 %v4329, %v4348
        %v4358 = vmul.f32 %v4257, %v4350
        %v4359 = vmul.f32 %v4330, %v4350
        %v4360 = vmul.f32 %v4259, %v4352
        %v4361 = vmul.f32 %v4331, %v4352
        %4368 = vrot.lane.b32.xlu0 %v4356, 126
        %v4369 = vpop.permute.xlu0 %4368
        %4370 = vrot.lane.b32.xlu0 %v4357, 126
        %v4371 = vpop.permute.xlu0 %4370
        %4372 = vrot.lane.b32.xlu0 %v4358, 126
        %v4373 = vpop.permute.xlu0 %4372
        %4374 = vrot.lane.b32.xlu0 %v4359, 126
        %v4375 = vpop.permute.xlu0 %4374
        %4376 = vrot.lane.b32.xlu0 %v4360, 126
        %v4377 = vpop.permute.xlu0 %4376
        %4378 = vrot.lane.b32.xlu0 %v4361, 126
        %v4379 = vpop.permute.xlu0 %4378
        %v4380 = vsel %vm1267, %v4369, %v4371
        %v4381 = vsel %vm1267, %v4373, %v4375
        %v4382 = vsel %vm1267, %v4377, %v4379
        %v4389 = vadd.f32 %v4323, %v4369
        %v4390 = vadd.f32 %v4324, %v4380
        %v4391 = vadd.f32 %v4325, %v4373
        %v4392 = vadd.f32 %v4326, %v4381
        %v4393 = vadd.f32 %v4327, %v4377
        %v4394 = vadd.f32 %v4328, %v4382
        %v4395 = vld [vmem:[#allocation7 + $0x60] sm:$0xff]
        %v4396 = vld [vmem:[#allocation7 + $0x68] sm:$0xff]
        %v4397 = vld [vmem:[%s333] sm:$0xff]
        %v4398 = vld [vmem:[%s333 + $0x8] sm:$0xff]
        %v4399 = vld [vmem:[%s333 + $0x10] sm:$0xff]
        %v4400 = vld [vmem:[%s333 + $0x18] sm:$0xff]
        %4405 = vrot.lane.b32.xlu0 %v4397, 127
        %v4406 = vpop.permute.xlu0 %4405
        %4407 = vrot.lane.b32.xlu0 %v4398, 127
        %v4408 = vpop.permute.xlu0 %4407
        %4409 = vrot.lane.b32.xlu0 %v4399, 127
        %v4410 = vpop.permute.xlu0 %4409
        %4411 = vrot.lane.b32.xlu0 %v4400, 127
        %v4412 = vpop.permute.xlu0 %4411
        %v4417 = vmul.f32 %v4254, %v4406
        %v4418 = vmul.f32 %v4255, %v4406
        %v4419 = vmul.f32 %v4256, %v4408
        %v4420 = vmul.f32 %v4257, %v4408
        %v4421 = vmul.f32 %v4258, %v4410
        %v4422 = vmul.f32 %v4259, %v4410
        %v4423 = vmul.f32 %v4395, %v4412
        %v4424 = vmul.f32 %v4396, %v4412
        %v4433 = vrot.slane %v4417, 1
        %v4434 = vrot.slane %v4419, 1
        %v4435 = vsel %vm1104, %v4433, %v4434
        %v4436 = vrot.slane %v4418, 1
        %v4437 = vrot.slane %v4420, 1
        %v4438 = vsel %vm1104, %v4436, %v4437
        %v4439 = vrot.slane %v4421, 1
        %v4440 = vsel %vm1104, %v4434, %v4439
        %v4441 = vrot.slane %v4422, 1
        %v4442 = vsel %vm1104, %v4437, %v4441
        %v4443 = vrot.slane %v4423, 1
        %v4444 = vsel %vm1104, %v4439, %v4443
        %v4445 = vrot.slane %v4424, 1
        %v4446 = vsel %vm1104, %v4441, %v4445
        %v4453 = vadd.f32 %v4389, %v4435
        %v4454 = vadd.f32 %v4390, %v4438
        %v4455 = vadd.f32 %v4391, %v4440
        %v4456 = vadd.f32 %v4392, %v4442
        %v4457 = vadd.f32 %v4393, %v4444
        %v4458 = vadd.f32 %v4394, %v4446
        %v4459 = vld [vmem:[%s360] sm:$0xff]
        %v4460 = vld [vmem:[%s360 + $0x8] sm:$0xff]
        %v4461 = vld [vmem:[%s360 + $0x10] sm:$0xff]
        %v4462 = vld [vmem:[%s360 + $0x18] sm:$0xff]
        %v4463 = vmul.f32 %v4255, %v4459
        %v4464 = vmul.f32 %v4257, %v4460
        %v4465 = vmul.f32 %v4259, %v4461
        %v4466 = vmul.f32 %v4396, %v4462
        %v4471 = vrot.slane %v4463, 1
        %v4472 = vrot.slane %v4464, 1
        %v4473 = vsel %vm1104, %v4471, %v4472
        %v4474 = vrot.slane %v4465, 1
        %v4475 = vsel %vm1104, %v4472, %v4474
        %v4476 = vrot.slane %v4466, 1
        %v4477 = vsel %vm1104, %v4474, %v4476
        %4478 = vrot.lane.b32.xlu0 %v4473, 127
        %v4479 = vpop.permute.xlu0 %4478
        %4480 = vrot.lane.b32.xlu0 %v4475, 127
        %v4481 = vpop.permute.xlu0 %4480
        %4482 = vrot.lane.b32.xlu0 %v4477, 127
        %v4483 = vpop.permute.xlu0 %4482
        %v4487 = vadd.f32 %v4453, %v4479
        %v4488 = vadd.f32 %v4454, %v4479
        %v4489 = vadd.f32 %v4455, %v4481
        %v4490 = vadd.f32 %v4456, %v4481
        %v4491 = vadd.f32 %v4457, %v4483
        %v4492 = vadd.f32 %v4458, %v4483
        %v4493 = vld [vmem:[#allocation7 + $0x70] sm:$0xff]
        %v4494 = vld [vmem:[%s387] sm:$0xff]
        %v4495 = vld [vmem:[%s387 + $0x8] sm:$0xff]
        %v4496 = vld [vmem:[%s387 + $0x10] sm:$0xff]
        %v4497 = vld [vmem:[%s387 + $0x18] sm:$0xff]
        %4502 = vrot.lane.b32.xlu0 %v4494, 1
        %v4503 = vpop.permute.xlu0 %4502
        %4504 = vrot.lane.b32.xlu0 %v4495, 1
        %v4505 = vpop.permute.xlu0 %4504
        %4506 = vrot.lane.b32.xlu0 %v4496, 1
        %v4507 = vpop.permute.xlu0 %4506
        %4508 = vrot.lane.b32.xlu0 %v4497, 1
        %v4509 = vpop.permute.xlu0 %4508
        %v4514 = vmul.f32 %v4255, %v4503
        %v4515 = vmul.f32 %v4329, %v4503
        %v4516 = vmul.f32 %v4257, %v4505
        %v4517 = vmul.f32 %v4330, %v4505
        %v4518 = vmul.f32 %v4259, %v4507
        %v4519 = vmul.f32 %v4331, %v4507
        %v4520 = vmul.f32 %v4396, %v4509
        %v4521 = vmul.f32 %v4493, %v4509
        %v4530 = vrot.slane %v4514, 1
        %v4531 = vrot.slane %v4516, 1
        %v4532 = vsel %vm1104, %v4530, %v4531
        %v4533 = vrot.slane %v4515, 1
        %v4534 = vrot.slane %v4517, 1
        %v4535 = vsel %vm1104, %v4533, %v4534
        %v4536 = vrot.slane %v4518, 1
        %v4537 = vsel %vm1104, %v4531, %v4536
        %v4538 = vrot.slane %v4519, 1
        %v4539 = vsel %vm1104, %v4534, %v4538
        %v4540 = vrot.slane %v4520, 1
        %v4541 = vsel %vm1104, %v4536, %v4540
        %v4542 = vrot.slane %v4521, 1
        %v4543 = vsel %vm1104, %v4538, %v4542
        %4544 = vrot.lane.b32.xlu0 %v4532, 126
        %v4545 = vpop.permute.xlu0 %4544
        %4546 = vrot.lane.b32.xlu0 %v4535, 126
        %v4547 = vpop.permute.xlu0 %4546
        %4548 = vrot.lane.b32.xlu0 %v4537, 126
        %v4549 = vpop.permute.xlu0 %4548
        %4550 = vrot.lane.b32.xlu0 %v4539, 126
        %v4551 = vpop.permute.xlu0 %4550
        %4552 = vrot.lane.b32.xlu0 %v4541, 126
        %v4553 = vpop.permute.xlu0 %4552
        %4554 = vrot.lane.b32.xlu0 %v4543, 126
        %v4555 = vpop.permute.xlu0 %4554
        %v4556 = vsel %vm1267, %v4545, %v4547
        %v4557 = vsel %vm1267, %v4549, %v4551
        %v4558 = vsel %vm1267, %v4553, %v4555
        %v4565 = vadd.f32 %v4487, %v4545
        %v4566 = vadd.f32 %v4488, %v4556
        %v4567 = vadd.f32 %v4489, %v4549
        %v4568 = vadd.f32 %v4490, %v4557
        %v4569 = vadd.f32 %v4491, %v4553
        %v4570 = vadd.f32 %v4492, %v4558
        %v4571 = vld [vmem:[#allocation7 + $0x18] sm:$0xfe]
        %v4572 = vld [vmem:[#allocation7 + $0x20] sm:$0xfe]
        %v4573 = vld [vmem:[%s414] sm:$0xff]
        %v4574 = vld [vmem:[%s414 + $0x8] sm:$0xff]
        %v4575 = vld [vmem:[%s414 + $0x10] sm:$0xff]
        %v4576 = vld [vmem:[%s414 + $0x18] sm:$0xff]
        %v4581 = vrot.slane %v4573, 7
        %v4582 = vrot.slane %v4574, 7
        %v4583 = vsel %vm1517, %v4581, %v4582
        %v4584 = vrot.slane %v4575, 7
        %v4585 = vsel %vm1517, %v4582, %v4584
        %v4586 = vrot.slane %v4576, 7
        %v4587 = vsel %vm1517, %v4584, %v4586
        %4588 = vrot.lane.b32.xlu0 %v4581, 127
        %v4589 = vpop.permute.xlu0 %4588
        %4590 = vrot.lane.b32.xlu0 %v4583, 127
        %v4591 = vpop.permute.xlu0 %4590
        %4592 = vrot.lane.b32.xlu0 %v4585, 127
        %v4593 = vpop.permute.xlu0 %4592
        %4594 = vrot.lane.b32.xlu0 %v4587, 127
        %v4595 = vpop.permute.xlu0 %4594
        %v4600 = vmul.f32 %v4571, %v4589
        %v4601 = vmul.f32 %v4572, %v4589
        %v4602 = vmul.f32 %v4256, %v4591
        %v4603 = vmul.f32 %v4257, %v4591
        %v4604 = vmul.f32 %v4258, %v4593
        %v4605 = vmul.f32 %v4259, %v4593
        %v4606 = vmul.f32 %v4395, %v4595
        %v4607 = vmul.f32 %v4396, %v4595
        %v4616 = vrot.slane %v4600, 2
        %v4617 = vrot.slane %v4602, 2
        %v4618 = vsel %vm1560, %v4616, %v4617
        %v4619 = vrot.slane %v4601, 2
        %v4620 = vrot.slane %v4603, 2
        %v4621 = vsel %vm1560, %v4619, %v4620
        %v4622 = vrot.slane %v4604, 2
        %v4623 = vsel %vm1560, %v4617, %v4622
        %v4624 = vrot.slane %v4605, 2
        %v4625 = vsel %vm1560, %v4620, %v4624
        %v4626 = vrot.slane %v4606, 2
        %v4627 = vsel %vm1560, %v4622, %v4626
        %v4628 = vrot.slane %v4607, 2
        %v4629 = vsel %vm1560, %v4624, %v4628
        %v4636 = vadd.f32 %v4565, %v4618
        %v4637 = vadd.f32 %v4566, %v4621
        %v4638 = vadd.f32 %v4567, %v4623
        %v4639 = vadd.f32 %v4568, %v4625
        %v4640 = vadd.f32 %v4569, %v4627
        %v4641 = vadd.f32 %v4570, %v4629
        %v4642 = vld [vmem:[%s441] sm:$0xff]
        %v4643 = vld [vmem:[%s441 + $0x8] sm:$0xff]
        %v4644 = vld [vmem:[%s441 + $0x10] sm:$0xff]
        %v4645 = vld [vmem:[%s441 + $0x18] sm:$0xff]
        %v4650 = vrot.slane %v4642, 7
        %v4651 = vrot.slane %v4643, 7
        %v4652 = vsel %vm1517, %v4650, %v4651
        %v4653 = vrot.slane %v4644, 7
        %v4654 = vsel %vm1517, %v4651, %v4653
        %v4655 = vrot.slane %v4645, 7
        %v4656 = vsel %vm1517, %v4653, %v4655
        %v4661 = vmul.f32 %v4572, %v4650
        %v4662 = vmul.f32 %v4257, %v4652
        %v4663 = vmul.f32 %v4259, %v4654
        %v4664 = vmul.f32 %v4396, %v4656
        %v4669 = vrot.slane %v4661, 2
        %v4670 = vrot.slane %v4662, 2
        %v4671 = vsel %vm1560, %v4669, %v4670
        %v4672 = vrot.slane %v4663, 2
        %v4673 = vsel %vm1560, %v4670, %v4672
        %v4674 = vrot.slane %v4664, 2
        %v4675 = vsel %vm1560, %v4672, %v4674
        %4676 = vrot.lane.b32.xlu0 %v4671, 127
        %v4677 = vpop.permute.xlu0 %4676
        %4678 = vrot.lane.b32.xlu0 %v4673, 127
        %v4679 = vpop.permute.xlu0 %4678
        %4680 = vrot.lane.b32.xlu0 %v4675, 127
        %v4681 = vpop.permute.xlu0 %4680
        %v4685 = vadd.f32 %v4636, %v4677
        %v4686 = vadd.f32 %v4637, %v4677
        %v4687 = vadd.f32 %v4638, %v4679
        %v4688 = vadd.f32 %v4639, %v4679
        %v4689 = vadd.f32 %v4640, %v4681
        %v4690 = vadd.f32 %v4641, %v4681
        %v4691 = vld [vmem:[#allocation7 + $0x20] sm:$0xfe]
        %v4692 = vld [vmem:[#allocation7 + $0x28] sm:$0xfe]
        %v4693 = vld [vmem:[#allocation7 + $0x38] sm:$0xff]
        %v4694 = vld [vmem:[#allocation7 + $0x40] sm:$0xff]
        %v4695 = vld [vmem:[#allocation7 + $0x50] sm:$0xff]
        %v4696 = vld [vmem:[#allocation7 + $0x58] sm:$0xff]
        %v4697 = vld [vmem:[#allocation7 + $0x68] sm:$0xff]
        %v4698 = vld [vmem:[#allocation7 + $0x70] sm:$0xff]
        %v4699 = vld [vmem:[%s468] sm:$0xff]
        %v4700 = vld [vmem:[%s468 + $0x8] sm:$0xff]
        %v4701 = vld [vmem:[%s468 + $0x10] sm:$0xff]
        %v4702 = vld [vmem:[%s468 + $0x18] sm:$0xff]
        %v4707 = vrot.slane %v4699, 7
        %v4708 = vrot.slane %v4700, 7
        %v4709 = vsel %vm1517, %v4707, %v4708
        %v4710 = vrot.slane %v4701, 7
        %v4711 = vsel %vm1517, %v4708, %v4710
        %v4712 = vrot.slane %v4702, 7
        %v4713 = vsel %vm1517, %v4710, %v4712
        %4714 = vrot.lane.b32.xlu0 %v4707, 1
        %v4715 = vpop.permute.xlu0 %4714
        %4716 = vrot.lane.b32.xlu0 %v4709, 1
        %v4717 = vpop.permute.xlu0 %4716
        %4718 = vrot.lane.b32.xlu0 %v4711, 1
        %v4719 = vpop.permute.xlu0 %4718
        %4720 = vrot.lane.b32.xlu0 %v4713, 1
        %v4721 = vpop.permute.xlu0 %4720
        %v4726 = vmul.f32 %v4691, %v4715
        %v4727 = vmul.f32 %v4692, %v4715
        %v4728 = vmul.f32 %v4693, %v4717
        %v4729 = vmul.f32 %v4694, %v4717
        %v4730 = vmul.f32 %v4695, %v4719
        %v4731 = vmul.f32 %v4696, %v4719
        %v4732 = vmul.f32 %v4697, %v4721
        %v4733 = vmul.f32 %v4698, %v4721
        %v4742 = vrot.slane %v4726, 2
        %v4743 = vrot.slane %v4728, 2
        %v4744 = vsel %vm1560, %v4742, %v4743
        %v4745 = vrot.slane %v4727, 2
        %v4746 = vrot.slane %v4729, 2
        %v4747 = vsel %vm1560, %v4745, %v4746
        %v4748 = vrot.slane %v4730, 2
        %v4749 = vsel %vm1560, %v4743, %v4748
        %v4750 = vrot.slane %v4731, 2
        %v4751 = vsel %vm1560, %v4746, %v4750
        %v4752 = vrot.slane %v4732, 2
        %v4753 = vsel %vm1560, %v4748, %v4752
        %v4754 = vrot.slane %v4733, 2
        %v4755 = vsel %vm1560, %v4750, %v4754
        %4756 = vrot.lane.b32.xlu0 %v4744, 126
        %v4757 = vpop.permute.xlu0 %4756
        %4758 = vrot.lane.b32.xlu0 %v4747, 126
        %v4759 = vpop.permute.xlu0 %4758
        %4760 = vrot.lane.b32.xlu0 %v4749, 126
        %v4761 = vpop.permute.xlu0 %4760
        %4762 = vrot.lane.b32.xlu0 %v4751, 126
        %v4763 = vpop.permute.xlu0 %4762
        %4764 = vrot.lane.b32.xlu0 %v4753, 126
        %v4765 = vpop.permute.xlu0 %4764
        %4766 = vrot.lane.b32.xlu0 %v4755, 126
        %v4767 = vpop.permute.xlu0 %4766
        %v4768 = vsel %vm1267, %v4757, %v4759
        %v4769 = vsel %vm1267, %v4761, %v4763
        %v4770 = vsel %vm1267, %v4765, %v4767
        %v4777 = vadd.f32 %v4685, %v4757
        %v4778 = vadd.f32 %v4686, %v4768
        %v4779 = vadd.f32 %v4687, %v4761
        %v4780 = vadd.f32 %v4688, %v4769
        %v4781 = vadd.f32 %v4689, %v4765
        %v4782 = vadd.f32 %v4690, %v4770
        %v4783 = vld [vmem:[#allocation7] sm:$0xc0]
        %v4784 = vld [vmem:[#allocation7 + $0x8] sm:$0xc0]
        %v4785 = vld [vmem:[%s719] sm:$0xff]
        %v4786 = vld [vmem:[%s719 + $0x8] sm:$0xff]
        %v4787 = vld [vmem:[%s719 + $0x10] sm:$0xff]
        %v4788 = vld [vmem:[%s719 + $0x18] sm:$0xff]
        %v4793 = vrot.slane %v4785, 2
        %v4794 = vrot.slane %v4786, 2
        %v4795 = vsel %vm1560, %v4793, %v4794
        %v4796 = vrot.slane %v4787, 2
        %v4797 = vsel %vm1560, %v4794, %v4796
        %v4798 = vrot.slane %v4788, 2
        %v4799 = vsel %vm1560, %v4796, %v4798
        %4800 = vrot.lane.b32.xlu0 %v4793, 126
        %v4801 = vpop.permute.xlu0 %4800
        %4802 = vrot.lane.b32.xlu0 %v4795, 126
        %v4803 = vpop.permute.xlu0 %4802
        %4804 = vrot.lane.b32.xlu0 %v4797, 126
        %v4805 = vpop.permute.xlu0 %4804
        %4806 = vrot.lane.b32.xlu0 %v4799, 126
        %v4807 = vpop.permute.xlu0 %4806
        %v4812 = vmul.f32 %v4783, %v4801
        %v4813 = vmul.f32 %v4784, %v4801
        %v4814 = vmul.f32 %v4254, %v4803
        %v4815 = vmul.f32 %v4255, %v4803
        %v4816 = vmul.f32 %v4256, %v4805
        %v4817 = vmul.f32 %v4257, %v4805
        %v4818 = vmul.f32 %v4258, %v4807
        %v4819 = vmul.f32 %v4259, %v4807
        %v4828 = vrot.slane %v4812, 7
        %v4829 = vrot.slane %v4814, 7
        %v4830 = vsel %vm1517, %v4828, %v4829
        %v4831 = vrot.slane %v4813, 7
        %v4832 = vrot.slane %v4815, 7
        %v4833 = vsel %vm1517, %v4831, %v4832
        %v4834 = vrot.slane %v4816, 7
        %v4835 = vsel %vm1517, %v4829, %v4834
        %v4836 = vrot.slane %v4817, 7
        %v4837 = vsel %vm1517, %v4832, %v4836
        %v4838 = vrot.slane %v4818, 7
        %v4839 = vsel %vm1517, %v4834, %v4838
        %v4840 = vrot.slane %v4819, 7
        %v4841 = vsel %vm1517, %v4836, %v4840
        %4842 = vrot.lane.b32.xlu0 %v4830, 1
        %v4843 = vpop.permute.xlu0 %4842
        %4844 = vrot.lane.b32.xlu0 %v4833, 1
        %v4845 = vpop.permute.xlu0 %4844
        %4846 = vrot.lane.b32.xlu0 %v4835, 1
        %v4847 = vpop.permute.xlu0 %4846
        %4848 = vrot.lane.b32.xlu0 %v4837, 1
        %v4849 = vpop.permute.xlu0 %4848
        %4850 = vrot.lane.b32.xlu0 %v4839, 1
        %v4851 = vpop.permute.xlu0 %4850
        %4852 = vrot.lane.b32.xlu0 %v4841, 1
        %v4853 = vpop.permute.xlu0 %4852
        %v4854 = vsel %vm1878, %v4843, %v4845
        %v4855 = vsel %vm1878, %v4847, %v4849
        %v4856 = vsel %vm1878, %v4851, %v4853
        %v4863 = vadd.f32 %v4777, %v4843
        %v4864 = vadd.f32 %v4778, %v4854
        %v4865 = vadd.f32 %v4779, %v4847
        %v4866 = vadd.f32 %v4780, %v4855
        %v4867 = vadd.f32 %v4781, %v4851
        %v4868 = vadd.f32 %v4782, %v4856
        %v4869 = vld [vmem:[%s742] sm:$0xff]
        %v4870 = vld [vmem:[%s742 + $0x8] sm:$0xff]
        %v4871 = vld [vmem:[%s742 + $0x10] sm:$0xff]
        %v4872 = vld [vmem:[%s742 + $0x18] sm:$0xff]
        %v4877 = vrot.slane %v4869, 2
        %v4878 = vrot.slane %v4870, 2
        %v4879 = vsel %vm1560, %v4877, %v4878
        %v4880 = vrot.slane %v4871, 2
        %v4881 = vsel %vm1560, %v4878, %v4880
        %v4882 = vrot.slane %v4872, 2
        %v4883 = vsel %vm1560, %v4880, %v4882
        %v4888 = vmul.f32 %v4784, %v4877
        %v4889 = vmul.f32 %v4255, %v4879
        %v4890 = vmul.f32 %v4257, %v4881
        %v4891 = vmul.f32 %v4259, %v4883
        %v4896 = vrot.slane %v4888, 7
        %v4897 = vrot.slane %v4889, 7
        %v4898 = vsel %vm1517, %v4896, %v4897
        %v4899 = vrot.slane %v4890, 7
        %v4900 = vsel %vm1517, %v4897, %v4899
        %v4901 = vrot.slane %v4891, 7
        %v4902 = vsel %vm1517, %v4899, %v4901
        %4903 = vrot.lane.b32.xlu0 %v4898, 127
        %v4904 = vpop.permute.xlu0 %4903
        %4905 = vrot.lane.b32.xlu0 %v4900, 127
        %v4906 = vpop.permute.xlu0 %4905
        %4907 = vrot.lane.b32.xlu0 %v4902, 127
        %v4908 = vpop.permute.xlu0 %4907
        %v4912 = vadd.f32 %v4863, %v4904
        %v4913 = vadd.f32 %v4864, %v4904
        %v4914 = vadd.f32 %v4865, %v4906
        %v4915 = vadd.f32 %v4866, %v4906
        %v4916 = vadd.f32 %v4867, %v4908
        %v4917 = vadd.f32 %v4868, %v4908
        %v4918 = vld [vmem:[#allocation7 + $0x10] sm:$0xc0]
        %v4919 = vld [vmem:[%s769] sm:$0xff]
        %v4920 = vld [vmem:[%s769 + $0x8] sm:$0xff]
        %v4921 = vld [vmem:[%s769 + $0x10] sm:$0xff]
        %v4922 = vld [vmem:[%s769 + $0x18] sm:$0xff]
        %v4927 = vrot.slane %v4919, 2
        %v4928 = vrot.slane %v4920, 2
        %v4929 = vsel %vm1560, %v4927, %v4928
        %v4930 = vrot.slane %v4921, 2
        %v4931 = vsel %vm1560, %v4928, %v4930
        %v4932 = vrot.slane %v4922, 2
        %v4933 = vsel %vm1560, %v4930, %v4932
        %4934 = vrot.lane.b32.xlu0 %v4927, 2
        %v4935 = vpop.permute.xlu0 %4934
        %4936 = vrot.lane.b32.xlu0 %v4929, 2
        %v4937 = vpop.permute.xlu0 %4936
        %4938 = vrot.lane.b32.xlu0 %v4931, 2
        %v4939 = vpop.permute.xlu0 %4938
        %4940 = vrot.lane.b32.xlu0 %v4933, 2
        %v4941 = vpop.permute.xlu0 %4940
        %v4946 = vmul.f32 %v4784, %v4935
        %v4947 = vmul.f32 %v4918, %v4935
        %v4948 = vmul.f32 %v4255, %v4937
        %v4949 = vmul.f32 %v4329, %v4937
        %v4950 = vmul.f32 %v4257, %v4939
        %v4951 = vmul.f32 %v4330, %v4939
        %v4952 = vmul.f32 %v4259, %v4941
        %v4953 = vmul.f32 %v4331, %v4941
        %v4962 = vrot.slane %v4946, 7
        %v4963 = vrot.slane %v4948, 7
        %v4964 = vsel %vm1517, %v4962, %v4963
        %v4965 = vrot.slane %v4947, 7
        %v4966 = vrot.slane %v4949, 7
        %v4967 = vsel %vm1517, %v4965, %v4966
        %v4968 = vrot.slane %v4950, 7
        %v4969 = vsel %vm1517, %v4963, %v4968
        %v4970 = vrot.slane %v4951, 7
        %v4971 = vsel %vm1517, %v4966, %v4970
        %v4972 = vrot.slane %v4952, 7
        %v4973 = vsel %vm1517, %v4968, %v4972
        %v4974 = vrot.slane %v4953, 7
        %v4975 = vsel %vm1517, %v4970, %v4974
        %4976 = vrot.lane.b32.xlu0 %v4964, 125
        %v4977 = vpop.permute.xlu0 %4976
        %4978 = vrot.lane.b32.xlu0 %v4967, 125
        %v4979 = vpop.permute.xlu0 %4978
        %4980 = vrot.lane.b32.xlu0 %v4969, 125
        %v4981 = vpop.permute.xlu0 %4980
        %4982 = vrot.lane.b32.xlu0 %v4971, 125
        %v4983 = vpop.permute.xlu0 %4982
        %4984 = vrot.lane.b32.xlu0 %v4973, 125
        %v4985 = vpop.permute.xlu0 %4984
        %4986 = vrot.lane.b32.xlu0 %v4975, 125
        %v4987 = vpop.permute.xlu0 %4986
        %v4988 = vsel %vm2058, %v4977, %v4979
        %v4989 = vsel %vm2058, %v4981, %v4983
        %v4990 = vsel %vm2058, %v4985, %v4987
        %v4997 = vadd.f32 %v4912, %v4977
        %v4998 = vadd.f32 %v4913, %v4988
        %v4999 = vadd.f32 %v4914, %v4981
        %v5000 = vadd.f32 %v4915, %v4989
        %v5001 = vadd.f32 %v4916, %v4985
        %v5002 = vadd.f32 %v4917, %v4990
        %v5003 = vld [vmem:[%s796] sm:$0xff]
        %v5004 = vld [vmem:[%s796 + $0x8] sm:$0xff]
        %v5005 = vld [vmem:[%s796 + $0x10] sm:$0xff]
        %v5006 = vld [vmem:[%s796 + $0x18] sm:$0xff]
        %5011 = vrot.lane.b32.xlu0 %v5003, 126
        %v5012 = vpop.permute.xlu0 %5011
        %5013 = vrot.lane.b32.xlu0 %v5004, 126
        %v5014 = vpop.permute.xlu0 %5013
        %5015 = vrot.lane.b32.xlu0 %v5005, 126
        %v5016 = vpop.permute.xlu0 %5015
        %5017 = vrot.lane.b32.xlu0 %v5006, 126
        %v5018 = vpop.permute.xlu0 %5017
        %v5023 = vmul.f32 %v4254, %v5012
        %v5024 = vmul.f32 %v4255, %v5012
        %v5025 = vmul.f32 %v4256, %v5014
        %v5026 = vmul.f32 %v4257, %v5014
        %v5027 = vmul.f32 %v4258, %v5016
        %v5028 = vmul.f32 %v4259, %v5016
        %v5029 = vmul.f32 %v4395, %v5018
        %v5030 = vmul.f32 %v4396, %v5018
        %v5039 = vrot.slane %v5023, 1
        %v5040 = vrot.slane %v5025, 1
        %v5041 = vsel %vm1104, %v5039, %v5040
        %v5042 = vrot.slane %v5024, 1
        %v5043 = vrot.slane %v5026, 1
        %v5044 = vsel %vm1104, %v5042, %v5043
        %v5045 = vrot.slane %v5027, 1
        %v5046 = vsel %vm1104, %v5040, %v5045
        %v5047 = vrot.slane %v5028, 1
        %v5048 = vsel %vm1104, %v5043, %v5047
        %v5049 = vrot.slane %v5029, 1
        %v5050 = vsel %vm1104, %v5045, %v5049
        %v5051 = vrot.slane %v5030, 1
        %v5052 = vsel %vm1104, %v5047, %v5051
        %5053 = vrot.lane.b32.xlu0 %v5041, 1
        %v5054 = vpop.permute.xlu0 %5053
        %5055 = vrot.lane.b32.xlu0 %v5044, 1
        %v5056 = vpop.permute.xlu0 %5055
        %5057 = vrot.lane.b32.xlu0 %v5046, 1
        %v5058 = vpop.permute.xlu0 %5057
        %5059 = vrot.lane.b32.xlu0 %v5048, 1
        %v5060 = vpop.permute.xlu0 %5059
        %5061 = vrot.lane.b32.xlu0 %v5050, 1
        %v5062 = vpop.permute.xlu0 %5061
        %5063 = vrot.lane.b32.xlu0 %v5052, 1
        %v5064 = vpop.permute.xlu0 %5063
        %v5065 = vsel %vm1878, %v5054, %v5056
        %v5066 = vsel %vm1878, %v5058, %v5060
        %v5067 = vsel %vm1878, %v5062, %v5064
        %v5074 = vadd.f32 %v4997, %v5054
        %v5075 = vadd.f32 %v4998, %v5065
        %v5076 = vadd.f32 %v4999, %v5058
        %v5077 = vadd.f32 %v5000, %v5066
        %v5078 = vadd.f32 %v5001, %v5062
        %v5079 = vadd.f32 %v5002, %v5067
        %v5080 = vld [vmem:[%s823] sm:$0xff]
        %v5081 = vld [vmem:[%s823 + $0x8] sm:$0xff]
        %v5082 = vld [vmem:[%s823 + $0x10] sm:$0xff]
        %v5083 = vld [vmem:[%s823 + $0x18] sm:$0xff]
        %v5084 = vmul.f32 %v4255, %v5080
        %v5085 = vmul.f32 %v4257, %v5081
        %v5086 = vmul.f32 %v4259, %v5082
        %v5087 = vmul.f32 %v4396, %v5083
        %v5092 = vrot.slane %v5084, 1
        %v5093 = vrot.slane %v5085, 1
        %v5094 = vsel %vm1104, %v5092, %v5093
        %v5095 = vrot.slane %v5086, 1
        %v5096 = vsel %vm1104, %v5093, %v5095
        %v5097 = vrot.slane %v5087, 1
        %v5098 = vsel %vm1104, %v5095, %v5097
        %5099 = vrot.lane.b32.xlu0 %v5094, 127
        %v5100 = vpop.permute.xlu0 %5099
        %5101 = vrot.lane.b32.xlu0 %v5096, 127
        %v5102 = vpop.permute.xlu0 %5101
        %5103 = vrot.lane.b32.xlu0 %v5098, 127
        %v5104 = vpop.permute.xlu0 %5103
        %v5108 = vadd.f32 %v5074, %v5100
        %v5109 = vadd.f32 %v5075, %v5100
        %v5110 = vadd.f32 %v5076, %v5102
        %v5111 = vadd.f32 %v5077, %v5102
        %v5112 = vadd.f32 %v5078, %v5104
        %v5113 = vadd.f32 %v5079, %v5104
        %v5114 = vld [vmem:[%s850] sm:$0xff]
        %v5115 = vld [vmem:[%s850 + $0x8] sm:$0xff]
        %v5116 = vld [vmem:[%s850 + $0x10] sm:$0xff]
        %v5117 = vld [vmem:[%s850 + $0x18] sm:$0xff]
        %5122 = vrot.lane.b32.xlu0 %v5114, 2
        %v5123 = vpop.permute.xlu0 %5122
        %5124 = vrot.lane.b32.xlu0 %v5115, 2
        %v5125 = vpop.permute.xlu0 %5124
        %5126 = vrot.lane.b32.xlu0 %v5116, 2
        %v5127 = vpop.permute.xlu0 %5126
        %5128 = vrot.lane.b32.xlu0 %v5117, 2
        %v5129 = vpop.permute.xlu0 %5128
        %v5134 = vmul.f32 %v4255, %v5123
        %v5135 = vmul.f32 %v4329, %v5123
        %v5136 = vmul.f32 %v4257, %v5125
        %v5137 = vmul.f32 %v4330, %v5125
        %v5138 = vmul.f32 %v4259, %v5127
        %v5139 = vmul.f32 %v4331, %v5127
        %v5140 = vmul.f32 %v4396, %v5129
        %v5141 = vmul.f32 %v4493, %v5129
        %v5150 = vrot.slane %v5134, 1
        %v5151 = vrot.slane %v5136, 1
        %v5152 = vsel %vm1104, %v5150, %v5151
        %v5153 = vrot.slane %v5135, 1
        %v5154 = vrot.slane %v5137, 1
        %v5155 = vsel %vm1104, %v5153, %v5154
        %v5156 = vrot.slane %v5138, 1
        %v5157 = vsel %vm1104, %v5151, %v5156
        %v5158 = vrot.slane %v5139, 1
        %v5159 = vsel %vm1104, %v5154, %v5158
        %v5160 = vrot.slane %v5140, 1
        %v5161 = vsel %vm1104, %v5156, %v5160
        %v5162 = vrot.slane %v5141, 1
        %v5163 = vsel %vm1104, %v5158, %v5162
        %5164 = vrot.lane.b32.xlu0 %v5152, 125
        %v5165 = vpop.permute.xlu0 %5164
        %5166 = vrot.lane.b32.xlu0 %v5155, 125
        %v5167 = vpop.permute.xlu0 %5166
        %5168 = vrot.lane.b32.xlu0 %v5157, 125
        %v5169 = vpop.permute.xlu0 %5168
        %5170 = vrot.lane.b32.xlu0 %v5159, 125
        %v5171 = vpop.permute.xlu0 %5170
        %5172 = vrot.lane.b32.xlu0 %v5161, 125
        %v5173 = vpop.permute.xlu0 %5172
        %5174 = vrot.lane.b32.xlu0 %v5163, 125
        %v5175 = vpop.permute.xlu0 %5174
        %v5176 = vsel %vm2058, %v5165, %v5167
        %v5177 = vsel %vm2058, %v5169, %v5171
        %v5178 = vsel %vm2058, %v5173, %v5175
        %v5185 = vadd.f32 %v5108, %v5165
        %v5186 = vadd.f32 %v5109, %v5176
        %v5187 = vadd.f32 %v5110, %v5169
        %v5188 = vadd.f32 %v5111, %v5177
        %v5189 = vadd.f32 %v5112, %v5173
        %v5190 = vadd.f32 %v5113, %v5178
        %v5191 = vld [vmem:[#allocation7 + $0x18] sm:$0xfc]
        %v5192 = vld [vmem:[#allocation7 + $0x20] sm:$0xfc]
        %v5193 = vld [vmem:[%s877] sm:$0xff]
        %v5194 = vld [vmem:[%s877 + $0x8] sm:$0xff]
        %v5195 = vld [vmem:[%s877 + $0x10] sm:$0xff]
        %v5196 = vld [vmem:[%s877 + $0x18] sm:$0xff]
        %v5201 = vrot.slane %v5193, 6
        %v5202 = vrot.slane %v5194, 6
        %v5203 = vsel %vm2330, %v5201, %v5202
        %v5204 = vrot.slane %v5195, 6
        %v5205 = vsel %vm2330, %v5202, %v5204
        %v5206 = vrot.slane %v5196, 6
        %v5207 = vsel %vm2330, %v5204, %v5206
        %5208 = vrot.lane.b32.xlu0 %v5201, 126
        %v5209 = vpop.permute.xlu0 %5208
        %5210 = vrot.lane.b32.xlu0 %v5203, 126
        %v5211 = vpop.permute.xlu0 %5210
        %5212 = vrot.lane.b32.xlu0 %v5205, 126
        %v5213 = vpop.permute.xlu0 %5212
        %5214 = vrot.lane.b32.xlu0 %v5207, 126
        %v5215 = vpop.permute.xlu0 %5214
        %v5220 = vmul.f32 %v5191, %v5209
        %v5221 = vmul.f32 %v5192, %v5209
        %v5222 = vmul.f32 %v4256, %v5211
        %v5223 = vmul.f32 %v4257, %v5211
        %v5224 = vmul.f32 %v4258, %v5213
        %v5225 = vmul.f32 %v4259, %v5213
        %v5226 = vmul.f32 %v4395, %v5215
        %v5227 = vmul.f32 %v4396, %v5215
        %v5236 = vrot.slane %v5220, 3
        %v5237 = vrot.slane %v5222, 3
        %v5238 = vsel %vm2373, %v5236, %v5237
        %v5239 = vrot.slane %v5221, 3
        %v5240 = vrot.slane %v5223, 3
        %v5241 = vsel %vm2373, %v5239, %v5240
        %v5242 = vrot.slane %v5224, 3
        %v5243 = vsel %vm2373, %v5237, %v5242
        %v5244 = vrot.slane %v5225, 3
        %v5245 = vsel %vm2373, %v5240, %v5244
        %v5246 = vrot.slane %v5226, 3
        %v5247 = vsel %vm2373, %v5242, %v5246
        %v5248 = vrot.slane %v5227, 3
        %v5249 = vsel %vm2373, %v5244, %v5248
        %5250 = vrot.lane.b32.xlu0 %v5238, 1
        %v5251 = vpop.permute.xlu0 %5250
        %5252 = vrot.lane.b32.xlu0 %v5241, 1
        %v5253 = vpop.permute.xlu0 %5252
        %5254 = vrot.lane.b32.xlu0 %v5243, 1
        %v5255 = vpop.permute.xlu0 %5254
        %5256 = vrot.lane.b32.xlu0 %v5245, 1
        %v5257 = vpop.permute.xlu0 %5256
        %5258 = vrot.lane.b32.xlu0 %v5247, 1
        %v5259 = vpop.permute.xlu0 %5258
        %5260 = vrot.lane.b32.xlu0 %v5249, 1
        %v5261 = vpop.permute.xlu0 %5260
        %v5262 = vsel %vm1878, %v5251, %v5253
        %v5263 = vsel %vm1878, %v5255, %v5257
        %v5264 = vsel %vm1878, %v5259, %v5261
        %v5271 = vadd.f32 %v5185, %v5251
        %v5272 = vadd.f32 %v5186, %v5262
        %v5273 = vadd.f32 %v5187, %v5255
        %v5274 = vadd.f32 %v5188, %v5263
        %v5275 = vadd.f32 %v5189, %v5259
        %v5276 = vadd.f32 %v5190, %v5264
        %v5277 = vld [vmem:[%s904] sm:$0xff]
        %v5278 = vld [vmem:[%s904 + $0x8] sm:$0xff]
        %v5279 = vld [vmem:[%s904 + $0x10] sm:$0xff]
        %v5280 = vld [vmem:[%s904 + $0x18] sm:$0xff]
        %v5285 = vrot.slane %v5277, 6
        %v5286 = vrot.slane %v5278, 6
        %v5287 = vsel %vm2330, %v5285, %v5286
        %v5288 = vrot.slane %v5279, 6
        %v5289 = vsel %vm2330, %v5286, %v5288
        %v5290 = vrot.slane %v5280, 6
        %v5291 = vsel %vm2330, %v5288, %v5290
        %v5296 = vmul.f32 %v5192, %v5285
        %v5297 = vmul.f32 %v4257, %v5287
        %v5298 = vmul.f32 %v4259, %v5289
        %v5299 = vmul.f32 %v4396, %v5291
        %v5304 = vrot.slane %v5296, 3
        %v5305 = vrot.slane %v5297, 3
        %v5306 = vsel %vm2373, %v5304, %v5305
        %v5307 = vrot.slane %v5298, 3
        %v5308 = vsel %vm2373, %v5305, %v5307
        %v5309 = vrot.slane %v5299, 3
        %v5310 = vsel %vm2373, %v5307, %v5309
        %5311 = vrot.lane.b32.xlu0 %v5306, 127
        %v5312 = vpop.permute.xlu0 %5311
        %5313 = vrot.lane.b32.xlu0 %v5308, 127
        %v5314 = vpop.permute.xlu0 %5313
        %5315 = vrot.lane.b32.xlu0 %v5310, 127
        %v5316 = vpop.permute.xlu0 %5315
        %v5320 = vadd.f32 %v5271, %v5312
        %v5321 = vadd.f32 %v5272, %v5312
        %v5322 = vadd.f32 %v5273, %v5314
        %v5323 = vadd.f32 %v5274, %v5314
        %v5324 = vadd.f32 %v5275, %v5316
        %v5325 = vadd.f32 %v5276, %v5316
        %v5326 = vld [vmem:[#allocation7 + $0x20] sm:$0xfc]
        %v5327 = vld [vmem:[#allocation7 + $0x28] sm:$0xfc]
        %v5328 = vld [vmem:[%s931] sm:$0xff]
        %v5329 = vld [vmem:[%s931 + $0x8] sm:$0xff]
        %v5330 = vld [vmem:[%s931 + $0x10] sm:$0xff]
        %v5331 = vld [vmem:[%s931 + $0x18] sm:$0xff]
        %v5336 = vrot.slane %v5328, 6
        %v5337 = vrot.slane %v5329, 6
        %v5338 = vsel %vm2330, %v5336, %v5337
        %v5339 = vrot.slane %v5330, 6
        %v5340 = vsel %vm2330, %v5337, %v5339
        %v5341 = vrot.slane %v5331, 6
        %v5342 = vsel %vm2330, %v5339, %v5341
        %5343 = vrot.lane.b32.xlu0 %v5336, 2
        %v5344 = vpop.permute.xlu0 %5343
        %5345 = vrot.lane.b32.xlu0 %v5338, 2
        %v5346 = vpop.permute.xlu0 %5345
        %5347 = vrot.lane.b32.xlu0 %v5340, 2
        %v5348 = vpop.permute.xlu0 %5347
        %5349 = vrot.lane.b32.xlu0 %v5342, 2
        %v5350 = vpop.permute.xlu0 %5349
        %v5355 = vmul.f32 %v5326, %v5344
        %v5356 = vmul.f32 %v5327, %v5344
        %v5357 = vmul.f32 %v4693, %v5346
        %v5358 = vmul.f32 %v4694, %v5346
        %v5359 = vmul.f32 %v4695, %v5348
        %v5360 = vmul.f32 %v4696, %v5348
        %v5361 = vmul.f32 %v4697, %v5350
        %v5362 = vmul.f32 %v4698, %v5350
        %v5371 = vrot.slane %v5355, 3
        %v5372 = vrot.slane %v5357, 3
        %v5373 = vsel %vm2373, %v5371, %v5372
        %v5374 = vrot.slane %v5356, 3
        %v5375 = vrot.slane %v5358, 3
        %v5376 = vsel %vm2373, %v5374, %v5375
        %v5377 = vrot.slane %v5359, 3
        %v5378 = vsel %vm2373, %v5372, %v5377
        %v5379 = vrot.slane %v5360, 3
        %v5380 = vsel %vm2373, %v5375, %v5379
        %v5381 = vrot.slane %v5361, 3
        %v5382 = vsel %vm2373, %v5377, %v5381
        %v5383 = vrot.slane %v5362, 3
        %v5384 = vsel %vm2373, %v5379, %v5383
        %5385 = vrot.lane.b32.xlu0 %v5373, 125
        %v5386 = vpop.permute.xlu0 %5385
        %5387 = vrot.lane.b32.xlu0 %v5376, 125
        %v5388 = vpop.permute.xlu0 %5387
        %5389 = vrot.lane.b32.xlu0 %v5378, 125
        %v5390 = vpop.permute.xlu0 %5389
        %5391 = vrot.lane.b32.xlu0 %v5380, 125
        %v5392 = vpop.permute.xlu0 %5391
        %5393 = vrot.lane.b32.xlu0 %v5382, 125
        %v5394 = vpop.permute.xlu0 %5393
        %5395 = vrot.lane.b32.xlu0 %v5384, 125
        %v5396 = vpop.permute.xlu0 %5395
        %v5397 = vsel %vm2058, %v5386, %v5388
        %v5398 = vsel %vm2058, %v5390, %v5392
        %v5399 = vsel %vm2058, %v5394, %v5396
        %v5406 = vadd.f32 %v5320, %v5386
        %v5407 = vadd.f32 %v5321, %v5397
        %v5408 = vadd.f32 %v5322, %v5390
        %v5409 = vadd.f32 %v5323, %v5398
        %v5410 = vadd.f32 %v5324, %v5394
        %v5411 = vadd.f32 %v5325, %v5399
        %5418 = vrot.lane.b32.xlu0 %v5406, 1
        %v5419 = vpop.permute.xlu0 %5418
        %5420 = vrot.lane.b32.xlu0 %v5407, 1
        %v5421 = vpop.permute.xlu0 %5420
        %5422 = vrot.lane.b32.xlu0 %v5408, 1
        %v5423 = vpop.permute.xlu0 %5422
        %5424 = vrot.lane.b32.xlu0 %v5409, 1
        %v5425 = vpop.permute.xlu0 %5424
        %5426 = vrot.lane.b32.xlu0 %v5410, 1
        %v5427 = vpop.permute.xlu0 %5426
        %5428 = vrot.lane.b32.xlu0 %v5411, 1
        %v5429 = vpop.permute.xlu0 %5428
        %v5430 = vsel %vm1878, %v5419, %v5421
        %v5431 = vsel %vm1878, %v5423, %v5425
        %v5432 = vsel %vm1878, %v5427, %v5429
        %5436 = vst [vmem:[%s61 - $0x7] sm:$0x80] %v5430
        %5437 = vst [vmem:[%s61 + $0x1] sm:$0xff] %v5431
        %5438 = vst [vmem:[%s61 + $0x9] sm:$0x7f] %v5432
        %s5439 = sand.u32 %s34, 1
        %s5440 = scalar_lea.sflag [#allocation10], %s5439
        %s5441 = sand.u32 %s34, 1
        %s5442 = smul.addr %s5441, 16
        %s5443 = scalar_lea.vmem [#allocation9], %s5442
        // Predicated region
        $region29: #{tpu_custom_call.1} parent=11 // pred_check
          %p5444 = pneg %p40
        $region30: #{tpu_custom_call.1} parent=11 // pred_check_branch
          %5446 = sbr.rel (%p5444) target = $region32
        $region31: #{tpu_custom_call.1} parent=11 // pred_region
          %s5447 = smul.u32 2, %s20
          %s5449 = ssub.s32 256, 256
          %5450 = vsyncadd %s5440, %s5449
          %s5451 = smul.addr %s19, 2
          %s5452 = sadd.s32 %s5447, %s5451
          %s5453 = smul.addr %s5452, 128
          %s5454 = scalar_lea.hbm %s4, %s5453
          %s5455 = sshll.u32 %s5443, 4
          %s5456 = int_to_ptr.vmem [resolvable:$true] %s5455
          %5461 = dma.vmem_to_hbm [thread:$0]  %s5456, 256, %s5454, %s5440, 128, 128, 8
        $region32: #{tpu_custom_call.1} parent=11 // pred_fallthru
          _
      $region12: #{tpu_custom_call.1} parent=5 // pred_fallthru
        _
      %p5462 = scmp.le.s32.totalorder 1, %s13
      // Predicated region
      $region33: #{tpu_custom_call.1} parent=5 // pred_check
        %p5463 = pneg %p5462
      $region34: #{tpu_custom_call.1} parent=5 // pred_check_branch
        %5465 = sbr.rel (%p5463) target = $region36
      $region35: #{tpu_custom_call.1} parent=5 // pred_region
        %s5466 = ssub.s32 %s13, 1
        // Predicated region
        $region37: #{tpu_custom_call.1} parent=35 // pred_check
          %p5467 = pneg %p46
        $region38: #{tpu_custom_call.1} parent=35 // pred_check_branch
          %5469 = sbr.rel (%p5467) target = $region40
        $region39: #{tpu_custom_call.1} parent=35 // pred_region
          %s5470 = sand.u32 %s37, 1
          %s5471 = scalar_lea.sflag [#allocation10], %s5470
          %s5472 = sand.u32 %s37, 1
          %s5473 = smul.addr %s5472, 16
          %s5474 = scalar_lea.vmem [#allocation9], %s5473
          %5475 = dma.done %s5471, 256
        $region40: #{tpu_custom_call.1} parent=35 // pred_fallthru
          _
      $region36: #{tpu_custom_call.1} parent=5 // pred_fallthru
        _
    $region6: #{tpu_custom_call.1} parent=1 // loop_footer
      %s17 = sadd.s32 1, %s13
    $region7: #{tpu_custom_call.1} parent=1 // loop_footer_branch
      %12 = sbr.rel target = $region3
    $region8: #{tpu_custom_call.1} parent=1 // loop_exit
      _
    %5476 = vsyncpa [#allocation10], 1
    %s5477 = scalar_lea.sflag [#allocation10], 1
    %5478 = vsyncpa %s5477, 1
  %5479 = vsyncmov [#allocation8]
  %s5480 = vpop.sfrf %5479
  %p5481 = scmp.eq.s32.totalorder %s5480, 0
  %p5482 = pneg %p5481
  %5484 = shalt.err (%p5482)
  %s5485 = scalar_lea.sflag [#allocation8], 1
  %5486 = vsyncmov %s5485
  %s5487 = vpop.sfrf %5486
  %p5488 = scmp.eq.s32.totalorder %s5487, 0
  %p5489 = pneg %p5488
  %5491 = shalt.err (%p5489)
  %s5492 = scalar_lea.sflag [#allocation8], 2
  %5493 = vsyncmov %s5492
  %s5494 = vpop.sfrf %5493
  %p5495 = scmp.eq.s32.totalorder %s5494, 0
  %p5496 = pneg %p5495
  %5498 = shalt.err (%p5496)
  %s5499 = scalar_lea.sflag [#allocation8], 3
  %5500 = vsyncmov %s5499
  %s5501 = vpop.sfrf %5500
  %p5502 = scmp.eq.s32.totalorder %s5501, 0
  %p5503 = pneg %p5502
  %5505 = shalt.err (%p5503)

</llo_original>
